<compile_context>
chip_gen: v7x
topology: tpu7x:2x2x1
jax: 0.10.0
libtpu: 0.0.40
codegen_flags: <defaults>
</compile_context>

<pallas_src>
import functools

import jax
import jax.numpy as jnp
from jax import lax
from jax.experimental import pallas as pl
from jax.experimental.pallas import tpu as pltpu


# ---------------------------------------------------------------------------
# Fused Pallas kernel: 10 conv layers, all activations stay in VMEM / vregs.
# ---------------------------------------------------------------------------
def _rced10_fused_kernel(x0_ref, w0_ref, e_ref, e2_ref, m_ref, c_ref, crep_ref,
                         shifts_ref, wf_ref, *rest,
                         n_mid, shift_offs, shift_widths):
    # rest = (W1_hbm..W8_hbm, o_ref, W1_vmem..W8_vmem, dma_sems)
    w_hbm = rest[:n_mid]
    o_ref = rest[n_mid]
    w_vmem = rest[n_mid + 1:2 * n_mid + 1]
    sems = rest[2 * n_mid + 1]

    f32 = jnp.float32

    # Kick off all middle-layer weight DMAs immediately so they overlap with the
    # (comparatively long) layer-1 im2col matmul.
    copies = []
    for i in range(n_mid):
        cp = pltpu.make_async_copy(w_hbm[i], w_vmem[i], sems.at[i])
        cp.start()
        copies.append(cp)

    def shift_row(i):
        off = shift_offs[i]
        return shifts_ref[:, off:off + shift_widths[i]]   # static, 128-aligned offsets

    # ---- Layer 1: Conv(257->12, k=13) + BN + ReLU as a single im2col matmul.
    # Rows are (batch, frame) positions; columns are output channels.
    h_pos = jnp.dot(x0_ref[...], w0_ref[...], preferred_element_type=f32) + shift_row(0)
    h_pos = jnp.maximum(h_pos, 0.0)                                   # (B*L, 12)

    # ---- Hand-off: (B*L, 12) position-major -> (B, 12*L) NCL-flat (c*L + l).
    # spread channels across L lanes, mask each row to its own frame, sum rows per batch.
    spread = jnp.dot(h_pos, e_ref[...], preferred_element_type=f32) * m_ref[...]
    h = jnp.dot(c_ref[...], spread, preferred_element_type=f32)       # (B, 12*L)

    # ---- Layers 2..9: Toeplitz-folded Conv + BN + ReLU on NCL-flat activations.
    for i in range(n_mid):
        copies[i].wait()
        h = jnp.dot(h, w_vmem[i][...], preferred_element_type=f32) + shift_row(1 + i)
        h = jnp.maximum(h, 0.0)

    # ---- Hand-off back: (B, 12*L) NCL-flat -> (B*L, 12) position-major.
    rep = jnp.dot(crep_ref[...], h, preferred_element_type=f32) * m_ref[...]
    h_pos = jnp.dot(rep, e2_ref[...], preferred_element_type=f32)     # (B*L, 12)

    # ---- Layer 10: 1x1 Conv(12 -> 257), dense small matmul, no ReLU.
    y = jnp.dot(h_pos, wf_ref[...], preferred_element_type=f32) + shift_row(1 + n_mid)
    o_ref[...] = y.astype(o_ref.dtype)


# ---------------------------------------------------------------------------
# One-time parameter preparation.
# ---------------------------------------------------------------------------
def _toeplitz_fold(p, L):
    """Conv1d(w,b)+BN(scale,shift) -> (W, s) s.t. block == X @ W + s on NCL-flat
    activations X[b, ci*L + li].  (Verified construction from v1.)"""
    w, b, scale, shift = p["w"], p["b"], p["scale"], p["shift"]
    cout, cin, k = w.shape
    pad = k // 2
    li = jnp.arange(L)[:, None]
    lo = jnp.arange(L)[None, :]
    tap = li - lo + pad                                    # (L, L)
    valid = (tap >= 0) & (tap < k)
    tap_c = jnp.clip(tap, 0, k - 1)
    wt = w[:, :, tap_c]                                    # (Cout, Cin, L, L)
    wt = jnp.where(valid[None, None], wt, 0.0)
    wt = wt * scale[:, None, None, None]                   # fold BN scale per Cout
    W = jnp.transpose(wt, (1, 2, 0, 3)).reshape(cin * L, cout * L)
    s = jnp.repeat(b * scale + shift, L).reshape(1, cout * L)
    return W.astype(jnp.float32), s.astype(jnp.float32)


def _pack_rows(rows):
    """Concatenate (1, w_i) rows into one (1, total) row, each segment padded to a
    multiple of 128 lanes so in-kernel slices are lane-aligned."""
    pieces, offs, widths = [], [], []
    cur = 0
    for r in rows:
        w = int(r.shape[-1])
        padded = ((w + 127) // 128) * 128
        pieces.append(jnp.pad(r.astype(jnp.float32), ((0, 0), (0, padded - w))))
        offs.append(cur)
        widths.append(w)
        cur += padded
    return jnp.concatenate(pieces, axis=1), offs, widths


def prepare_fused_params(params, batch, L):
    first, *mids, last = params

    # Layer 1: raw im2col weight, BN folded into per-Cout scale + shift.
    w, b = first["w"], first["b"]
    scale, shift = first["scale"], first["shift"]
    cout0, cin0, k0 = w.shape
    W0 = jnp.transpose(w * scale[:, None, None], (1, 2, 0)).reshape(cin0 * k0, cout0)
    s0 = (b * scale + shift).reshape(1, cout0)

    # Layers 2..9: Toeplitz fold (NCL-flat layout).
    mid_W, mid_s = [], []
    for p in mids:
        Wm, sm = _toeplitz_fold(p, L)
        mid_W.append(Wm)
        mid_s.append(sm)

    # Layer 10: 1x1 conv as a dense (12, 257) matmul.
    w, b = last["w"], last["b"]
    Wf = jnp.transpose(w[:, :, 0], (1, 0)) * last["scale"][None, :]
    bf = (b * last["scale"] + last["shift"]).reshape(1, -1)

    # Layout hand-off matrices (tiny, exact 0/1 f32).
    r = jnp.arange(batch * L)
    j = jnp.arange(cout0 * L)
    M = (r[:, None] % L == j[None, :] % L).astype(jnp.float32)              # (B*L, 12*L)
    E = (jnp.arange(cout0)[:, None] == j[None, :] // L).astype(jnp.float32)  # (12, 12*L)
    C = (jnp.arange(batch)[:, None] == r[None, :] // L).astype(jnp.float32)  # (B, B*L)

    shifts, offs, widths = _pack_rows([s0] + mid_s + [bf])

    return dict(
        W0=W0.astype(jnp.float32), Wf=Wf.astype(jnp.float32),
        mid_W=[x.astype(jnp.float32) for x in mid_W],
        E=E, E2=E.T, M=M, C=C, Crep=C.T,
        shifts=shifts, shift_offs=offs, shift_widths=widths)


# ---------------------------------------------------------------------------
# Full forward: XLA-side im2col of the tiny input, one pallas_call, output relayout.
# ---------------------------------------------------------------------------
def rced10_forward_pallas(x_ncl, prep):
    B, C0, L = x_ncl.shape
    W0 = prep["W0"]
    K0 = W0.shape[0] // C0
    pad = K0 // 2

    # im2col of the tiny input (16 KiB -> ~210 KiB), fused XLA ops in the wrapper.
    x_pad = jnp.pad(x_ncl, ((0, 0), (0, 0), (pad, pad)))
    gather_idx = jnp.arange(L)[:, None] + jnp.arange(K0)[None, :]        # (L, K0)
    x_col = x_pad[:, :, gather_idx]                                       # (B, C0, L, K0)
    x_col = jnp.transpose(x_col, (0, 2, 1, 3)).reshape(B * L, C0 * K0)

    mid_W = prep["mid_W"]
    n_mid = len(mid_W)
    c0 = W0.shape[1]
    n_out = prep["Wf"].shape[1]
    cl = c0 * L

    kernel = functools.partial(
        _rced10_fused_kernel, n_mid=n_mid,
        shift_offs=tuple(prep["shift_offs"]),
        shift_widths=tuple(prep["shift_widths"]))

    vmem = pl.BlockSpec(memory_space=pltpu.MemorySpace.VMEM)
    hbm = pl.BlockSpec(memory_space=pl.ANY)

    dense_ops = (x_col, W0, prep["E"], prep["E2"], prep["M"], prep["C"],
                 prep["Crep"], prep["shifts"], prep["Wf"])

    # Advisory cost estimate so XLA can schedule/overlap this µs-scale custom call.
    flops = 2 * B * L * W0.shape[0] * c0
    flops += 2 * B * L * c0 * cl + 2 * B * (B * L) * cl                 # hand-off in
    flops += sum(2 * B * w.shape[0] * w.shape[1] for w in mid_W)
    flops += 2 * (B * L) * B * cl + 2 * (B * L) * cl * c0               # hand-off out
    flops += 2 * B * L * c0 * n_out
    bytes_accessed = sum(int(a.size) * 4 for a in dense_ops)
    bytes_accessed += sum(int(w.size) * 4 for w in mid_W) + B * L * n_out * 4

    y_pos = pl.pallas_call(
        kernel,
        out_shape=jax.ShapeDtypeStruct((B * L, n_out), jnp.float32),
        in_specs=[vmem] * len(dense_ops) + [hbm] * n_mid,
        out_specs=vmem,
        scratch_shapes=[pltpu.VMEM(w.shape, jnp.float32) for w in mid_W]
                       + [pltpu.SemaphoreType.DMA((n_mid,))],
        cost_estimate=pl.CostEstimate(flops=int(flops), transcendentals=0,
                                      bytes_accessed=int(bytes_accessed)),
    )(*dense_ops, *mid_W)

    # (B*L, 257) position-major -> (B, 257, L) NCL; tiny, done by XLA.
    return jnp.transpose(y_pos.reshape(B, L, n_out), (0, 2, 1))


# ---------------------------------------------------------------------------
# Deterministic parameter construction (synthetic weights, BN in eval mode).
# ---------------------------------------------------------------------------
def make_params(key, n_freq_bins=257):
    block_cfg = [
        (n_freq_bins, 12, 13), (12, 16, 11), (16, 20, 9), (20, 24, 7), (24, 32, 7),
        (32, 24, 7), (24, 20, 9), (20, 16, 11), (16, 12, 13),
    ]
    eps = 1e-5
    params = []
    for (cin, cout, k) in block_cfg:
        key, k1, k2, k3, k4, k5, k6 = jax.random.split(key, 7)
        w = 0.05 * jax.random.normal(k1, (cout, cin, k), jnp.float32)
        b = 0.01 * jax.random.normal(k2, (cout,), jnp.float32)
        gamma = 1.0 + 0.1 * jax.random.normal(k3, (cout,), jnp.float32)
        beta = 0.05 * jax.random.normal(k4, (cout,), jnp.float32)
        running_mean = 0.05 * jax.random.normal(k5, (cout,), jnp.float32)
        running_var = 0.5 + jax.random.uniform(k6, (cout,), jnp.float32)
        scale = gamma / jnp.sqrt(running_var + eps)        # eval-mode BN -> affine
        shift = beta - running_mean * scale
        params.append(dict(w=w, b=b, scale=scale, shift=shift, relu=True))
    # Final Conv1d(12 -> n_freq_bins, kernel_size=1), no BN, no ReLU.
    key, k1, k2 = jax.random.split(key, 3)
    w = 0.05 * jax.random.normal(k1, (n_freq_bins, 12, 1), jnp.float32)
    b = 0.01 * jax.random.normal(k2, (n_freq_bins,), jnp.float32)
    params.append(dict(w=w, b=b,
                       scale=jnp.ones((n_freq_bins,), jnp.float32),
                       shift=jnp.zeros((n_freq_bins,), jnp.float32),
                       relu=False))
    return params


# ---------------------------------------------------------------------------
# Pure-JAX reference (unfolded conv/BN) for verification.
# ---------------------------------------------------------------------------
def rced10_forward_ref(x_ncl, params):
    h = x_ncl
    for p in params:
        w, b = p["w"], p["b"]
        k = w.shape[-1]
        y = lax.conv_general_dilated(
            h, w, window_strides=(1,), padding=[(k // 2, k // 2)],
            dimension_numbers=("NCH", "OIH", "NCH"),
        ) + b[None, :, None]
        y = y * p["scale"][None, :, None] + p["shift"][None, :, None]
        if p["relu"]:
            y = jnp.maximum(y, 0.0)
        h = y
    return h


if __name__ == "__main__":
    n_freq_bins, n_frames, batch = 257, 8, 2

    key = jax.random.PRNGKey(0)
    key, xkey = jax.random.split(key)
    x = jax.random.normal(xkey, (batch, n_freq_bins, n_frames), jnp.float32)

    params = make_params(key, n_freq_bins=n_freq_bins)
    prep = prepare_fused_params(params, batch=batch, L=n_frames)

    fwd = jax.jit(lambda xx: rced10_forward_pallas(xx, prep))
    y = fwd(x)
    jax.block_until_ready(y)

    assert y.shape == (batch, n_freq_bins, n_frames), y.shape

    y_ref = rced10_forward_ref(x, params)
    err = float(jnp.max(jnp.abs(y - y_ref)))
    if not (err < 5e-4):
        raise AssertionError(f"Pallas output mismatch vs reference, max abs err={err}")

    print("KERNEL_OK")
</pallas_src>

<mosaic_0001>
module attributes {stable_mosaic.version = 11 : i64} {
  func.func @_rced10_fused_kernel(%arg0: memref<16x3341xf32, #tpu.memory_space<vmem>>, %arg1: memref<3341x12xf32, #tpu.memory_space<vmem>>, %arg2: memref<12x96xf32, #tpu.memory_space<vmem>>, %arg3: memref<96x12xf32, #tpu.memory_space<vmem>>, %arg4: memref<16x96xf32, #tpu.memory_space<vmem>>, %arg5: memref<2x16xf32, #tpu.memory_space<vmem>>, %arg6: memref<16x2xf32, #tpu.memory_space<vmem>>, %arg7: memref<1x2176xf32, #tpu.memory_space<vmem>>, %arg8: memref<12x257xf32, #tpu.memory_space<vmem>>, %arg9: memref<96x128xf32, #tpu.memory_space<any>>, %arg10: memref<128x160xf32, #tpu.memory_space<any>>, %arg11: memref<160x192xf32, #tpu.memory_space<any>>, %arg12: memref<192x256xf32, #tpu.memory_space<any>>, %arg13: memref<256x192xf32, #tpu.memory_space<any>>, %arg14: memref<192x160xf32, #tpu.memory_space<any>>, %arg15: memref<160x128xf32, #tpu.memory_space<any>>, %arg16: memref<128x96xf32, #tpu.memory_space<any>>, %arg17: memref<16x257xf32, #tpu.memory_space<vmem>>, %arg18: memref<96x128xf32, #tpu.memory_space<vmem>>, %arg19: memref<128x160xf32, #tpu.memory_space<vmem>>, %arg20: memref<160x192xf32, #tpu.memory_space<vmem>>, %arg21: memref<192x256xf32, #tpu.memory_space<vmem>>, %arg22: memref<256x192xf32, #tpu.memory_space<vmem>>, %arg23: memref<192x160xf32, #tpu.memory_space<vmem>>, %arg24: memref<160x128xf32, #tpu.memory_space<vmem>>, %arg25: memref<128x96xf32, #tpu.memory_space<vmem>>, %arg26: memref<8x!tpu.dma_semaphore, #tpu.memory_space<semaphore_mem>>) attributes {dimension_semantics = [], scalar_prefetch = 0 : i64, scratch_operands = 9 : i64, tpu.core_type = #tpu.core_type<tc>} {
    %c0_i32 = arith.constant 0 : i32
    %0 = tpu.memref_slice %arg26[%c0_i32] : memref<8x!tpu.dma_semaphore, #tpu.memory_space<semaphore_mem>> -> memref<1x!tpu.dma_semaphore, #tpu.memory_space<semaphore_mem>>
    %1 = tpu.memref_squeeze %0 : memref<1x!tpu.dma_semaphore, #tpu.memory_space<semaphore_mem>> -> memref<!tpu.dma_semaphore, #tpu.memory_space<semaphore_mem>>
    tpu.enqueue_dma source(%arg9 : memref<96x128xf32, #tpu.memory_space<any>>) target(%arg18 : memref<96x128xf32, #tpu.memory_space<vmem>>) target_semaphore(%1 : memref<!tpu.dma_semaphore, #tpu.memory_space<semaphore_mem>>)
    %c1_i32 = arith.constant 1 : i32
    %2 = tpu.memref_slice %arg26[%c1_i32] : memref<8x!tpu.dma_semaphore, #tpu.memory_space<semaphore_mem>> -> memref<1x!tpu.dma_semaphore, #tpu.memory_space<semaphore_mem>>
    %3 = tpu.memref_squeeze %2 : memref<1x!tpu.dma_semaphore, #tpu.memory_space<semaphore_mem>> -> memref<!tpu.dma_semaphore, #tpu.memory_space<semaphore_mem>>
    tpu.enqueue_dma source(%arg10 : memref<128x160xf32, #tpu.memory_space<any>>) target(%arg19 : memref<128x160xf32, #tpu.memory_space<vmem>>) target_semaphore(%3 : memref<!tpu.dma_semaphore, #tpu.memory_space<semaphore_mem>>)
    %c2_i32 = arith.constant 2 : i32
    %4 = tpu.memref_slice %arg26[%c2_i32] : memref<8x!tpu.dma_semaphore, #tpu.memory_space<semaphore_mem>> -> memref<1x!tpu.dma_semaphore, #tpu.memory_space<semaphore_mem>>
    %5 = tpu.memref_squeeze %4 : memref<1x!tpu.dma_semaphore, #tpu.memory_space<semaphore_mem>> -> memref<!tpu.dma_semaphore, #tpu.memory_space<semaphore_mem>>
    tpu.enqueue_dma source(%arg11 : memref<160x192xf32, #tpu.memory_space<any>>) target(%arg20 : memref<160x192xf32, #tpu.memory_space<vmem>>) target_semaphore(%5 : memref<!tpu.dma_semaphore, #tpu.memory_space<semaphore_mem>>)
    %c3_i32 = arith.constant 3 : i32
    %6 = tpu.memref_slice %arg26[%c3_i32] : memref<8x!tpu.dma_semaphore, #tpu.memory_space<semaphore_mem>> -> memref<1x!tpu.dma_semaphore, #tpu.memory_space<semaphore_mem>>
    %7 = tpu.memref_squeeze %6 : memref<1x!tpu.dma_semaphore, #tpu.memory_space<semaphore_mem>> -> memref<!tpu.dma_semaphore, #tpu.memory_space<semaphore_mem>>
    tpu.enqueue_dma source(%arg12 : memref<192x256xf32, #tpu.memory_space<any>>) target(%arg21 : memref<192x256xf32, #tpu.memory_space<vmem>>) target_semaphore(%7 : memref<!tpu.dma_semaphore, #tpu.memory_space<semaphore_mem>>)
    %c4_i32 = arith.constant 4 : i32
    %8 = tpu.memref_slice %arg26[%c4_i32] : memref<8x!tpu.dma_semaphore, #tpu.memory_space<semaphore_mem>> -> memref<1x!tpu.dma_semaphore, #tpu.memory_space<semaphore_mem>>
    %9 = tpu.memref_squeeze %8 : memref<1x!tpu.dma_semaphore, #tpu.memory_space<semaphore_mem>> -> memref<!tpu.dma_semaphore, #tpu.memory_space<semaphore_mem>>
    tpu.enqueue_dma source(%arg13 : memref<256x192xf32, #tpu.memory_space<any>>) target(%arg22 : memref<256x192xf32, #tpu.memory_space<vmem>>) target_semaphore(%9 : memref<!tpu.dma_semaphore, #tpu.memory_space<semaphore_mem>>)
    %c5_i32 = arith.constant 5 : i32
    %10 = tpu.memref_slice %arg26[%c5_i32] : memref<8x!tpu.dma_semaphore, #tpu.memory_space<semaphore_mem>> -> memref<1x!tpu.dma_semaphore, #tpu.memory_space<semaphore_mem>>
    %11 = tpu.memref_squeeze %10 : memref<1x!tpu.dma_semaphore, #tpu.memory_space<semaphore_mem>> -> memref<!tpu.dma_semaphore, #tpu.memory_space<semaphore_mem>>
    tpu.enqueue_dma source(%arg14 : memref<192x160xf32, #tpu.memory_space<any>>) target(%arg23 : memref<192x160xf32, #tpu.memory_space<vmem>>) target_semaphore(%11 : memref<!tpu.dma_semaphore, #tpu.memory_space<semaphore_mem>>)
    %c6_i32 = arith.constant 6 : i32
    %12 = tpu.memref_slice %arg26[%c6_i32] : memref<8x!tpu.dma_semaphore, #tpu.memory_space<semaphore_mem>> -> memref<1x!tpu.dma_semaphore, #tpu.memory_space<semaphore_mem>>
    %13 = tpu.memref_squeeze %12 : memref<1x!tpu.dma_semaphore, #tpu.memory_space<semaphore_mem>> -> memref<!tpu.dma_semaphore, #tpu.memory_space<semaphore_mem>>
    tpu.enqueue_dma source(%arg15 : memref<160x128xf32, #tpu.memory_space<any>>) target(%arg24 : memref<160x128xf32, #tpu.memory_space<vmem>>) target_semaphore(%13 : memref<!tpu.dma_semaphore, #tpu.memory_space<semaphore_mem>>)
    %c7_i32 = arith.constant 7 : i32
    %14 = tpu.memref_slice %arg26[%c7_i32] : memref<8x!tpu.dma_semaphore, #tpu.memory_space<semaphore_mem>> -> memref<1x!tpu.dma_semaphore, #tpu.memory_space<semaphore_mem>>
    %15 = tpu.memref_squeeze %14 : memref<1x!tpu.dma_semaphore, #tpu.memory_space<semaphore_mem>> -> memref<!tpu.dma_semaphore, #tpu.memory_space<semaphore_mem>>
    tpu.enqueue_dma source(%arg16 : memref<128x96xf32, #tpu.memory_space<any>>) target(%arg25 : memref<128x96xf32, #tpu.memory_space<vmem>>) target_semaphore(%15 : memref<!tpu.dma_semaphore, #tpu.memory_space<semaphore_mem>>)
    %c0 = arith.constant 0 : index
    %c0_0 = arith.constant 0 : index
    %16 = vector.load %arg0[%c0, %c0_0] : memref<16x3341xf32, #tpu.memory_space<vmem>>, vector<16x3341xf32>
    %c0_1 = arith.constant 0 : index
    %c0_2 = arith.constant 0 : index
    %17 = vector.load %arg1[%c0_1, %c0_2] : memref<3341x12xf32, #tpu.memory_space<vmem>>, vector<3341x12xf32>
    %cst = arith.constant dense<0.000000e+00> : vector<16x12xf32>
    %18 = tpu.matmul %16, %17, %cst {dimension_numbers = #tpu.dot_dimension_numbers<[1], [0], [0], [1], [0, 0, 1, 1], [], []>} : vector<16x3341xf32>, vector<3341x12xf32>, vector<16x12xf32> -> vector<16x12xf32>
    %c0_3 = arith.constant 0 : index
    %c0_4 = arith.constant 0 : index
    %19 = vector.load %arg7[%c0_3, %c0_4] : memref<1x2176xf32, #tpu.memory_space<vmem>>, vector<1x12xf32>
    %20 = vector.broadcast %19 : vector<1x12xf32> to vector<16x12xf32>
    %21 = arith.addf %18, %20 : vector<16x12xf32>
    %cst_5 = arith.constant 0.000000e+00 : f32
    %22 = vector.broadcast %cst_5 : f32 to vector<16x12xf32>
    %23 = arith.maximumf %21, %22 : vector<16x12xf32>
    %c0_6 = arith.constant 0 : index
    %c0_7 = arith.constant 0 : index
    %24 = vector.load %arg2[%c0_6, %c0_7] : memref<12x96xf32, #tpu.memory_space<vmem>>, vector<12x96xf32>
    %cst_8 = arith.constant dense<0.000000e+00> : vector<16x96xf32>
    %25 = tpu.matmul %23, %24, %cst_8 {dimension_numbers = #tpu.dot_dimension_numbers<[1], [0], [0], [1], [0, 0, 1, 1], [], []>} : vector<16x12xf32>, vector<12x96xf32>, vector<16x96xf32> -> vector<16x96xf32>
    %c0_9 = arith.constant 0 : index
    %c0_10 = arith.constant 0 : index
    %26 = vector.load %arg4[%c0_9, %c0_10] : memref<16x96xf32, #tpu.memory_space<vmem>>, vector<16x96xf32>
    %27 = arith.mulf %25, %26 : vector<16x96xf32>
    %c0_11 = arith.constant 0 : index
    %c0_12 = arith.constant 0 : index
    %28 = vector.load %arg5[%c0_11, %c0_12] : memref<2x16xf32, #tpu.memory_space<vmem>>, vector<2x16xf32>
    %cst_13 = arith.constant dense<0.000000e+00> : vector<2x96xf32>
    %29 = tpu.matmul %28, %27, %cst_13 {dimension_numbers = #tpu.dot_dimension_numbers<[1], [0], [0], [1], [0, 0, 1, 1], [], []>} : vector<2x16xf32>, vector<16x96xf32>, vector<2x96xf32> -> vector<2x96xf32>
    %c0_i32_14 = arith.constant 0 : i32
    %30 = tpu.memref_slice %arg26[%c0_i32_14] : memref<8x!tpu.dma_semaphore, #tpu.memory_space<semaphore_mem>> -> memref<1x!tpu.dma_semaphore, #tpu.memory_space<semaphore_mem>>
    %31 = tpu.memref_squeeze %30 : memref<1x!tpu.dma_semaphore, #tpu.memory_space<semaphore_mem>> -> memref<!tpu.dma_semaphore, #tpu.memory_space<semaphore_mem>>
    tpu.wait_dma2 semaphore(%31 : memref<!tpu.dma_semaphore, #tpu.memory_space<semaphore_mem>>) src(%arg9 : memref<96x128xf32, #tpu.memory_space<any>>) dst(%arg18 : memref<96x128xf32, #tpu.memory_space<vmem>>)
    %c0_15 = arith.constant 0 : index
    %c0_16 = arith.constant 0 : index
    %32 = vector.load %arg18[%c0_15, %c0_16] : memref<96x128xf32, #tpu.memory_space<vmem>>, vector<96x128xf32>
    %cst_17 = arith.constant dense<0.000000e+00> : vector<2x128xf32>
    %33 = tpu.matmul %29, %32, %cst_17 {dimension_numbers = #tpu.dot_dimension_numbers<[1], [0], [0], [1], [0, 0, 1, 1], [], []>} : vector<2x96xf32>, vector<96x128xf32>, vector<2x128xf32> -> vector<2x128xf32>
    %c0_18 = arith.constant 0 : index
    %c128 = arith.constant 128 : index
    %34 = vector.load %arg7[%c0_18, %c128] : memref<1x2176xf32, #tpu.memory_space<vmem>>, vector<1x128xf32>
    %35 = vector.broadcast %34 : vector<1x128xf32> to vector<2x128xf32>
    %36 = arith.addf %33, %35 : vector<2x128xf32>
    %cst_19 = arith.constant 0.000000e+00 : f32
    %37 = vector.broadcast %cst_19 : f32 to vector<2x128xf32>
    %38 = arith.maximumf %36, %37 : vector<2x128xf32>
    %c1_i32_20 = arith.constant 1 : i32
    %39 = tpu.memref_slice %arg26[%c1_i32_20] : memref<8x!tpu.dma_semaphore, #tpu.memory_space<semaphore_mem>> -> memref<1x!tpu.dma_semaphore, #tpu.memory_space<semaphore_mem>>
    %40 = tpu.memref_squeeze %39 : memref<1x!tpu.dma_semaphore, #tpu.memory_space<semaphore_mem>> -> memref<!tpu.dma_semaphore, #tpu.memory_space<semaphore_mem>>
    tpu.wait_dma2 semaphore(%40 : memref<!tpu.dma_semaphore, #tpu.memory_space<semaphore_mem>>) src(%arg10 : memref<128x160xf32, #tpu.memory_space<any>>) dst(%arg19 : memref<128x160xf32, #tpu.memory_space<vmem>>)
    %c0_21 = arith.constant 0 : index
    %c0_22 = arith.constant 0 : index
    %41 = vector.load %arg19[%c0_21, %c0_22] : memref<128x160xf32, #tpu.memory_space<vmem>>, vector<128x160xf32>
    %cst_23 = arith.constant dense<0.000000e+00> : vector<2x160xf32>
    %42 = tpu.matmul %38, %41, %cst_23 {dimension_numbers = #tpu.dot_dimension_numbers<[1], [0], [0], [1], [0, 0, 1, 1], [], []>} : vector<2x128xf32>, vector<128x160xf32>, vector<2x160xf32> -> vector<2x160xf32>
    %c0_24 = arith.constant 0 : index
    %c256 = arith.constant 256 : index
    %43 = vector.load %arg7[%c0_24, %c256] : memref<1x2176xf32, #tpu.memory_space<vmem>>, vector<1x160xf32>
    %44 = vector.broadcast %43 : vector<1x160xf32> to vector<2x160xf32>
    %45 = arith.addf %42, %44 : vector<2x160xf32>
    %cst_25 = arith.constant 0.000000e+00 : f32
    %46 = vector.broadcast %cst_25 : f32 to vector<2x160xf32>
    %47 = arith.maximumf %45, %46 : vector<2x160xf32>
    %c2_i32_26 = arith.constant 2 : i32
    %48 = tpu.memref_slice %arg26[%c2_i32_26] : memref<8x!tpu.dma_semaphore, #tpu.memory_space<semaphore_mem>> -> memref<1x!tpu.dma_semaphore, #tpu.memory_space<semaphore_mem>>
    %49 = tpu.memref_squeeze %48 : memref<1x!tpu.dma_semaphore, #tpu.memory_space<semaphore_mem>> -> memref<!tpu.dma_semaphore, #tpu.memory_space<semaphore_mem>>
    tpu.wait_dma2 semaphore(%49 : memref<!tpu.dma_semaphore, #tpu.memory_space<semaphore_mem>>) src(%arg11 : memref<160x192xf32, #tpu.memory_space<any>>) dst(%arg20 : memref<160x192xf32, #tpu.memory_space<vmem>>)
    %c0_27 = arith.constant 0 : index
    %c0_28 = arith.constant 0 : index
    %50 = vector.load %arg20[%c0_27, %c0_28] : memref<160x192xf32, #tpu.memory_space<vmem>>, vector<160x192xf32>
    %cst_29 = arith.constant dense<0.000000e+00> : vector<2x192xf32>
    %51 = tpu.matmul %47, %50, %cst_29 {dimension_numbers = #tpu.dot_dimension_numbers<[1], [0], [0], [1], [0, 0, 1, 1], [], []>} : vector<2x160xf32>, vector<160x192xf32>, vector<2x192xf32> -> vector<2x192xf32>
    %c0_30 = arith.constant 0 : index
    %c512 = arith.constant 512 : index
    %52 = vector.load %arg7[%c0_30, %c512] : memref<1x2176xf32, #tpu.memory_space<vmem>>, vector<1x192xf32>
    %53 = vector.broadcast %52 : vector<1x192xf32> to vector<2x192xf32>
    %54 = arith.addf %51, %53 : vector<2x192xf32>
    %cst_31 = arith.constant 0.000000e+00 : f32
    %55 = vector.broadcast %cst_31 : f32 to vector<2x192xf32>
    %56 = arith.maximumf %54, %55 : vector<2x192xf32>
    %c3_i32_32 = arith.constant 3 : i32
    %57 = tpu.memref_slice %arg26[%c3_i32_32] : memref<8x!tpu.dma_semaphore, #tpu.memory_space<semaphore_mem>> -> memref<1x!tpu.dma_semaphore, #tpu.memory_space<semaphore_mem>>
    %58 = tpu.memref_squeeze %57 : memref<1x!tpu.dma_semaphore, #tpu.memory_space<semaphore_mem>> -> memref<!tpu.dma_semaphore, #tpu.memory_space<semaphore_mem>>
    tpu.wait_dma2 semaphore(%58 : memref<!tpu.dma_semaphore, #tpu.memory_space<semaphore_mem>>) src(%arg12 : memref<192x256xf32, #tpu.memory_space<any>>) dst(%arg21 : memref<192x256xf32, #tpu.memory_space<vmem>>)
    %c0_33 = arith.constant 0 : index
    %c0_34 = arith.constant 0 : index
    %59 = vector.load %arg21[%c0_33, %c0_34] : memref<192x256xf32, #tpu.memory_space<vmem>>, vector<192x256xf32>
    %cst_35 = arith.constant dense<0.000000e+00> : vector<2x256xf32>
    %60 = tpu.matmul %56, %59, %cst_35 {dimension_numbers = #tpu.dot_dimension_numbers<[1], [0], [0], [1], [0, 0, 1, 1], [], []>} : vector<2x192xf32>, vector<192x256xf32>, vector<2x256xf32> -> vector<2x256xf32>
    %c0_36 = arith.constant 0 : index
    %c768 = arith.constant 768 : index
    %61 = vector.load %arg7[%c0_36, %c768] : memref<1x2176xf32, #tpu.memory_space<vmem>>, vector<1x256xf32>
    %62 = vector.broadcast %61 : vector<1x256xf32> to vector<2x256xf32>
    %63 = arith.addf %60, %62 : vector<2x256xf32>
    %cst_37 = arith.constant 0.000000e+00 : f32
    %64 = vector.broadcast %cst_37 : f32 to vector<2x256xf32>
    %65 = arith.maximumf %63, %64 : vector<2x256xf32>
    %c4_i32_38 = arith.constant 4 : i32
    %66 = tpu.memref_slice %arg26[%c4_i32_38] : memref<8x!tpu.dma_semaphore, #tpu.memory_space<semaphore_mem>> -> memref<1x!tpu.dma_semaphore, #tpu.memory_space<semaphore_mem>>
    %67 = tpu.memref_squeeze %66 : memref<1x!tpu.dma_semaphore, #tpu.memory_space<semaphore_mem>> -> memref<!tpu.dma_semaphore, #tpu.memory_space<semaphore_mem>>
    tpu.wait_dma2 semaphore(%67 : memref<!tpu.dma_semaphore, #tpu.memory_space<semaphore_mem>>) src(%arg13 : memref<256x192xf32, #tpu.memory_space<any>>) dst(%arg22 : memref<256x192xf32, #tpu.memory_space<vmem>>)
    %c0_39 = arith.constant 0 : index
    %c0_40 = arith.constant 0 : index
    %68 = vector.load %arg22[%c0_39, %c0_40] : memref<256x192xf32, #tpu.memory_space<vmem>>, vector<256x192xf32>
    %cst_41 = arith.constant dense<0.000000e+00> : vector<2x192xf32>
    %69 = tpu.matmul %65, %68, %cst_41 {dimension_numbers = #tpu.dot_dimension_numbers<[1], [0], [0], [1], [0, 0, 1, 1], [], []>} : vector<2x256xf32>, vector<256x192xf32>, vector<2x192xf32> -> vector<2x192xf32>
    %c0_42 = arith.constant 0 : index
    %c1024 = arith.constant 1024 : index
    %70 = vector.load %arg7[%c0_42, %c1024] : memref<1x2176xf32, #tpu.memory_space<vmem>>, vector<1x192xf32>
    %71 = vector.broadcast %70 : vector<1x192xf32> to vector<2x192xf32>
    %72 = arith.addf %69, %71 : vector<2x192xf32>
    %cst_43 = arith.constant 0.000000e+00 : f32
    %73 = vector.broadcast %cst_43 : f32 to vector<2x192xf32>
    %74 = arith.maximumf %72, %73 : vector<2x192xf32>
    %c5_i32_44 = arith.constant 5 : i32
    %75 = tpu.memref_slice %arg26[%c5_i32_44] : memref<8x!tpu.dma_semaphore, #tpu.memory_space<semaphore_mem>> -> memref<1x!tpu.dma_semaphore, #tpu.memory_space<semaphore_mem>>
    %76 = tpu.memref_squeeze %75 : memref<1x!tpu.dma_semaphore, #tpu.memory_space<semaphore_mem>> -> memref<!tpu.dma_semaphore, #tpu.memory_space<semaphore_mem>>
    tpu.wait_dma2 semaphore(%76 : memref<!tpu.dma_semaphore, #tpu.memory_space<semaphore_mem>>) src(%arg14 : memref<192x160xf32, #tpu.memory_space<any>>) dst(%arg23 : memref<192x160xf32, #tpu.memory_space<vmem>>)
    %c0_45 = arith.constant 0 : index
    %c0_46 = arith.constant 0 : index
    %77 = vector.load %arg23[%c0_45, %c0_46] : memref<192x160xf32, #tpu.memory_space<vmem>>, vector<192x160xf32>
    %cst_47 = arith.constant dense<0.000000e+00> : vector<2x160xf32>
    %78 = tpu.matmul %74, %77, %cst_47 {dimension_numbers = #tpu.dot_dimension_numbers<[1], [0], [0], [1], [0, 0, 1, 1], [], []>} : vector<2x192xf32>, vector<192x160xf32>, vector<2x160xf32> -> vector<2x160xf32>
    %c0_48 = arith.constant 0 : index
    %c1280 = arith.constant 1280 : index
    %79 = vector.load %arg7[%c0_48, %c1280] : memref<1x2176xf32, #tpu.memory_space<vmem>>, vector<1x160xf32>
    %80 = vector.broadcast %79 : vector<1x160xf32> to vector<2x160xf32>
    %81 = arith.addf %78, %80 : vector<2x160xf32>
    %cst_49 = arith.constant 0.000000e+00 : f32
    %82 = vector.broadcast %cst_49 : f32 to vector<2x160xf32>
    %83 = arith.maximumf %81, %82 : vector<2x160xf32>
    %c6_i32_50 = arith.constant 6 : i32
    %84 = tpu.memref_slice %arg26[%c6_i32_50] : memref<8x!tpu.dma_semaphore, #tpu.memory_space<semaphore_mem>> -> memref<1x!tpu.dma_semaphore, #tpu.memory_space<semaphore_mem>>
    %85 = tpu.memref_squeeze %84 : memref<1x!tpu.dma_semaphore, #tpu.memory_space<semaphore_mem>> -> memref<!tpu.dma_semaphore, #tpu.memory_space<semaphore_mem>>
    tpu.wait_dma2 semaphore(%85 : memref<!tpu.dma_semaphore, #tpu.memory_space<semaphore_mem>>) src(%arg15 : memref<160x128xf32, #tpu.memory_space<any>>) dst(%arg24 : memref<160x128xf32, #tpu.memory_space<vmem>>)
    %c0_51 = arith.constant 0 : index
    %c0_52 = arith.constant 0 : index
    %86 = vector.load %arg24[%c0_51, %c0_52] : memref<160x128xf32, #tpu.memory_space<vmem>>, vector<160x128xf32>
    %cst_53 = arith.constant dense<0.000000e+00> : vector<2x128xf32>
    %87 = tpu.matmul %83, %86, %cst_53 {dimension_numbers = #tpu.dot_dimension_numbers<[1], [0], [0], [1], [0, 0, 1, 1], [], []>} : vector<2x160xf32>, vector<160x128xf32>, vector<2x128xf32> -> vector<2x128xf32>
    %c0_54 = arith.constant 0 : index
    %c1536 = arith.constant 1536 : index
    %88 = vector.load %arg7[%c0_54, %c1536] : memref<1x2176xf32, #tpu.memory_space<vmem>>, vector<1x128xf32>
    %89 = vector.broadcast %88 : vector<1x128xf32> to vector<2x128xf32>
    %90 = arith.addf %87, %89 : vector<2x128xf32>
    %cst_55 = arith.constant 0.000000e+00 : f32
    %91 = vector.broadcast %cst_55 : f32 to vector<2x128xf32>
    %92 = arith.maximumf %90, %91 : vector<2x128xf32>
    %c7_i32_56 = arith.constant 7 : i32
    %93 = tpu.memref_slice %arg26[%c7_i32_56] : memref<8x!tpu.dma_semaphore, #tpu.memory_space<semaphore_mem>> -> memref<1x!tpu.dma_semaphore, #tpu.memory_space<semaphore_mem>>
    %94 = tpu.memref_squeeze %93 : memref<1x!tpu.dma_semaphore, #tpu.memory_space<semaphore_mem>> -> memref<!tpu.dma_semaphore, #tpu.memory_space<semaphore_mem>>
    tpu.wait_dma2 semaphore(%94 : memref<!tpu.dma_semaphore, #tpu.memory_space<semaphore_mem>>) src(%arg16 : memref<128x96xf32, #tpu.memory_space<any>>) dst(%arg25 : memref<128x96xf32, #tpu.memory_space<vmem>>)
    %c0_57 = arith.constant 0 : index
    %c0_58 = arith.constant 0 : index
    %95 = vector.load %arg25[%c0_57, %c0_58] : memref<128x96xf32, #tpu.memory_space<vmem>>, vector<128x96xf32>
    %cst_59 = arith.constant dense<0.000000e+00> : vector<2x96xf32>
    %96 = tpu.matmul %92, %95, %cst_59 {dimension_numbers = #tpu.dot_dimension_numbers<[1], [0], [0], [1], [0, 0, 1, 1], [], []>} : vector<2x128xf32>, vector<128x96xf32>, vector<2x96xf32> -> vector<2x96xf32>
    %c0_60 = arith.constant 0 : index
    %c1664 = arith.constant 1664 : index
    %97 = vector.load %arg7[%c0_60, %c1664] : memref<1x2176xf32, #tpu.memory_space<vmem>>, vector<1x96xf32>
    %98 = vector.broadcast %97 : vector<1x96xf32> to vector<2x96xf32>
    %99 = arith.addf %96, %98 : vector<2x96xf32>
    %cst_61 = arith.constant 0.000000e+00 : f32
    %100 = vector.broadcast %cst_61 : f32 to vector<2x96xf32>
    %101 = arith.maximumf %99, %100 : vector<2x96xf32>
    %c0_62 = arith.constant 0 : index
    %c0_63 = arith.constant 0 : index
    %102 = vector.load %arg6[%c0_62, %c0_63] : memref<16x2xf32, #tpu.memory_space<vmem>>, vector<16x2xf32>
    %cst_64 = arith.constant dense<0.000000e+00> : vector<16x96xf32>
    %103 = tpu.matmul %102, %101, %cst_64 {dimension_numbers = #tpu.dot_dimension_numbers<[1], [0], [0], [1], [0, 0, 1, 1], [], []>} : vector<16x2xf32>, vector<2x96xf32>, vector<16x96xf32> -> vector<16x96xf32>
    %c0_65 = arith.constant 0 : index
    %c0_66 = arith.constant 0 : index
    %104 = vector.load %arg4[%c0_65, %c0_66] : memref<16x96xf32, #tpu.memory_space<vmem>>, vector<16x96xf32>
    %105 = arith.mulf %103, %104 : vector<16x96xf32>
    %c0_67 = arith.constant 0 : index
    %c0_68 = arith.constant 0 : index
    %106 = vector.load %arg3[%c0_67, %c0_68] : memref<96x12xf32, #tpu.memory_space<vmem>>, vector<96x12xf32>
    %cst_69 = arith.constant dense<0.000000e+00> : vector<16x12xf32>
    %107 = tpu.matmul %105, %106, %cst_69 {dimension_numbers = #tpu.dot_dimension_numbers<[1], [0], [0], [1], [0, 0, 1, 1], [], []>} : vector<16x96xf32>, vector<96x12xf32>, vector<16x12xf32> -> vector<16x12xf32>
    %c0_70 = arith.constant 0 : index
    %c0_71 = arith.constant 0 : index
    %108 = vector.load %arg8[%c0_70, %c0_71] : memref<12x257xf32, #tpu.memory_space<vmem>>, vector<12x257xf32>
    %cst_72 = arith.constant dense<0.000000e+00> : vector<16x257xf32>
    %109 = tpu.matmul %107, %108, %cst_72 {dimension_numbers = #tpu.dot_dimension_numbers<[1], [0], [0], [1], [0, 0, 1, 1], [], []>} : vector<16x12xf32>, vector<12x257xf32>, vector<16x257xf32> -> vector<16x257xf32>
    %c0_73 = arith.constant 0 : index
    %c1792 = arith.constant 1792 : index
    %110 = vector.load %arg7[%c0_73, %c1792] : memref<1x2176xf32, #tpu.memory_space<vmem>>, vector<1x257xf32>
    %111 = vector.broadcast %110 : vector<1x257xf32> to vector<16x257xf32>
    %112 = arith.addf %109, %111 : vector<16x257xf32>
    %c0_74 = arith.constant 0 : index
    %c0_75 = arith.constant 0 : index
    %113 = vector.load %arg17[%c0_74, %c0_75] : memref<16x257xf32, #tpu.memory_space<vmem>>, vector<16x257xf32>
    tpu.vector_store %arg17[%c0_74, %c0_75], %112 {strides = array<i32>} : memref<16x257xf32, #tpu.memory_space<vmem>>, vector<16x257xf32>,
    return
  }
}

</mosaic_0001>

<llo_original>
// kernel: _lambda_.1
$region0: #{_lambda_.1}
  #allocation0 [shape = 'u32[]', space=smem, size = 0x4, offset = 0x4, fixed_abs, tag = 'smem constant byte address 0x4 - core index']
  #allocation1 [shape = 'u32[144,128]{1,0:T(1,128)}', space=vmem, size = 0x12000, scoped, tag = 'internal scratch']
  #allocation2 [shape = 'f32[96,128]{1,0:T(8,128)}', space=vmem, size = 0xc000, scoped, tag = 'scratch operand']
  #allocation3 [shape = 'f32[128,160]{1,0:T(8,128)}', space=vmem, size = 0x20000, scoped, tag = 'scratch operand']
  #allocation4 [shape = 'f32[160,192]{1,0:T(8,128)}', space=vmem, size = 0x28000, scoped, tag = 'scratch operand']
  #allocation5 [shape = 'f32[192,256]{1,0:T(8,128)}', space=vmem, size = 0x30000, scoped, tag = 'scratch operand']
  #allocation6 [shape = 'f32[256,192]{1,0:T(8,128)}', space=vmem, size = 0x40000, scoped, tag = 'scratch operand']
  #allocation7 [shape = 'f32[192,160]{1,0:T(8,128)}', space=vmem, size = 0x30000, scoped, tag = 'scratch operand']
  #allocation8 [shape = 'f32[160,128]{1,0:T(8,128)}', space=vmem, size = 0x14000, scoped, tag = 'scratch operand']
  #allocation9 [shape = 'f32[128,96]{1,0:T(8,128)}', space=vmem, size = 0x10000, scoped, tag = 'scratch operand']
  #allocation10 [shape = 's32[8]{0}', space=sflag, size = 0x20, scoped, tag = 'scratch operand']
  #allocation13 [shape = 's32[]', space=sflag, size = 0x4, offset = 0, fixed_abs, tag = 'sflag constant byte address 0x0 - dummy sync flag']
  #allocation14 [shape = 's32[]', space=sflag, size = 0x4, offset = 0, fixed_abs, tag = 'sflag constant byte address 0x0 - dummy sync flag']
  #allocation15 [shape = 's32[]', space=sflag, size = 0x4, offset = 0, fixed_abs, tag = 'sflag constant byte address 0x0 - dummy sync flag']
  #allocation16 [shape = 's32[]', space=sflag, size = 0x4, offset = 0, fixed_abs, tag = 'sflag constant byte address 0x0 - dummy sync flag']
  #allocation17 [shape = 's32[]', space=sflag, size = 0x4, offset = 0, fixed_abs, tag = 'sflag constant byte address 0x0 - dummy sync flag']
  #allocation18 [shape = 's32[]', space=sflag, size = 0x4, offset = 0, fixed_abs, tag = 'sflag constant byte address 0x0 - dummy sync flag']
  #allocation19 [shape = 's32[]', space=sflag, size = 0x4, offset = 0, fixed_abs, tag = 'sflag constant byte address 0x0 - dummy sync flag']
  #allocation20 [shape = 's32[]', space=sflag, size = 0x4, offset = 0, fixed_abs, tag = 'sflag constant byte address 0x0 - dummy sync flag']
  %s0 = inlined_call_operand.vmem [shape: f32[16,3341], index: 0, kind: input, shape index: {}]
  %s1 = inlined_call_operand.vmem [shape: f32[3341,12], index: 1, kind: input, shape index: {}]
  %s2 = inlined_call_operand.vmem [shape: f32[12,96], index: 2, kind: input, shape index: {}]
  %s3 = inlined_call_operand.vmem [shape: f32[96,12], index: 3, kind: input, shape index: {}]
  %s4 = inlined_call_operand.vmem [shape: f32[16,96], index: 4, kind: input, shape index: {}]
  %s5 = inlined_call_operand.vmem [shape: f32[2,16], index: 5, kind: input, shape index: {}]
  %s6 = inlined_call_operand.vmem [shape: f32[16,2], index: 6, kind: input, shape index: {}]
  %s7 = inlined_call_operand.vmem [shape: f32[1,2176], index: 7, kind: input, shape index: {}]
  %s8 = inlined_call_operand.vmem [shape: f32[12,257], index: 8, kind: input, shape index: {}]
  %s9 = inlined_call_operand.vmem [shape: f32[96,128], index: 9, kind: input, shape index: {}]
  %s10 = inlined_call_operand.vmem [shape: f32[128,160], index: 10, kind: input, shape index: {}]
  %s11 = inlined_call_operand.vmem [shape: f32[160,192], index: 11, kind: input, shape index: {}]
  %s12 = inlined_call_operand.vmem [shape: f32[192,256], index: 12, kind: input, shape index: {}]
  %s13 = inlined_call_operand.vmem [shape: f32[256,192], index: 13, kind: input, shape index: {}]
  %s14 = inlined_call_operand.vmem [shape: f32[192,160], index: 14, kind: input, shape index: {}]
  %s15 = inlined_call_operand.vmem [shape: f32[160,128], index: 15, kind: input, shape index: {}]
  %s16 = inlined_call_operand.vmem [shape: f32[128,96], index: 16, kind: input, shape index: {}]
  %s17 = inlined_call_operand.hbm [shape: f32[16,257], index: 17, kind: output, shape index: {}]
  %s18 = sld [smem:[#allocation0]]
  $region318: #{_lambda_.1} parent=0
    _
  %s20 = ssub.s32 1, %s18
  %s21 = scalar_select 0, %s20, %s18
  $region1: #{_lambda_.1} parent=0
    #allocation11 [shape = 'u8[24576]{0}', space=vmem, size = 0x6000, scoped, tag = 'output window, operand 0, single buffered']
    #allocation12 [shape = 's32[1]{0}', space=sflag, size = 0x4, scoped, tag = 'scoped memory for _lambda_.1']
    %22 = vsyncpa [#allocation12], 0
    // Predicated region
    $region2: #{_lambda_.1} parent=1 // pred_check
      _
    $region3: #{_lambda_.1} parent=1 // pred_check_branch
      %24 = sbr.rel (0) target = $region5
    $region4: #{_lambda_.1} parent=1 // pred_region
      _
    $region5: #{_lambda_.1} parent=1 // pred_fallthru
      _
    // Predicated region
    $region6: #{_lambda_.1} parent=1 // pred_check
      _
    $region7: #{_lambda_.1} parent=1 // pred_check_branch
      %26 = sbr.rel (0) target = $region9
    $region8: #{_lambda_.1} parent=1 // pred_region
      _
    $region9: #{_lambda_.1} parent=1 // pred_fallthru
      _
    // Predicated region
    $region10: #{_lambda_.1} parent=1 // pred_check
      _
    $region11: #{_lambda_.1} parent=1 // pred_check_branch
      %28 = sbr.rel (0) target = $region13
    $region12: #{_lambda_.1} parent=1 // pred_region
      _
    $region13: #{_lambda_.1} parent=1 // pred_fallthru
      _
    // Predicated region
    $region14: #{_lambda_.1} parent=1 // pred_check
      _
    $region15: #{_lambda_.1} parent=1 // pred_check_branch
      %30 = sbr.rel (0) target = $region17
    $region16: #{_lambda_.1} parent=1 // pred_region
      _
    $region17: #{_lambda_.1} parent=1 // pred_fallthru
      _
    // Predicated region
    $region18: #{_lambda_.1} parent=1 // pred_check
      _
    $region19: #{_lambda_.1} parent=1 // pred_check_branch
      %32 = sbr.rel (0) target = $region21
    $region20: #{_lambda_.1} parent=1 // pred_region
      _
    $region21: #{_lambda_.1} parent=1 // pred_fallthru
      _
    // Predicated region
    $region22: #{_lambda_.1} parent=1 // pred_check
      _
    $region23: #{_lambda_.1} parent=1 // pred_check_branch
      %34 = sbr.rel (0) target = $region25
    $region24: #{_lambda_.1} parent=1 // pred_region
      _
    $region25: #{_lambda_.1} parent=1 // pred_fallthru
      _
    // Predicated region
    $region26: #{_lambda_.1} parent=1 // pred_check
      _
    $region27: #{_lambda_.1} parent=1 // pred_check_branch
      %36 = sbr.rel (0) target = $region29
    $region28: #{_lambda_.1} parent=1 // pred_region
      _
    $region29: #{_lambda_.1} parent=1 // pred_fallthru
      _
    // Predicated region
    $region30: #{_lambda_.1} parent=1 // pred_check
      _
    $region31: #{_lambda_.1} parent=1 // pred_check_branch
      %38 = sbr.rel (0) target = $region33
    $region32: #{_lambda_.1} parent=1 // pred_region
      _
    $region33: #{_lambda_.1} parent=1 // pred_fallthru
      _
    // Predicated region
    $region34: #{_lambda_.1} parent=1 // pred_check
      _
    $region35: #{_lambda_.1} parent=1 // pred_check_branch
      %40 = sbr.rel (0) target = $region37
    $region36: #{_lambda_.1} parent=1 // pred_region
      _
    $region37: #{_lambda_.1} parent=1 // pred_fallthru
      _
    %p42 = scmp.lt.u32.totalorder 96, 8
    %p43 = pneg %p42
    // Predicated region
    $region38: #{_lambda_.1} parent=1 // pred_check
      _
    $region39: #{_lambda_.1} parent=1 // pred_check_branch
      %45 = sbr.rel (%p42) target = $region41
    $region40: #{_lambda_.1} parent=1 // pred_region
      %s60 = sand.u32 96, 7
      %p61 = scmp.eq.s32.totalorder %s60, 0
      // Predicated region
      $region53: #{_lambda_.1} parent=40 // pred_check
        %p62 = pneg %p61
      $region54: #{_lambda_.1} parent=40 // pred_check_branch
        %64 = sbr.rel (%p62) target = $region56
      $region55: #{_lambda_.1} parent=40 // pred_region
        loop: start=0, step=1, limit=1
        $region57: #{_lambda_.1} parent=55 // loop_pre_header
          _
        $region58: #{_lambda_.1} parent=55 // loop_header
          %s66 = sphi 0, %s70
          %p67 = scmp.ge.s32.totalorder %s66, 1
          %s71 = sphi %s9, %s9
          %s72 = sphi [#allocation2], [#allocation2]
        $region59: #{_lambda_.1} parent=55 // loop_header_branch
          %69 = sbr.rel (%p67) target = $region63
        $region60: #{_lambda_.1} parent=55 // loop_body
          %v73 = vld [vmem:[%s71] sm:$0xff]
          %74 = vst [vmem:[%s72] sm:$0xff] %v73
          %v75 = vld [vmem:[%s71 + $0x8] sm:$0xff]
          %76 = vst [vmem:[%s72 + $0x8] sm:$0xff] %v75
          %v77 = vld [vmem:[%s71 + $0x10] sm:$0xff]
          %78 = vst [vmem:[%s72 + $0x10] sm:$0xff] %v77
          %v79 = vld [vmem:[%s71 + $0x18] sm:$0xff]
          %80 = vst [vmem:[%s72 + $0x18] sm:$0xff] %v79
          %v81 = vld [vmem:[%s71 + $0x20] sm:$0xff]
          %82 = vst [vmem:[%s72 + $0x20] sm:$0xff] %v81
          %v83 = vld [vmem:[%s71 + $0x28] sm:$0xff]
          %84 = vst [vmem:[%s72 + $0x28] sm:$0xff] %v83
          %v85 = vld [vmem:[%s71 + $0x30] sm:$0xff]
          %86 = vst [vmem:[%s72 + $0x30] sm:$0xff] %v85
          %v87 = vld [vmem:[%s71 + $0x38] sm:$0xff]
          %88 = vst [vmem:[%s72 + $0x38] sm:$0xff] %v87
          %v89 = vld [vmem:[%s71 + $0x40] sm:$0xff]
          %90 = vst [vmem:[%s72 + $0x40] sm:$0xff] %v89
          %v91 = vld [vmem:[%s71 + $0x48] sm:$0xff]
          %92 = vst [vmem:[%s72 + $0x48] sm:$0xff] %v91
          %v93 = vld [vmem:[%s71 + $0x50] sm:$0xff]
          %94 = vst [vmem:[%s72 + $0x50] sm:$0xff] %v93
          %v95 = vld [vmem:[%s71 + $0x58] sm:$0xff]
          %96 = vst [vmem:[%s72 + $0x58] sm:$0xff] %v95
        $region61: #{_lambda_.1} parent=55 // loop_footer
          %s70 = sadd.s32 1, %s66
        $region62: #{_lambda_.1} parent=55 // loop_footer_branch
          %65 = sbr.rel target = $region58
        $region63: #{_lambda_.1} parent=55 // loop_exit
          _
      $region56: #{_lambda_.1} parent=40 // pred_fallthru
        _
      %p97 = pneg %p61
      // Predicated region
      $region64: #{_lambda_.1} parent=40 // pred_check
        _
      $region65: #{_lambda_.1} parent=40 // pred_check_branch
        %99 = sbr.rel (%p61) target = $region67
      $region66: #{_lambda_.1} parent=40 // pred_region
        %s100 = sand.u32 96, 7
      $region67: #{_lambda_.1} parent=40 // pred_fallthru
        _
    $region41: #{_lambda_.1} parent=1 // pred_fallthru
      _
    // Predicated region
    $region42: #{_lambda_.1} parent=1 // pred_check
      %p46 = pneg %p42
    $region43: #{_lambda_.1} parent=1 // pred_check_branch
      %48 = sbr.rel (%p46) target = $region45
    $region44: #{_lambda_.1} parent=1 // pred_region
      %s49 = sshllo.u32 0, 96
      loop: start=0, step=1, limit=1
      $region46: #{_lambda_.1} parent=44 // loop_pre_header
        _
      $region47: #{_lambda_.1} parent=44 // loop_header
        %s51 = sphi 0, %s55
        %p52 = scmp.ge.s32.totalorder %s51, 1
        %s56 = sphi %s9, %s9
        %s57 = sphi [#allocation2], [#allocation2]
      $region48: #{_lambda_.1} parent=44 // loop_header_branch
        %54 = sbr.rel (%p52) target = $region52
      $region49: #{_lambda_.1} parent=44 // loop_body
        %v58 = vld [vmem:[%s56] sm:%s49]
        %59 = vst [vmem:[%s57] sm:%s49] %v58
      $region50: #{_lambda_.1} parent=44 // loop_footer
        %s55 = sadd.s32 1, %s51
      $region51: #{_lambda_.1} parent=44 // loop_footer_branch
        %50 = sbr.rel target = $region47
      $region52: #{_lambda_.1} parent=44 // loop_exit
        _
    $region45: #{_lambda_.1} parent=1 // pred_fallthru
      _
    // Predicated region
    $region68: #{_lambda_.1} parent=1 // pred_check
      _
    $region69: #{_lambda_.1} parent=1 // pred_check_branch
      %103 = sbr.rel (0) target = $region71
    $region70: #{_lambda_.1} parent=1 // pred_region
      %104 = vsyncadd [#allocation10], 1536
    $region71: #{_lambda_.1} parent=1 // pred_fallthru
      _
    %s105 = scalar_lea.sflag [#allocation10], 1
    %p107 = scmp.lt.u32.totalorder 256, 8
    %p108 = pneg %p107
    // Predicated region
    $region72: #{_lambda_.1} parent=1 // pred_check
      _
    $region73: #{_lambda_.1} parent=1 // pred_check_branch
      %110 = sbr.rel (%p107) target = $region75
    $region74: #{_lambda_.1} parent=1 // pred_region
      %s125 = sand.u32 256, 7
      %p126 = scmp.eq.s32.totalorder %s125, 0
      // Predicated region
      $region87: #{_lambda_.1} parent=74 // pred_check
        %p127 = pneg %p126
      $region88: #{_lambda_.1} parent=74 // pred_check_branch
        %129 = sbr.rel (%p127) target = $region90
      $region89: #{_lambda_.1} parent=74 // pred_region
        loop: start=0, step=1, limit=1
        $region91: #{_lambda_.1} parent=89 // loop_pre_header
          _
        $region92: #{_lambda_.1} parent=89 // loop_header
          %s131 = sphi 0, %s135
          %p132 = scmp.ge.s32.totalorder %s131, 1
          %s136 = sphi %s10, %s10
          %s137 = sphi [#allocation3], [#allocation3]
        $region93: #{_lambda_.1} parent=89 // loop_header_branch
          %134 = sbr.rel (%p132) target = $region97
        $region94: #{_lambda_.1} parent=89 // loop_body
          %v138 = vld [vmem:[%s136] sm:$0xff]
          %139 = vst [vmem:[%s137] sm:$0xff] %v138
          %v140 = vld [vmem:[%s136 + $0x8] sm:$0xff]
          %141 = vst [vmem:[%s137 + $0x8] sm:$0xff] %v140
          %v142 = vld [vmem:[%s136 + $0x10] sm:$0xff]
          %143 = vst [vmem:[%s137 + $0x10] sm:$0xff] %v142
          %v144 = vld [vmem:[%s136 + $0x18] sm:$0xff]
          %145 = vst [vmem:[%s137 + $0x18] sm:$0xff] %v144
          %v146 = vld [vmem:[%s136 + $0x20] sm:$0xff]
          %147 = vst [vmem:[%s137 + $0x20] sm:$0xff] %v146
          %v148 = vld [vmem:[%s136 + $0x28] sm:$0xff]
          %149 = vst [vmem:[%s137 + $0x28] sm:$0xff] %v148
          %v150 = vld [vmem:[%s136 + $0x30] sm:$0xff]
          %151 = vst [vmem:[%s137 + $0x30] sm:$0xff] %v150
          %v152 = vld [vmem:[%s136 + $0x38] sm:$0xff]
          %153 = vst [vmem:[%s137 + $0x38] sm:$0xff] %v152
          %v154 = vld [vmem:[%s136 + $0x40] sm:$0xff]
          %155 = vst [vmem:[%s137 + $0x40] sm:$0xff] %v154
          %v156 = vld [vmem:[%s136 + $0x48] sm:$0xff]
          %157 = vst [vmem:[%s137 + $0x48] sm:$0xff] %v156
          %v158 = vld [vmem:[%s136 + $0x50] sm:$0xff]
          %159 = vst [vmem:[%s137 + $0x50] sm:$0xff] %v158
          %v160 = vld [vmem:[%s136 + $0x58] sm:$0xff]
          %161 = vst [vmem:[%s137 + $0x58] sm:$0xff] %v160
          %v162 = vld [vmem:[%s136 + $0x60] sm:$0xff]
          %163 = vst [vmem:[%s137 + $0x60] sm:$0xff] %v162
          %v164 = vld [vmem:[%s136 + $0x68] sm:$0xff]
          %165 = vst [vmem:[%s137 + $0x68] sm:$0xff] %v164
          %v166 = vld [vmem:[%s136 + $0x70] sm:$0xff]
          %167 = vst [vmem:[%s137 + $0x70] sm:$0xff] %v166
          %v168 = vld [vmem:[%s136 + $0x78] sm:$0xff]
          %169 = vst [vmem:[%s137 + $0x78] sm:$0xff] %v168
          %v170 = vld [vmem:[%s136 + $0x80] sm:$0xff]
          %171 = vst [vmem:[%s137 + $0x80] sm:$0xff] %v170
          %v172 = vld [vmem:[%s136 + $0x88] sm:$0xff]
          %173 = vst [vmem:[%s137 + $0x88] sm:$0xff] %v172
          %v174 = vld [vmem:[%s136 + $0x90] sm:$0xff]
          %175 = vst [vmem:[%s137 + $0x90] sm:$0xff] %v174
          %v176 = vld [vmem:[%s136 + $0x98] sm:$0xff]
          %177 = vst [vmem:[%s137 + $0x98] sm:$0xff] %v176
          %v178 = vld [vmem:[%s136 + $0xa0] sm:$0xff]
          %179 = vst [vmem:[%s137 + $0xa0] sm:$0xff] %v178
          %v180 = vld [vmem:[%s136 + $0xa8] sm:$0xff]
          %181 = vst [vmem:[%s137 + $0xa8] sm:$0xff] %v180
          %v182 = vld [vmem:[%s136 + $0xb0] sm:$0xff]
          %183 = vst [vmem:[%s137 + $0xb0] sm:$0xff] %v182
          %v184 = vld [vmem:[%s136 + $0xb8] sm:$0xff]
          %185 = vst [vmem:[%s137 + $0xb8] sm:$0xff] %v184
          %v186 = vld [vmem:[%s136 + $0xc0] sm:$0xff]
          %187 = vst [vmem:[%s137 + $0xc0] sm:$0xff] %v186
          %v188 = vld [vmem:[%s136 + $0xc8] sm:$0xff]
          %189 = vst [vmem:[%s137 + $0xc8] sm:$0xff] %v188
          %v190 = vld [vmem:[%s136 + $0xd0] sm:$0xff]
          %191 = vst [vmem:[%s137 + $0xd0] sm:$0xff] %v190
          %v192 = vld [vmem:[%s136 + $0xd8] sm:$0xff]
          %193 = vst [vmem:[%s137 + $0xd8] sm:$0xff] %v192
          %v194 = vld [vmem:[%s136 + $0xe0] sm:$0xff]
          %195 = vst [vmem:[%s137 + $0xe0] sm:$0xff] %v194
          %v196 = vld [vmem:[%s136 + $0xe8] sm:$0xff]
          %197 = vst [vmem:[%s137 + $0xe8] sm:$0xff] %v196
          %v198 = vld [vmem:[%s136 + $0xf0] sm:$0xff]
          %199 = vst [vmem:[%s137 + $0xf0] sm:$0xff] %v198
          %v200 = vld [vmem:[%s136 + $0xf8] sm:$0xff]
          %201 = vst [vmem:[%s137 + $0xf8] sm:$0xff] %v200
        $region95: #{_lambda_.1} parent=89 // loop_footer
          %s135 = sadd.s32 1, %s131
        $region96: #{_lambda_.1} parent=89 // loop_footer_branch
          %130 = sbr.rel target = $region92
        $region97: #{_lambda_.1} parent=89 // loop_exit
          _
      $region90: #{_lambda_.1} parent=74 // pred_fallthru
        _
      %p202 = pneg %p126
      // Predicated region
      $region98: #{_lambda_.1} parent=74 // pred_check
        _
      $region99: #{_lambda_.1} parent=74 // pred_check_branch
        %204 = sbr.rel (%p126) target = $region101
      $region100: #{_lambda_.1} parent=74 // pred_region
        %s205 = sand.u32 256, 7
      $region101: #{_lambda_.1} parent=74 // pred_fallthru
        _
    $region75: #{_lambda_.1} parent=1 // pred_fallthru
      _
    // Predicated region
    $region76: #{_lambda_.1} parent=1 // pred_check
      %p111 = pneg %p107
    $region77: #{_lambda_.1} parent=1 // pred_check_branch
      %113 = sbr.rel (%p111) target = $region79
    $region78: #{_lambda_.1} parent=1 // pred_region
      %s114 = sshllo.u32 0, 256
      loop: start=0, step=1, limit=1
      $region80: #{_lambda_.1} parent=78 // loop_pre_header
        _
      $region81: #{_lambda_.1} parent=78 // loop_header
        %s116 = sphi 0, %s120
        %p117 = scmp.ge.s32.totalorder %s116, 1
        %s121 = sphi %s10, %s10
        %s122 = sphi [#allocation3], [#allocation3]
      $region82: #{_lambda_.1} parent=78 // loop_header_branch
        %119 = sbr.rel (%p117) target = $region86
      $region83: #{_lambda_.1} parent=78 // loop_body
        %v123 = vld [vmem:[%s121] sm:%s114]
        %124 = vst [vmem:[%s122] sm:%s114] %v123
      $region84: #{_lambda_.1} parent=78 // loop_footer
        %s120 = sadd.s32 1, %s116
      $region85: #{_lambda_.1} parent=78 // loop_footer_branch
        %115 = sbr.rel target = $region81
      $region86: #{_lambda_.1} parent=78 // loop_exit
        _
    $region79: #{_lambda_.1} parent=1 // pred_fallthru
      _
    // Predicated region
    $region102: #{_lambda_.1} parent=1 // pred_check
      _
    $region103: #{_lambda_.1} parent=1 // pred_check_branch
      %208 = sbr.rel (0) target = $region105
    $region104: #{_lambda_.1} parent=1 // pred_region
      %209 = vsyncadd %s105, 4096
    $region105: #{_lambda_.1} parent=1 // pred_fallthru
      _
    %s210 = scalar_lea.sflag [#allocation10], 2
    %p212 = scmp.lt.u32.totalorder 320, 8
    %p213 = pneg %p212
    // Predicated region
    $region106: #{_lambda_.1} parent=1 // pred_check
      _
    $region107: #{_lambda_.1} parent=1 // pred_check_branch
      %215 = sbr.rel (%p212) target = $region109
    $region108: #{_lambda_.1} parent=1 // pred_region
      %s230 = sand.u32 320, 7
      %p231 = scmp.eq.s32.totalorder %s230, 0
      // Predicated region
      $region121: #{_lambda_.1} parent=108 // pred_check
        %p232 = pneg %p231
      $region122: #{_lambda_.1} parent=108 // pred_check_branch
        %234 = sbr.rel (%p232) target = $region124
      $region123: #{_lambda_.1} parent=108 // pred_region
        loop: start=0, step=1, limit=1
        $region125: #{_lambda_.1} parent=123 // loop_pre_header
          _
        $region126: #{_lambda_.1} parent=123 // loop_header
          %s236 = sphi 0, %s240
          %p237 = scmp.ge.s32.totalorder %s236, 1
          %s241 = sphi %s11, %s11
          %s242 = sphi [#allocation4], [#allocation4]
        $region127: #{_lambda_.1} parent=123 // loop_header_branch
          %239 = sbr.rel (%p237) target = $region131
        $region128: #{_lambda_.1} parent=123 // loop_body
          %v243 = vld [vmem:[%s241] sm:$0xff]
          %244 = vst [vmem:[%s242] sm:$0xff] %v243
          %v245 = vld [vmem:[%s241 + $0x8] sm:$0xff]
          %246 = vst [vmem:[%s242 + $0x8] sm:$0xff] %v245
          %v247 = vld [vmem:[%s241 + $0x10] sm:$0xff]
          %248 = vst [vmem:[%s242 + $0x10] sm:$0xff] %v247
          %v249 = vld [vmem:[%s241 + $0x18] sm:$0xff]
          %250 = vst [vmem:[%s242 + $0x18] sm:$0xff] %v249
          %v251 = vld [vmem:[%s241 + $0x20] sm:$0xff]
          %252 = vst [vmem:[%s242 + $0x20] sm:$0xff] %v251
          %v253 = vld [vmem:[%s241 + $0x28] sm:$0xff]
          %254 = vst [vmem:[%s242 + $0x28] sm:$0xff] %v253
          %v255 = vld [vmem:[%s241 + $0x30] sm:$0xff]
          %256 = vst [vmem:[%s242 + $0x30] sm:$0xff] %v255
          %v257 = vld [vmem:[%s241 + $0x38] sm:$0xff]
          %258 = vst [vmem:[%s242 + $0x38] sm:$0xff] %v257
          %v259 = vld [vmem:[%s241 + $0x40] sm:$0xff]
          %260 = vst [vmem:[%s242 + $0x40] sm:$0xff] %v259
          %v261 = vld [vmem:[%s241 + $0x48] sm:$0xff]
          %262 = vst [vmem:[%s242 + $0x48] sm:$0xff] %v261
          %v263 = vld [vmem:[%s241 + $0x50] sm:$0xff]
          %264 = vst [vmem:[%s242 + $0x50] sm:$0xff] %v263
          %v265 = vld [vmem:[%s241 + $0x58] sm:$0xff]
          %266 = vst [vmem:[%s242 + $0x58] sm:$0xff] %v265
          %v267 = vld [vmem:[%s241 + $0x60] sm:$0xff]
          %268 = vst [vmem:[%s242 + $0x60] sm:$0xff] %v267
          %v269 = vld [vmem:[%s241 + $0x68] sm:$0xff]
          %270 = vst [vmem:[%s242 + $0x68] sm:$0xff] %v269
          %v271 = vld [vmem:[%s241 + $0x70] sm:$0xff]
          %272 = vst [vmem:[%s242 + $0x70] sm:$0xff] %v271
          %v273 = vld [vmem:[%s241 + $0x78] sm:$0xff]
          %274 = vst [vmem:[%s242 + $0x78] sm:$0xff] %v273
          %v275 = vld [vmem:[%s241 + $0x80] sm:$0xff]
          %276 = vst [vmem:[%s242 + $0x80] sm:$0xff] %v275
          %v277 = vld [vmem:[%s241 + $0x88] sm:$0xff]
          %278 = vst [vmem:[%s242 + $0x88] sm:$0xff] %v277
          %v279 = vld [vmem:[%s241 + $0x90] sm:$0xff]
          %280 = vst [vmem:[%s242 + $0x90] sm:$0xff] %v279
          %v281 = vld [vmem:[%s241 + $0x98] sm:$0xff]
          %282 = vst [vmem:[%s242 + $0x98] sm:$0xff] %v281
          %v283 = vld [vmem:[%s241 + $0xa0] sm:$0xff]
          %284 = vst [vmem:[%s242 + $0xa0] sm:$0xff] %v283
          %v285 = vld [vmem:[%s241 + $0xa8] sm:$0xff]
          %286 = vst [vmem:[%s242 + $0xa8] sm:$0xff] %v285
          %v287 = vld [vmem:[%s241 + $0xb0] sm:$0xff]
          %288 = vst [vmem:[%s242 + $0xb0] sm:$0xff] %v287
          %v289 = vld [vmem:[%s241 + $0xb8] sm:$0xff]
          %290 = vst [vmem:[%s242 + $0xb8] sm:$0xff] %v289
          %v291 = vld [vmem:[%s241 + $0xc0] sm:$0xff]
          %292 = vst [vmem:[%s242 + $0xc0] sm:$0xff] %v291
          %v293 = vld [vmem:[%s241 + $0xc8] sm:$0xff]
          %294 = vst [vmem:[%s242 + $0xc8] sm:$0xff] %v293
          %v295 = vld [vmem:[%s241 + $0xd0] sm:$0xff]
          %296 = vst [vmem:[%s242 + $0xd0] sm:$0xff] %v295
          %v297 = vld [vmem:[%s241 + $0xd8] sm:$0xff]
          %298 = vst [vmem:[%s242 + $0xd8] sm:$0xff] %v297
          %v299 = vld [vmem:[%s241 + $0xe0] sm:$0xff]
          %300 = vst [vmem:[%s242 + $0xe0] sm:$0xff] %v299
          %v301 = vld [vmem:[%s241 + $0xe8] sm:$0xff]
          %302 = vst [vmem:[%s242 + $0xe8] sm:$0xff] %v301
          %v303 = vld [vmem:[%s241 + $0xf0] sm:$0xff]
          %304 = vst [vmem:[%s242 + $0xf0] sm:$0xff] %v303
          %v305 = vld [vmem:[%s241 + $0xf8] sm:$0xff]
          %306 = vst [vmem:[%s242 + $0xf8] sm:$0xff] %v305
          %v307 = vld [vmem:[%s241 + $0x100] sm:$0xff]
          %308 = vst [vmem:[%s242 + $0x100] sm:$0xff] %v307
          %v309 = vld [vmem:[%s241 + $0x108] sm:$0xff]
          %310 = vst [vmem:[%s242 + $0x108] sm:$0xff] %v309
          %v311 = vld [vmem:[%s241 + $0x110] sm:$0xff]
          %312 = vst [vmem:[%s242 + $0x110] sm:$0xff] %v311
          %v313 = vld [vmem:[%s241 + $0x118] sm:$0xff]
          %314 = vst [vmem:[%s242 + $0x118] sm:$0xff] %v313
          %v315 = vld [vmem:[%s241 + $0x120] sm:$0xff]
          %316 = vst [vmem:[%s242 + $0x120] sm:$0xff] %v315
          %v317 = vld [vmem:[%s241 + $0x128] sm:$0xff]
          %318 = vst [vmem:[%s242 + $0x128] sm:$0xff] %v317
          %v319 = vld [vmem:[%s241 + $0x130] sm:$0xff]
          %320 = vst [vmem:[%s242 + $0x130] sm:$0xff] %v319
          %v321 = vld [vmem:[%s241 + $0x138] sm:$0xff]
          %322 = vst [vmem:[%s242 + $0x138] sm:$0xff] %v321
        $region129: #{_lambda_.1} parent=123 // loop_footer
          %s240 = sadd.s32 1, %s236
        $region130: #{_lambda_.1} parent=123 // loop_footer_branch
          %235 = sbr.rel target = $region126
        $region131: #{_lambda_.1} parent=123 // loop_exit
          _
      $region124: #{_lambda_.1} parent=108 // pred_fallthru
        _
      %p323 = pneg %p231
      // Predicated region
      $region132: #{_lambda_.1} parent=108 // pred_check
        _
      $region133: #{_lambda_.1} parent=108 // pred_check_branch
        %325 = sbr.rel (%p231) target = $region135
      $region134: #{_lambda_.1} parent=108 // pred_region
        %s326 = sand.u32 320, 7
      $region135: #{_lambda_.1} parent=108 // pred_fallthru
        _
    $region109: #{_lambda_.1} parent=1 // pred_fallthru
      _
    // Predicated region
    $region110: #{_lambda_.1} parent=1 // pred_check
      %p216 = pneg %p212
    $region111: #{_lambda_.1} parent=1 // pred_check_branch
      %218 = sbr.rel (%p216) target = $region113
    $region112: #{_lambda_.1} parent=1 // pred_region
      %s219 = sshllo.u32 0, 320
      loop: start=0, step=1, limit=1
      $region114: #{_lambda_.1} parent=112 // loop_pre_header
        _
      $region115: #{_lambda_.1} parent=112 // loop_header
        %s221 = sphi 0, %s225
        %p222 = scmp.ge.s32.totalorder %s221, 1
        %s226 = sphi %s11, %s11
        %s227 = sphi [#allocation4], [#allocation4]
      $region116: #{_lambda_.1} parent=112 // loop_header_branch
        %224 = sbr.rel (%p222) target = $region120
      $region117: #{_lambda_.1} parent=112 // loop_body
        %v228 = vld [vmem:[%s226] sm:%s219]
        %229 = vst [vmem:[%s227] sm:%s219] %v228
      $region118: #{_lambda_.1} parent=112 // loop_footer
        %s225 = sadd.s32 1, %s221
      $region119: #{_lambda_.1} parent=112 // loop_footer_branch
        %220 = sbr.rel target = $region115
      $region120: #{_lambda_.1} parent=112 // loop_exit
        _
    $region113: #{_lambda_.1} parent=1 // pred_fallthru
      _
    // Predicated region
    $region136: #{_lambda_.1} parent=1 // pred_check
      _
    $region137: #{_lambda_.1} parent=1 // pred_check_branch
      %329 = sbr.rel (0) target = $region139
    $region138: #{_lambda_.1} parent=1 // pred_region
      %330 = vsyncadd %s210, 5120
    $region139: #{_lambda_.1} parent=1 // pred_fallthru
      _
    %s331 = scalar_lea.sflag [#allocation10], 3
    %p333 = scmp.lt.u32.totalorder 384, 8
    %p334 = pneg %p333
    // Predicated region
    $region140: #{_lambda_.1} parent=1 // pred_check
      _
    $region141: #{_lambda_.1} parent=1 // pred_check_branch
      %336 = sbr.rel (%p333) target = $region143
    $region142: #{_lambda_.1} parent=1 // pred_region
      %s351 = sand.u32 384, 7
      %p352 = scmp.eq.s32.totalorder %s351, 0
      // Predicated region
      $region155: #{_lambda_.1} parent=142 // pred_check
        %p353 = pneg %p352
      $region156: #{_lambda_.1} parent=142 // pred_check_branch
        %355 = sbr.rel (%p353) target = $region158
      $region157: #{_lambda_.1} parent=142 // pred_region
        loop: start=0, step=1, limit=1
        $region159: #{_lambda_.1} parent=157 // loop_pre_header
          _
        $region160: #{_lambda_.1} parent=157 // loop_header
          %s357 = sphi 0, %s361
          %p358 = scmp.ge.s32.totalorder %s357, 1
          %s362 = sphi %s12, %s12
          %s363 = sphi [#allocation5], [#allocation5]
        $region161: #{_lambda_.1} parent=157 // loop_header_branch
          %360 = sbr.rel (%p358) target = $region165
        $region162: #{_lambda_.1} parent=157 // loop_body
          %v364 = vld [vmem:[%s362] sm:$0xff]
          %365 = vst [vmem:[%s363] sm:$0xff] %v364
          %v366 = vld [vmem:[%s362 + $0x8] sm:$0xff]
          %367 = vst [vmem:[%s363 + $0x8] sm:$0xff] %v366
          %v368 = vld [vmem:[%s362 + $0x10] sm:$0xff]
          %369 = vst [vmem:[%s363 + $0x10] sm:$0xff] %v368
          %v370 = vld [vmem:[%s362 + $0x18] sm:$0xff]
          %371 = vst [vmem:[%s363 + $0x18] sm:$0xff] %v370
          %v372 = vld [vmem:[%s362 + $0x20] sm:$0xff]
          %373 = vst [vmem:[%s363 + $0x20] sm:$0xff] %v372
          %v374 = vld [vmem:[%s362 + $0x28] sm:$0xff]
          %375 = vst [vmem:[%s363 + $0x28] sm:$0xff] %v374
          %v376 = vld [vmem:[%s362 + $0x30] sm:$0xff]
          %377 = vst [vmem:[%s363 + $0x30] sm:$0xff] %v376
          %v378 = vld [vmem:[%s362 + $0x38] sm:$0xff]
          %379 = vst [vmem:[%s363 + $0x38] sm:$0xff] %v378
          %v380 = vld [vmem:[%s362 + $0x40] sm:$0xff]
          %381 = vst [vmem:[%s363 + $0x40] sm:$0xff] %v380
          %v382 = vld [vmem:[%s362 + $0x48] sm:$0xff]
          %383 = vst [vmem:[%s363 + $0x48] sm:$0xff] %v382
          %v384 = vld [vmem:[%s362 + $0x50] sm:$0xff]
          %385 = vst [vmem:[%s363 + $0x50] sm:$0xff] %v384
          %v386 = vld [vmem:[%s362 + $0x58] sm:$0xff]
          %387 = vst [vmem:[%s363 + $0x58] sm:$0xff] %v386
          %v388 = vld [vmem:[%s362 + $0x60] sm:$0xff]
          %389 = vst [vmem:[%s363 + $0x60] sm:$0xff] %v388
          %v390 = vld [vmem:[%s362 + $0x68] sm:$0xff]
          %391 = vst [vmem:[%s363 + $0x68] sm:$0xff] %v390
          %v392 = vld [vmem:[%s362 + $0x70] sm:$0xff]
          %393 = vst [vmem:[%s363 + $0x70] sm:$0xff] %v392
          %v394 = vld [vmem:[%s362 + $0x78] sm:$0xff]
          %395 = vst [vmem:[%s363 + $0x78] sm:$0xff] %v394
          %v396 = vld [vmem:[%s362 + $0x80] sm:$0xff]
          %397 = vst [vmem:[%s363 + $0x80] sm:$0xff] %v396
          %v398 = vld [vmem:[%s362 + $0x88] sm:$0xff]
          %399 = vst [vmem:[%s363 + $0x88] sm:$0xff] %v398
          %v400 = vld [vmem:[%s362 + $0x90] sm:$0xff]
          %401 = vst [vmem:[%s363 + $0x90] sm:$0xff] %v400
          %v402 = vld [vmem:[%s362 + $0x98] sm:$0xff]
          %403 = vst [vmem:[%s363 + $0x98] sm:$0xff] %v402
          %v404 = vld [vmem:[%s362 + $0xa0] sm:$0xff]
          %405 = vst [vmem:[%s363 + $0xa0] sm:$0xff] %v404
          %v406 = vld [vmem:[%s362 + $0xa8] sm:$0xff]
          %407 = vst [vmem:[%s363 + $0xa8] sm:$0xff] %v406
          %v408 = vld [vmem:[%s362 + $0xb0] sm:$0xff]
          %409 = vst [vmem:[%s363 + $0xb0] sm:$0xff] %v408
          %v410 = vld [vmem:[%s362 + $0xb8] sm:$0xff]
          %411 = vst [vmem:[%s363 + $0xb8] sm:$0xff] %v410
          %v412 = vld [vmem:[%s362 + $0xc0] sm:$0xff]
          %413 = vst [vmem:[%s363 + $0xc0] sm:$0xff] %v412
          %v414 = vld [vmem:[%s362 + $0xc8] sm:$0xff]
          %415 = vst [vmem:[%s363 + $0xc8] sm:$0xff] %v414
          %v416 = vld [vmem:[%s362 + $0xd0] sm:$0xff]
          %417 = vst [vmem:[%s363 + $0xd0] sm:$0xff] %v416
          %v418 = vld [vmem:[%s362 + $0xd8] sm:$0xff]
          %419 = vst [vmem:[%s363 + $0xd8] sm:$0xff] %v418
          %v420 = vld [vmem:[%s362 + $0xe0] sm:$0xff]
          %421 = vst [vmem:[%s363 + $0xe0] sm:$0xff] %v420
          %v422 = vld [vmem:[%s362 + $0xe8] sm:$0xff]
          %423 = vst [vmem:[%s363 + $0xe8] sm:$0xff] %v422
          %v424 = vld [vmem:[%s362 + $0xf0] sm:$0xff]
          %425 = vst [vmem:[%s363 + $0xf0] sm:$0xff] %v424
          %v426 = vld [vmem:[%s362 + $0xf8] sm:$0xff]
          %427 = vst [vmem:[%s363 + $0xf8] sm:$0xff] %v426
          %v428 = vld [vmem:[%s362 + $0x100] sm:$0xff]
          %429 = vst [vmem:[%s363 + $0x100] sm:$0xff] %v428
          %v430 = vld [vmem:[%s362 + $0x108] sm:$0xff]
          %431 = vst [vmem:[%s363 + $0x108] sm:$0xff] %v430
          %v432 = vld [vmem:[%s362 + $0x110] sm:$0xff]
          %433 = vst [vmem:[%s363 + $0x110] sm:$0xff] %v432
          %v434 = vld [vmem:[%s362 + $0x118] sm:$0xff]
          %435 = vst [vmem:[%s363 + $0x118] sm:$0xff] %v434
          %v436 = vld [vmem:[%s362 + $0x120] sm:$0xff]
          %437 = vst [vmem:[%s363 + $0x120] sm:$0xff] %v436
          %v438 = vld [vmem:[%s362 + $0x128] sm:$0xff]
          %439 = vst [vmem:[%s363 + $0x128] sm:$0xff] %v438
          %v440 = vld [vmem:[%s362 + $0x130] sm:$0xff]
          %441 = vst [vmem:[%s363 + $0x130] sm:$0xff] %v440
          %v442 = vld [vmem:[%s362 + $0x138] sm:$0xff]
          %443 = vst [vmem:[%s363 + $0x138] sm:$0xff] %v442
          %v444 = vld [vmem:[%s362 + $0x140] sm:$0xff]
          %445 = vst [vmem:[%s363 + $0x140] sm:$0xff] %v444
          %v446 = vld [vmem:[%s362 + $0x148] sm:$0xff]
          %447 = vst [vmem:[%s363 + $0x148] sm:$0xff] %v446
          %v448 = vld [vmem:[%s362 + $0x150] sm:$0xff]
          %449 = vst [vmem:[%s363 + $0x150] sm:$0xff] %v448
          %v450 = vld [vmem:[%s362 + $0x158] sm:$0xff]
          %451 = vst [vmem:[%s363 + $0x158] sm:$0xff] %v450
          %v452 = vld [vmem:[%s362 + $0x160] sm:$0xff]
          %453 = vst [vmem:[%s363 + $0x160] sm:$0xff] %v452
          %v454 = vld [vmem:[%s362 + $0x168] sm:$0xff]
          %455 = vst [vmem:[%s363 + $0x168] sm:$0xff] %v454
          %v456 = vld [vmem:[%s362 + $0x170] sm:$0xff]
          %457 = vst [vmem:[%s363 + $0x170] sm:$0xff] %v456
          %v458 = vld [vmem:[%s362 + $0x178] sm:$0xff]
          %459 = vst [vmem:[%s363 + $0x178] sm:$0xff] %v458
        $region163: #{_lambda_.1} parent=157 // loop_footer
          %s361 = sadd.s32 1, %s357
        $region164: #{_lambda_.1} parent=157 // loop_footer_branch
          %356 = sbr.rel target = $region160
        $region165: #{_lambda_.1} parent=157 // loop_exit
          _
      $region158: #{_lambda_.1} parent=142 // pred_fallthru
        _
      %p460 = pneg %p352
      // Predicated region
      $region166: #{_lambda_.1} parent=142 // pred_check
        _
      $region167: #{_lambda_.1} parent=142 // pred_check_branch
        %462 = sbr.rel (%p352) target = $region169
      $region168: #{_lambda_.1} parent=142 // pred_region
        %s463 = sand.u32 384, 7
      $region169: #{_lambda_.1} parent=142 // pred_fallthru
        _
    $region143: #{_lambda_.1} parent=1 // pred_fallthru
      _
    // Predicated region
    $region144: #{_lambda_.1} parent=1 // pred_check
      %p337 = pneg %p333
    $region145: #{_lambda_.1} parent=1 // pred_check_branch
      %339 = sbr.rel (%p337) target = $region147
    $region146: #{_lambda_.1} parent=1 // pred_region
      %s340 = sshllo.u32 0, 384
      loop: start=0, step=1, limit=1
      $region148: #{_lambda_.1} parent=146 // loop_pre_header
        _
      $region149: #{_lambda_.1} parent=146 // loop_header
        %s342 = sphi 0, %s346
        %p343 = scmp.ge.s32.totalorder %s342, 1
        %s347 = sphi %s12, %s12
        %s348 = sphi [#allocation5], [#allocation5]
      $region150: #{_lambda_.1} parent=146 // loop_header_branch
        %345 = sbr.rel (%p343) target = $region154
      $region151: #{_lambda_.1} parent=146 // loop_body
        %v349 = vld [vmem:[%s347] sm:%s340]
        %350 = vst [vmem:[%s348] sm:%s340] %v349
      $region152: #{_lambda_.1} parent=146 // loop_footer
        %s346 = sadd.s32 1, %s342
      $region153: #{_lambda_.1} parent=146 // loop_footer_branch
        %341 = sbr.rel target = $region149
      $region154: #{_lambda_.1} parent=146 // loop_exit
        _
    $region147: #{_lambda_.1} parent=1 // pred_fallthru
      _
    // Predicated region
    $region170: #{_lambda_.1} parent=1 // pred_check
      _
    $region171: #{_lambda_.1} parent=1 // pred_check_branch
      %466 = sbr.rel (0) target = $region173
    $region172: #{_lambda_.1} parent=1 // pred_region
      %467 = vsyncadd %s331, 6144
    $region173: #{_lambda_.1} parent=1 // pred_fallthru
      _
    %s468 = scalar_lea.sflag [#allocation10], 4
    %p470 = scmp.lt.u32.totalorder 512, 8
    %p471 = pneg %p470
    // Predicated region
    $region174: #{_lambda_.1} parent=1 // pred_check
      _
    $region175: #{_lambda_.1} parent=1 // pred_check_branch
      %473 = sbr.rel (%p470) target = $region177
    $region176: #{_lambda_.1} parent=1 // pred_region
      %s488 = sand.u32 512, 7
      %p489 = scmp.eq.s32.totalorder %s488, 0
      // Predicated region
      $region189: #{_lambda_.1} parent=176 // pred_check
        %p490 = pneg %p489
      $region190: #{_lambda_.1} parent=176 // pred_check_branch
        %492 = sbr.rel (%p490) target = $region192
      $region191: #{_lambda_.1} parent=176 // pred_region
        loop: start=0, step=1, limit=1
        $region193: #{_lambda_.1} parent=191 // loop_pre_header
          _
        $region194: #{_lambda_.1} parent=191 // loop_header
          %s494 = sphi 0, %s498
          %p495 = scmp.ge.s32.totalorder %s494, 1
          %s499 = sphi %s13, %s13
          %s500 = sphi [#allocation6], [#allocation6]
        $region195: #{_lambda_.1} parent=191 // loop_header_branch
          %497 = sbr.rel (%p495) target = $region199
        $region196: #{_lambda_.1} parent=191 // loop_body
          %v501 = vld [vmem:[%s499] sm:$0xff]
          %502 = vst [vmem:[%s500] sm:$0xff] %v501
          %v503 = vld [vmem:[%s499 + $0x8] sm:$0xff]
          %504 = vst [vmem:[%s500 + $0x8] sm:$0xff] %v503
          %v505 = vld [vmem:[%s499 + $0x10] sm:$0xff]
          %506 = vst [vmem:[%s500 + $0x10] sm:$0xff] %v505
          %v507 = vld [vmem:[%s499 + $0x18] sm:$0xff]
          %508 = vst [vmem:[%s500 + $0x18] sm:$0xff] %v507
          %v509 = vld [vmem:[%s499 + $0x20] sm:$0xff]
          %510 = vst [vmem:[%s500 + $0x20] sm:$0xff] %v509
          %v511 = vld [vmem:[%s499 + $0x28] sm:$0xff]
          %512 = vst [vmem:[%s500 + $0x28] sm:$0xff] %v511
          %v513 = vld [vmem:[%s499 + $0x30] sm:$0xff]
          %514 = vst [vmem:[%s500 + $0x30] sm:$0xff] %v513
          %v515 = vld [vmem:[%s499 + $0x38] sm:$0xff]
          %516 = vst [vmem:[%s500 + $0x38] sm:$0xff] %v515
          %v517 = vld [vmem:[%s499 + $0x40] sm:$0xff]
          %518 = vst [vmem:[%s500 + $0x40] sm:$0xff] %v517
          %v519 = vld [vmem:[%s499 + $0x48] sm:$0xff]
          %520 = vst [vmem:[%s500 + $0x48] sm:$0xff] %v519
          %v521 = vld [vmem:[%s499 + $0x50] sm:$0xff]
          %522 = vst [vmem:[%s500 + $0x50] sm:$0xff] %v521
          %v523 = vld [vmem:[%s499 + $0x58] sm:$0xff]
          %524 = vst [vmem:[%s500 + $0x58] sm:$0xff] %v523
          %v525 = vld [vmem:[%s499 + $0x60] sm:$0xff]
          %526 = vst [vmem:[%s500 + $0x60] sm:$0xff] %v525
          %v527 = vld [vmem:[%s499 + $0x68] sm:$0xff]
          %528 = vst [vmem:[%s500 + $0x68] sm:$0xff] %v527
          %v529 = vld [vmem:[%s499 + $0x70] sm:$0xff]
          %530 = vst [vmem:[%s500 + $0x70] sm:$0xff] %v529
          %v531 = vld [vmem:[%s499 + $0x78] sm:$0xff]
          %532 = vst [vmem:[%s500 + $0x78] sm:$0xff] %v531
          %v533 = vld [vmem:[%s499 + $0x80] sm:$0xff]
          %534 = vst [vmem:[%s500 + $0x80] sm:$0xff] %v533
          %v535 = vld [vmem:[%s499 + $0x88] sm:$0xff]
          %536 = vst [vmem:[%s500 + $0x88] sm:$0xff] %v535
          %v537 = vld [vmem:[%s499 + $0x90] sm:$0xff]
          %538 = vst [vmem:[%s500 + $0x90] sm:$0xff] %v537
          %v539 = vld [vmem:[%s499 + $0x98] sm:$0xff]
          %540 = vst [vmem:[%s500 + $0x98] sm:$0xff] %v539
          %v541 = vld [vmem:[%s499 + $0xa0] sm:$0xff]
          %542 = vst [vmem:[%s500 + $0xa0] sm:$0xff] %v541
          %v543 = vld [vmem:[%s499 + $0xa8] sm:$0xff]
          %544 = vst [vmem:[%s500 + $0xa8] sm:$0xff] %v543
          %v545 = vld [vmem:[%s499 + $0xb0] sm:$0xff]
          %546 = vst [vmem:[%s500 + $0xb0] sm:$0xff] %v545
          %v547 = vld [vmem:[%s499 + $0xb8] sm:$0xff]
          %548 = vst [vmem:[%s500 + $0xb8] sm:$0xff] %v547
          %v549 = vld [vmem:[%s499 + $0xc0] sm:$0xff]
          %550 = vst [vmem:[%s500 + $0xc0] sm:$0xff] %v549
          %v551 = vld [vmem:[%s499 + $0xc8] sm:$0xff]
          %552 = vst [vmem:[%s500 + $0xc8] sm:$0xff] %v551
          %v553 = vld [vmem:[%s499 + $0xd0] sm:$0xff]
          %554 = vst [vmem:[%s500 + $0xd0] sm:$0xff] %v553
          %v555 = vld [vmem:[%s499 + $0xd8] sm:$0xff]
          %556 = vst [vmem:[%s500 + $0xd8] sm:$0xff] %v555
          %v557 = vld [vmem:[%s499 + $0xe0] sm:$0xff]
          %558 = vst [vmem:[%s500 + $0xe0] sm:$0xff] %v557
          %v559 = vld [vmem:[%s499 + $0xe8] sm:$0xff]
          %560 = vst [vmem:[%s500 + $0xe8] sm:$0xff] %v559
          %v561 = vld [vmem:[%s499 + $0xf0] sm:$0xff]
          %562 = vst [vmem:[%s500 + $0xf0] sm:$0xff] %v561
          %v563 = vld [vmem:[%s499 + $0xf8] sm:$0xff]
          %564 = vst [vmem:[%s500 + $0xf8] sm:$0xff] %v563
          %v565 = vld [vmem:[%s499 + $0x100] sm:$0xff]
          %566 = vst [vmem:[%s500 + $0x100] sm:$0xff] %v565
          %v567 = vld [vmem:[%s499 + $0x108] sm:$0xff]
          %568 = vst [vmem:[%s500 + $0x108] sm:$0xff] %v567
          %v569 = vld [vmem:[%s499 + $0x110] sm:$0xff]
          %570 = vst [vmem:[%s500 + $0x110] sm:$0xff] %v569
          %v571 = vld [vmem:[%s499 + $0x118] sm:$0xff]
          %572 = vst [vmem:[%s500 + $0x118] sm:$0xff] %v571
          %v573 = vld [vmem:[%s499 + $0x120] sm:$0xff]
          %574 = vst [vmem:[%s500 + $0x120] sm:$0xff] %v573
          %v575 = vld [vmem:[%s499 + $0x128] sm:$0xff]
          %576 = vst [vmem:[%s500 + $0x128] sm:$0xff] %v575
          %v577 = vld [vmem:[%s499 + $0x130] sm:$0xff]
          %578 = vst [vmem:[%s500 + $0x130] sm:$0xff] %v577
          %v579 = vld [vmem:[%s499 + $0x138] sm:$0xff]
          %580 = vst [vmem:[%s500 + $0x138] sm:$0xff] %v579
          %v581 = vld [vmem:[%s499 + $0x140] sm:$0xff]
          %582 = vst [vmem:[%s500 + $0x140] sm:$0xff] %v581
          %v583 = vld [vmem:[%s499 + $0x148] sm:$0xff]
          %584 = vst [vmem:[%s500 + $0x148] sm:$0xff] %v583
          %v585 = vld [vmem:[%s499 + $0x150] sm:$0xff]
          %586 = vst [vmem:[%s500 + $0x150] sm:$0xff] %v585
          %v587 = vld [vmem:[%s499 + $0x158] sm:$0xff]
          %588 = vst [vmem:[%s500 + $0x158] sm:$0xff] %v587
          %v589 = vld [vmem:[%s499 + $0x160] sm:$0xff]
          %590 = vst [vmem:[%s500 + $0x160] sm:$0xff] %v589
          %v591 = vld [vmem:[%s499 + $0x168] sm:$0xff]
          %592 = vst [vmem:[%s500 + $0x168] sm:$0xff] %v591
          %v593 = vld [vmem:[%s499 + $0x170] sm:$0xff]
          %594 = vst [vmem:[%s500 + $0x170] sm:$0xff] %v593
          %v595 = vld [vmem:[%s499 + $0x178] sm:$0xff]
          %596 = vst [vmem:[%s500 + $0x178] sm:$0xff] %v595
          %v597 = vld [vmem:[%s499 + $0x180] sm:$0xff]
          %598 = vst [vmem:[%s500 + $0x180] sm:$0xff] %v597
          %v599 = vld [vmem:[%s499 + $0x188] sm:$0xff]
          %600 = vst [vmem:[%s500 + $0x188] sm:$0xff] %v599
          %v601 = vld [vmem:[%s499 + $0x190] sm:$0xff]
          %602 = vst [vmem:[%s500 + $0x190] sm:$0xff] %v601
          %v603 = vld [vmem:[%s499 + $0x198] sm:$0xff]
          %604 = vst [vmem:[%s500 + $0x198] sm:$0xff] %v603
          %v605 = vld [vmem:[%s499 + $0x1a0] sm:$0xff]
          %606 = vst [vmem:[%s500 + $0x1a0] sm:$0xff] %v605
          %v607 = vld [vmem:[%s499 + $0x1a8] sm:$0xff]
          %608 = vst [vmem:[%s500 + $0x1a8] sm:$0xff] %v607
          %v609 = vld [vmem:[%s499 + $0x1b0] sm:$0xff]
          %610 = vst [vmem:[%s500 + $0x1b0] sm:$0xff] %v609
          %v611 = vld [vmem:[%s499 + $0x1b8] sm:$0xff]
          %612 = vst [vmem:[%s500 + $0x1b8] sm:$0xff] %v611
          %v613 = vld [vmem:[%s499 + $0x1c0] sm:$0xff]
          %614 = vst [vmem:[%s500 + $0x1c0] sm:$0xff] %v613
          %v615 = vld [vmem:[%s499 + $0x1c8] sm:$0xff]
          %616 = vst [vmem:[%s500 + $0x1c8] sm:$0xff] %v615
          %v617 = vld [vmem:[%s499 + $0x1d0] sm:$0xff]
          %618 = vst [vmem:[%s500 + $0x1d0] sm:$0xff] %v617
          %v619 = vld [vmem:[%s499 + $0x1d8] sm:$0xff]
          %620 = vst [vmem:[%s500 + $0x1d8] sm:$0xff] %v619
          %v621 = vld [vmem:[%s499 + $0x1e0] sm:$0xff]
          %622 = vst [vmem:[%s500 + $0x1e0] sm:$0xff] %v621
          %v623 = vld [vmem:[%s499 + $0x1e8] sm:$0xff]
          %624 = vst [vmem:[%s500 + $0x1e8] sm:$0xff] %v623
          %v625 = vld [vmem:[%s499 + $0x1f0] sm:$0xff]
          %626 = vst [vmem:[%s500 + $0x1f0] sm:$0xff] %v625
          %v627 = vld [vmem:[%s499 + $0x1f8] sm:$0xff]
          %628 = vst [vmem:[%s500 + $0x1f8] sm:$0xff] %v627
        $region197: #{_lambda_.1} parent=191 // loop_footer
          %s498 = sadd.s32 1, %s494
        $region198: #{_lambda_.1} parent=191 // loop_footer_branch
          %493 = sbr.rel target = $region194
        $region199: #{_lambda_.1} parent=191 // loop_exit
          _
      $region192: #{_lambda_.1} parent=176 // pred_fallthru
        _
      %p629 = pneg %p489
      // Predicated region
      $region200: #{_lambda_.1} parent=176 // pred_check
        _
      $region201: #{_lambda_.1} parent=176 // pred_check_branch
        %631 = sbr.rel (%p489) target = $region203
      $region202: #{_lambda_.1} parent=176 // pred_region
        %s632 = sand.u32 512, 7
      $region203: #{_lambda_.1} parent=176 // pred_fallthru
        _
    $region177: #{_lambda_.1} parent=1 // pred_fallthru
      _
    // Predicated region
    $region178: #{_lambda_.1} parent=1 // pred_check
      %p474 = pneg %p470
    $region179: #{_lambda_.1} parent=1 // pred_check_branch
      %476 = sbr.rel (%p474) target = $region181
    $region180: #{_lambda_.1} parent=1 // pred_region
      %s477 = sshllo.u32 0, 512
      loop: start=0, step=1, limit=1
      $region182: #{_lambda_.1} parent=180 // loop_pre_header
        _
      $region183: #{_lambda_.1} parent=180 // loop_header
        %s479 = sphi 0, %s483
        %p480 = scmp.ge.s32.totalorder %s479, 1
        %s484 = sphi %s13, %s13
        %s485 = sphi [#allocation6], [#allocation6]
      $region184: #{_lambda_.1} parent=180 // loop_header_branch
        %482 = sbr.rel (%p480) target = $region188
      $region185: #{_lambda_.1} parent=180 // loop_body
        %v486 = vld [vmem:[%s484] sm:%s477]
        %487 = vst [vmem:[%s485] sm:%s477] %v486
      $region186: #{_lambda_.1} parent=180 // loop_footer
        %s483 = sadd.s32 1, %s479
      $region187: #{_lambda_.1} parent=180 // loop_footer_branch
        %478 = sbr.rel target = $region183
      $region188: #{_lambda_.1} parent=180 // loop_exit
        _
    $region181: #{_lambda_.1} parent=1 // pred_fallthru
      _
    // Predicated region
    $region204: #{_lambda_.1} parent=1 // pred_check
      _
    $region205: #{_lambda_.1} parent=1 // pred_check_branch
      %635 = sbr.rel (0) target = $region207
    $region206: #{_lambda_.1} parent=1 // pred_region
      %636 = vsyncadd %s468, 8192
    $region207: #{_lambda_.1} parent=1 // pred_fallthru
      _
    %s637 = scalar_lea.sflag [#allocation10], 5
    %p639 = scmp.lt.u32.totalorder 384, 8
    %p640 = pneg %p639
    // Predicated region
    $region208: #{_lambda_.1} parent=1 // pred_check
      _
    $region209: #{_lambda_.1} parent=1 // pred_check_branch
      %642 = sbr.rel (%p639) target = $region211
    $region210: #{_lambda_.1} parent=1 // pred_region
      %s657 = sand.u32 384, 7
      %p658 = scmp.eq.s32.totalorder %s657, 0
      // Predicated region
      $region223: #{_lambda_.1} parent=210 // pred_check
        %p659 = pneg %p658
      $region224: #{_lambda_.1} parent=210 // pred_check_branch
        %661 = sbr.rel (%p659) target = $region226
      $region225: #{_lambda_.1} parent=210 // pred_region
        loop: start=0, step=1, limit=1
        $region227: #{_lambda_.1} parent=225 // loop_pre_header
          _
        $region228: #{_lambda_.1} parent=225 // loop_header
          %s663 = sphi 0, %s667
          %p664 = scmp.ge.s32.totalorder %s663, 1
          %s668 = sphi %s14, %s14
          %s669 = sphi [#allocation7], [#allocation7]
        $region229: #{_lambda_.1} parent=225 // loop_header_branch
          %666 = sbr.rel (%p664) target = $region233
        $region230: #{_lambda_.1} parent=225 // loop_body
          %v670 = vld [vmem:[%s668] sm:$0xff]
          %671 = vst [vmem:[%s669] sm:$0xff] %v670
          %v672 = vld [vmem:[%s668 + $0x8] sm:$0xff]
          %673 = vst [vmem:[%s669 + $0x8] sm:$0xff] %v672
          %v674 = vld [vmem:[%s668 + $0x10] sm:$0xff]
          %675 = vst [vmem:[%s669 + $0x10] sm:$0xff] %v674
          %v676 = vld [vmem:[%s668 + $0x18] sm:$0xff]
          %677 = vst [vmem:[%s669 + $0x18] sm:$0xff] %v676
          %v678 = vld [vmem:[%s668 + $0x20] sm:$0xff]
          %679 = vst [vmem:[%s669 + $0x20] sm:$0xff] %v678
          %v680 = vld [vmem:[%s668 + $0x28] sm:$0xff]
          %681 = vst [vmem:[%s669 + $0x28] sm:$0xff] %v680
          %v682 = vld [vmem:[%s668 + $0x30] sm:$0xff]
          %683 = vst [vmem:[%s669 + $0x30] sm:$0xff] %v682
          %v684 = vld [vmem:[%s668 + $0x38] sm:$0xff]
          %685 = vst [vmem:[%s669 + $0x38] sm:$0xff] %v684
          %v686 = vld [vmem:[%s668 + $0x40] sm:$0xff]
          %687 = vst [vmem:[%s669 + $0x40] sm:$0xff] %v686
          %v688 = vld [vmem:[%s668 + $0x48] sm:$0xff]
          %689 = vst [vmem:[%s669 + $0x48] sm:$0xff] %v688
          %v690 = vld [vmem:[%s668 + $0x50] sm:$0xff]
          %691 = vst [vmem:[%s669 + $0x50] sm:$0xff] %v690
          %v692 = vld [vmem:[%s668 + $0x58] sm:$0xff]
          %693 = vst [vmem:[%s669 + $0x58] sm:$0xff] %v692
          %v694 = vld [vmem:[%s668 + $0x60] sm:$0xff]
          %695 = vst [vmem:[%s669 + $0x60] sm:$0xff] %v694
          %v696 = vld [vmem:[%s668 + $0x68] sm:$0xff]
          %697 = vst [vmem:[%s669 + $0x68] sm:$0xff] %v696
          %v698 = vld [vmem:[%s668 + $0x70] sm:$0xff]
          %699 = vst [vmem:[%s669 + $0x70] sm:$0xff] %v698
          %v700 = vld [vmem:[%s668 + $0x78] sm:$0xff]
          %701 = vst [vmem:[%s669 + $0x78] sm:$0xff] %v700
          %v702 = vld [vmem:[%s668 + $0x80] sm:$0xff]
          %703 = vst [vmem:[%s669 + $0x80] sm:$0xff] %v702
          %v704 = vld [vmem:[%s668 + $0x88] sm:$0xff]
          %705 = vst [vmem:[%s669 + $0x88] sm:$0xff] %v704
          %v706 = vld [vmem:[%s668 + $0x90] sm:$0xff]
          %707 = vst [vmem:[%s669 + $0x90] sm:$0xff] %v706
          %v708 = vld [vmem:[%s668 + $0x98] sm:$0xff]
          %709 = vst [vmem:[%s669 + $0x98] sm:$0xff] %v708
          %v710 = vld [vmem:[%s668 + $0xa0] sm:$0xff]
          %711 = vst [vmem:[%s669 + $0xa0] sm:$0xff] %v710
          %v712 = vld [vmem:[%s668 + $0xa8] sm:$0xff]
          %713 = vst [vmem:[%s669 + $0xa8] sm:$0xff] %v712
          %v714 = vld [vmem:[%s668 + $0xb0] sm:$0xff]
          %715 = vst [vmem:[%s669 + $0xb0] sm:$0xff] %v714
          %v716 = vld [vmem:[%s668 + $0xb8] sm:$0xff]
          %717 = vst [vmem:[%s669 + $0xb8] sm:$0xff] %v716
          %v718 = vld [vmem:[%s668 + $0xc0] sm:$0xff]
          %719 = vst [vmem:[%s669 + $0xc0] sm:$0xff] %v718
          %v720 = vld [vmem:[%s668 + $0xc8] sm:$0xff]
          %721 = vst [vmem:[%s669 + $0xc8] sm:$0xff] %v720
          %v722 = vld [vmem:[%s668 + $0xd0] sm:$0xff]
          %723 = vst [vmem:[%s669 + $0xd0] sm:$0xff] %v722
          %v724 = vld [vmem:[%s668 + $0xd8] sm:$0xff]
          %725 = vst [vmem:[%s669 + $0xd8] sm:$0xff] %v724
          %v726 = vld [vmem:[%s668 + $0xe0] sm:$0xff]
          %727 = vst [vmem:[%s669 + $0xe0] sm:$0xff] %v726
          %v728 = vld [vmem:[%s668 + $0xe8] sm:$0xff]
          %729 = vst [vmem:[%s669 + $0xe8] sm:$0xff] %v728
          %v730 = vld [vmem:[%s668 + $0xf0] sm:$0xff]
          %731 = vst [vmem:[%s669 + $0xf0] sm:$0xff] %v730
          %v732 = vld [vmem:[%s668 + $0xf8] sm:$0xff]
          %733 = vst [vmem:[%s669 + $0xf8] sm:$0xff] %v732
          %v734 = vld [vmem:[%s668 + $0x100] sm:$0xff]
          %735 = vst [vmem:[%s669 + $0x100] sm:$0xff] %v734
          %v736 = vld [vmem:[%s668 + $0x108] sm:$0xff]
          %737 = vst [vmem:[%s669 + $0x108] sm:$0xff] %v736
          %v738 = vld [vmem:[%s668 + $0x110] sm:$0xff]
          %739 = vst [vmem:[%s669 + $0x110] sm:$0xff] %v738
          %v740 = vld [vmem:[%s668 + $0x118] sm:$0xff]
          %741 = vst [vmem:[%s669 + $0x118] sm:$0xff] %v740
          %v742 = vld [vmem:[%s668 + $0x120] sm:$0xff]
          %743 = vst [vmem:[%s669 + $0x120] sm:$0xff] %v742
          %v744 = vld [vmem:[%s668 + $0x128] sm:$0xff]
          %745 = vst [vmem:[%s669 + $0x128] sm:$0xff] %v744
          %v746 = vld [vmem:[%s668 + $0x130] sm:$0xff]
          %747 = vst [vmem:[%s669 + $0x130] sm:$0xff] %v746
          %v748 = vld [vmem:[%s668 + $0x138] sm:$0xff]
          %749 = vst [vmem:[%s669 + $0x138] sm:$0xff] %v748
          %v750 = vld [vmem:[%s668 + $0x140] sm:$0xff]
          %751 = vst [vmem:[%s669 + $0x140] sm:$0xff] %v750
          %v752 = vld [vmem:[%s668 + $0x148] sm:$0xff]
          %753 = vst [vmem:[%s669 + $0x148] sm:$0xff] %v752
          %v754 = vld [vmem:[%s668 + $0x150] sm:$0xff]
          %755 = vst [vmem:[%s669 + $0x150] sm:$0xff] %v754
          %v756 = vld [vmem:[%s668 + $0x158] sm:$0xff]
          %757 = vst [vmem:[%s669 + $0x158] sm:$0xff] %v756
          %v758 = vld [vmem:[%s668 + $0x160] sm:$0xff]
          %759 = vst [vmem:[%s669 + $0x160] sm:$0xff] %v758
          %v760 = vld [vmem:[%s668 + $0x168] sm:$0xff]
          %761 = vst [vmem:[%s669 + $0x168] sm:$0xff] %v760
          %v762 = vld [vmem:[%s668 + $0x170] sm:$0xff]
          %763 = vst [vmem:[%s669 + $0x170] sm:$0xff] %v762
          %v764 = vld [vmem:[%s668 + $0x178] sm:$0xff]
          %765 = vst [vmem:[%s669 + $0x178] sm:$0xff] %v764
        $region231: #{_lambda_.1} parent=225 // loop_footer
          %s667 = sadd.s32 1, %s663
        $region232: #{_lambda_.1} parent=225 // loop_footer_branch
          %662 = sbr.rel target = $region228
        $region233: #{_lambda_.1} parent=225 // loop_exit
          _
      $region226: #{_lambda_.1} parent=210 // pred_fallthru
        _
      %p766 = pneg %p658
      // Predicated region
      $region234: #{_lambda_.1} parent=210 // pred_check
        _
      $region235: #{_lambda_.1} parent=210 // pred_check_branch
        %768 = sbr.rel (%p658) target = $region237
      $region236: #{_lambda_.1} parent=210 // pred_region
        %s769 = sand.u32 384, 7
      $region237: #{_lambda_.1} parent=210 // pred_fallthru
        _
    $region211: #{_lambda_.1} parent=1 // pred_fallthru
      _
    // Predicated region
    $region212: #{_lambda_.1} parent=1 // pred_check
      %p643 = pneg %p639
    $region213: #{_lambda_.1} parent=1 // pred_check_branch
      %645 = sbr.rel (%p643) target = $region215
    $region214: #{_lambda_.1} parent=1 // pred_region
      %s646 = sshllo.u32 0, 384
      loop: start=0, step=1, limit=1
      $region216: #{_lambda_.1} parent=214 // loop_pre_header
        _
      $region217: #{_lambda_.1} parent=214 // loop_header
        %s648 = sphi 0, %s652
        %p649 = scmp.ge.s32.totalorder %s648, 1
        %s653 = sphi %s14, %s14
        %s654 = sphi [#allocation7], [#allocation7]
      $region218: #{_lambda_.1} parent=214 // loop_header_branch
        %651 = sbr.rel (%p649) target = $region222
      $region219: #{_lambda_.1} parent=214 // loop_body
        %v655 = vld [vmem:[%s653] sm:%s646]
        %656 = vst [vmem:[%s654] sm:%s646] %v655
      $region220: #{_lambda_.1} parent=214 // loop_footer
        %s652 = sadd.s32 1, %s648
      $region221: #{_lambda_.1} parent=214 // loop_footer_branch
        %647 = sbr.rel target = $region217
      $region222: #{_lambda_.1} parent=214 // loop_exit
        _
    $region215: #{_lambda_.1} parent=1 // pred_fallthru
      _
    // Predicated region
    $region238: #{_lambda_.1} parent=1 // pred_check
      _
    $region239: #{_lambda_.1} parent=1 // pred_check_branch
      %772 = sbr.rel (0) target = $region241
    $region240: #{_lambda_.1} parent=1 // pred_region
      %773 = vsyncadd %s637, 6144
    $region241: #{_lambda_.1} parent=1 // pred_fallthru
      _
    %s774 = scalar_lea.sflag [#allocation10], 6
    %p776 = scmp.lt.u32.totalorder 160, 8
    %p777 = pneg %p776
    // Predicated region
    $region242: #{_lambda_.1} parent=1 // pred_check
      _
    $region243: #{_lambda_.1} parent=1 // pred_check_branch
      %779 = sbr.rel (%p776) target = $region245
    $region244: #{_lambda_.1} parent=1 // pred_region
      %s794 = sand.u32 160, 7
      %p795 = scmp.eq.s32.totalorder %s794, 0
      // Predicated region
      $region257: #{_lambda_.1} parent=244 // pred_check
        %p796 = pneg %p795
      $region258: #{_lambda_.1} parent=244 // pred_check_branch
        %798 = sbr.rel (%p796) target = $region260
      $region259: #{_lambda_.1} parent=244 // pred_region
        loop: start=0, step=1, limit=1
        $region261: #{_lambda_.1} parent=259 // loop_pre_header
          _
        $region262: #{_lambda_.1} parent=259 // loop_header
          %s800 = sphi 0, %s804
          %p801 = scmp.ge.s32.totalorder %s800, 1
          %s805 = sphi %s15, %s15
          %s806 = sphi [#allocation8], [#allocation8]
        $region263: #{_lambda_.1} parent=259 // loop_header_branch
          %803 = sbr.rel (%p801) target = $region267
        $region264: #{_lambda_.1} parent=259 // loop_body
          %v807 = vld [vmem:[%s805] sm:$0xff]
          %808 = vst [vmem:[%s806] sm:$0xff] %v807
          %v809 = vld [vmem:[%s805 + $0x8] sm:$0xff]
          %810 = vst [vmem:[%s806 + $0x8] sm:$0xff] %v809
          %v811 = vld [vmem:[%s805 + $0x10] sm:$0xff]
          %812 = vst [vmem:[%s806 + $0x10] sm:$0xff] %v811
          %v813 = vld [vmem:[%s805 + $0x18] sm:$0xff]
          %814 = vst [vmem:[%s806 + $0x18] sm:$0xff] %v813
          %v815 = vld [vmem:[%s805 + $0x20] sm:$0xff]
          %816 = vst [vmem:[%s806 + $0x20] sm:$0xff] %v815
          %v817 = vld [vmem:[%s805 + $0x28] sm:$0xff]
          %818 = vst [vmem:[%s806 + $0x28] sm:$0xff] %v817
          %v819 = vld [vmem:[%s805 + $0x30] sm:$0xff]
          %820 = vst [vmem:[%s806 + $0x30] sm:$0xff] %v819
          %v821 = vld [vmem:[%s805 + $0x38] sm:$0xff]
          %822 = vst [vmem:[%s806 + $0x38] sm:$0xff] %v821
          %v823 = vld [vmem:[%s805 + $0x40] sm:$0xff]
          %824 = vst [vmem:[%s806 + $0x40] sm:$0xff] %v823
          %v825 = vld [vmem:[%s805 + $0x48] sm:$0xff]
          %826 = vst [vmem:[%s806 + $0x48] sm:$0xff] %v825
          %v827 = vld [vmem:[%s805 + $0x50] sm:$0xff]
          %828 = vst [vmem:[%s806 + $0x50] sm:$0xff] %v827
          %v829 = vld [vmem:[%s805 + $0x58] sm:$0xff]
          %830 = vst [vmem:[%s806 + $0x58] sm:$0xff] %v829
          %v831 = vld [vmem:[%s805 + $0x60] sm:$0xff]
          %832 = vst [vmem:[%s806 + $0x60] sm:$0xff] %v831
          %v833 = vld [vmem:[%s805 + $0x68] sm:$0xff]
          %834 = vst [vmem:[%s806 + $0x68] sm:$0xff] %v833
          %v835 = vld [vmem:[%s805 + $0x70] sm:$0xff]
          %836 = vst [vmem:[%s806 + $0x70] sm:$0xff] %v835
          %v837 = vld [vmem:[%s805 + $0x78] sm:$0xff]
          %838 = vst [vmem:[%s806 + $0x78] sm:$0xff] %v837
          %v839 = vld [vmem:[%s805 + $0x80] sm:$0xff]
          %840 = vst [vmem:[%s806 + $0x80] sm:$0xff] %v839
          %v841 = vld [vmem:[%s805 + $0x88] sm:$0xff]
          %842 = vst [vmem:[%s806 + $0x88] sm:$0xff] %v841
          %v843 = vld [vmem:[%s805 + $0x90] sm:$0xff]
          %844 = vst [vmem:[%s806 + $0x90] sm:$0xff] %v843
          %v845 = vld [vmem:[%s805 + $0x98] sm:$0xff]
          %846 = vst [vmem:[%s806 + $0x98] sm:$0xff] %v845
        $region265: #{_lambda_.1} parent=259 // loop_footer
          %s804 = sadd.s32 1, %s800
        $region266: #{_lambda_.1} parent=259 // loop_footer_branch
          %799 = sbr.rel target = $region262
        $region267: #{_lambda_.1} parent=259 // loop_exit
          _
      $region260: #{_lambda_.1} parent=244 // pred_fallthru
        _
      %p847 = pneg %p795
      // Predicated region
      $region268: #{_lambda_.1} parent=244 // pred_check
        _
      $region269: #{_lambda_.1} parent=244 // pred_check_branch
        %849 = sbr.rel (%p795) target = $region271
      $region270: #{_lambda_.1} parent=244 // pred_region
        %s850 = sand.u32 160, 7
      $region271: #{_lambda_.1} parent=244 // pred_fallthru
        _
    $region245: #{_lambda_.1} parent=1 // pred_fallthru
      _
    // Predicated region
    $region246: #{_lambda_.1} parent=1 // pred_check
      %p780 = pneg %p776
    $region247: #{_lambda_.1} parent=1 // pred_check_branch
      %782 = sbr.rel (%p780) target = $region249
    $region248: #{_lambda_.1} parent=1 // pred_region
      %s783 = sshllo.u32 0, 160
      loop: start=0, step=1, limit=1
      $region250: #{_lambda_.1} parent=248 // loop_pre_header
        _
      $region251: #{_lambda_.1} parent=248 // loop_header
        %s785 = sphi 0, %s789
        %p786 = scmp.ge.s32.totalorder %s785, 1
        %s790 = sphi %s15, %s15
        %s791 = sphi [#allocation8], [#allocation8]
      $region252: #{_lambda_.1} parent=248 // loop_header_branch
        %788 = sbr.rel (%p786) target = $region256
      $region253: #{_lambda_.1} parent=248 // loop_body
        %v792 = vld [vmem:[%s790] sm:%s783]
        %793 = vst [vmem:[%s791] sm:%s783] %v792
      $region254: #{_lambda_.1} parent=248 // loop_footer
        %s789 = sadd.s32 1, %s785
      $region255: #{_lambda_.1} parent=248 // loop_footer_branch
        %784 = sbr.rel target = $region251
      $region256: #{_lambda_.1} parent=248 // loop_exit
        _
    $region249: #{_lambda_.1} parent=1 // pred_fallthru
      _
    // Predicated region
    $region272: #{_lambda_.1} parent=1 // pred_check
      _
    $region273: #{_lambda_.1} parent=1 // pred_check_branch
      %853 = sbr.rel (0) target = $region275
    $region274: #{_lambda_.1} parent=1 // pred_region
      %854 = vsyncadd %s774, 2560
    $region275: #{_lambda_.1} parent=1 // pred_fallthru
      _
    %s855 = scalar_lea.sflag [#allocation10], 7
    %p857 = scmp.lt.u32.totalorder 128, 8
    %p858 = pneg %p857
    // Predicated region
    $region276: #{_lambda_.1} parent=1 // pred_check
      _
    $region277: #{_lambda_.1} parent=1 // pred_check_branch
      %860 = sbr.rel (%p857) target = $region279
    $region278: #{_lambda_.1} parent=1 // pred_region
      %s875 = sand.u32 128, 7
      %p876 = scmp.eq.s32.totalorder %s875, 0
      // Predicated region
      $region291: #{_lambda_.1} parent=278 // pred_check
        %p877 = pneg %p876
      $region292: #{_lambda_.1} parent=278 // pred_check_branch
        %879 = sbr.rel (%p877) target = $region294
      $region293: #{_lambda_.1} parent=278 // pred_region
        loop: start=0, step=1, limit=1
        $region295: #{_lambda_.1} parent=293 // loop_pre_header
          _
        $region296: #{_lambda_.1} parent=293 // loop_header
          %s881 = sphi 0, %s885
          %p882 = scmp.ge.s32.totalorder %s881, 1
          %s886 = sphi %s16, %s16
          %s887 = sphi [#allocation9], [#allocation9]
        $region297: #{_lambda_.1} parent=293 // loop_header_branch
          %884 = sbr.rel (%p882) target = $region301
        $region298: #{_lambda_.1} parent=293 // loop_body
          %v888 = vld [vmem:[%s886] sm:$0xff]
          %889 = vst [vmem:[%s887] sm:$0xff] %v888
          %v890 = vld [vmem:[%s886 + $0x8] sm:$0xff]
          %891 = vst [vmem:[%s887 + $0x8] sm:$0xff] %v890
          %v892 = vld [vmem:[%s886 + $0x10] sm:$0xff]
          %893 = vst [vmem:[%s887 + $0x10] sm:$0xff] %v892
          %v894 = vld [vmem:[%s886 + $0x18] sm:$0xff]
          %895 = vst [vmem:[%s887 + $0x18] sm:$0xff] %v894
          %v896 = vld [vmem:[%s886 + $0x20] sm:$0xff]
          %897 = vst [vmem:[%s887 + $0x20] sm:$0xff] %v896
          %v898 = vld [vmem:[%s886 + $0x28] sm:$0xff]
          %899 = vst [vmem:[%s887 + $0x28] sm:$0xff] %v898
          %v900 = vld [vmem:[%s886 + $0x30] sm:$0xff]
          %901 = vst [vmem:[%s887 + $0x30] sm:$0xff] %v900
          %v902 = vld [vmem:[%s886 + $0x38] sm:$0xff]
          %903 = vst [vmem:[%s887 + $0x38] sm:$0xff] %v902
          %v904 = vld [vmem:[%s886 + $0x40] sm:$0xff]
          %905 = vst [vmem:[%s887 + $0x40] sm:$0xff] %v904
          %v906 = vld [vmem:[%s886 + $0x48] sm:$0xff]
          %907 = vst [vmem:[%s887 + $0x48] sm:$0xff] %v906
          %v908 = vld [vmem:[%s886 + $0x50] sm:$0xff]
          %909 = vst [vmem:[%s887 + $0x50] sm:$0xff] %v908
          %v910 = vld [vmem:[%s886 + $0x58] sm:$0xff]
          %911 = vst [vmem:[%s887 + $0x58] sm:$0xff] %v910
          %v912 = vld [vmem:[%s886 + $0x60] sm:$0xff]
          %913 = vst [vmem:[%s887 + $0x60] sm:$0xff] %v912
          %v914 = vld [vmem:[%s886 + $0x68] sm:$0xff]
          %915 = vst [vmem:[%s887 + $0x68] sm:$0xff] %v914
          %v916 = vld [vmem:[%s886 + $0x70] sm:$0xff]
          %917 = vst [vmem:[%s887 + $0x70] sm:$0xff] %v916
          %v918 = vld [vmem:[%s886 + $0x78] sm:$0xff]
          %919 = vst [vmem:[%s887 + $0x78] sm:$0xff] %v918
        $region299: #{_lambda_.1} parent=293 // loop_footer
          %s885 = sadd.s32 1, %s881
        $region300: #{_lambda_.1} parent=293 // loop_footer_branch
          %880 = sbr.rel target = $region296
        $region301: #{_lambda_.1} parent=293 // loop_exit
          _
      $region294: #{_lambda_.1} parent=278 // pred_fallthru
        _
      %p920 = pneg %p876
      // Predicated region
      $region302: #{_lambda_.1} parent=278 // pred_check
        _
      $region303: #{_lambda_.1} parent=278 // pred_check_branch
        %922 = sbr.rel (%p876) target = $region305
      $region304: #{_lambda_.1} parent=278 // pred_region
        %s923 = sand.u32 128, 7
      $region305: #{_lambda_.1} parent=278 // pred_fallthru
        _
    $region279: #{_lambda_.1} parent=1 // pred_fallthru
      _
    // Predicated region
    $region280: #{_lambda_.1} parent=1 // pred_check
      %p861 = pneg %p857
    $region281: #{_lambda_.1} parent=1 // pred_check_branch
      %863 = sbr.rel (%p861) target = $region283
    $region282: #{_lambda_.1} parent=1 // pred_region
      %s864 = sshllo.u32 0, 128
      loop: start=0, step=1, limit=1
      $region284: #{_lambda_.1} parent=282 // loop_pre_header
        _
      $region285: #{_lambda_.1} parent=282 // loop_header
        %s866 = sphi 0, %s870
        %p867 = scmp.ge.s32.totalorder %s866, 1
        %s871 = sphi %s16, %s16
        %s872 = sphi [#allocation9], [#allocation9]
      $region286: #{_lambda_.1} parent=282 // loop_header_branch
        %869 = sbr.rel (%p867) target = $region290
      $region287: #{_lambda_.1} parent=282 // loop_body
        %v873 = vld [vmem:[%s871] sm:%s864]
        %874 = vst [vmem:[%s872] sm:%s864] %v873
      $region288: #{_lambda_.1} parent=282 // loop_footer
        %s870 = sadd.s32 1, %s866
      $region289: #{_lambda_.1} parent=282 // loop_footer_branch
        %865 = sbr.rel target = $region285
      $region290: #{_lambda_.1} parent=282 // loop_exit
        _
    $region283: #{_lambda_.1} parent=1 // pred_fallthru
      _
    // Predicated region
    $region306: #{_lambda_.1} parent=1 // pred_check
      _
    $region307: #{_lambda_.1} parent=1 // pred_check_branch
      %926 = sbr.rel (0) target = $region309
    $region308: #{_lambda_.1} parent=1 // pred_region
      %927 = vsyncadd %s855, 2048
    $region309: #{_lambda_.1} parent=1 // pred_fallthru
      _
    %v928 = vld [vmem:[%s0] sm:$0xff]
    %v929 = vld [vmem:[%s0 + $0x8] sm:$0xff]
    %v930 = vld [vmem:[%s0 + $0x10] sm:$0xff]
    %v931 = vld [vmem:[%s0 + $0x18] sm:$0xff]
    %v932 = vld [vmem:[%s0 + $0x20] sm:$0xff]
    %v933 = vld [vmem:[%s0 + $0x28] sm:$0xff]
    %v934 = vld [vmem:[%s0 + $0x30] sm:$0xff]
    %v935 = vld [vmem:[%s0 + $0x38] sm:$0xff]
    %v936 = vld [vmem:[%s0 + $0x40] sm:$0xff]
    %v937 = vld [vmem:[%s0 + $0x48] sm:$0xff]
    %v938 = vld [vmem:[%s0 + $0x50] sm:$0xff]
    %v939 = vld [vmem:[%s0 + $0x58] sm:$0xff]
    %v940 = vld [vmem:[%s0 + $0x60] sm:$0xff]
    %v941 = vld [vmem:[%s0 + $0x68] sm:$0xff]
    %v942 = vld [vmem:[%s0 + $0x70] sm:$0xff]
    %v943 = vld [vmem:[%s0 + $0x78] sm:$0xff]
    %v944 = vld [vmem:[%s0 + $0x80] sm:$0xff]
    %v945 = vld [vmem:[%s0 + $0x88] sm:$0xff]
    %v946 = vld [vmem:[%s0 + $0x90] sm:$0xff]
    %v947 = vld [vmem:[%s0 + $0x98] sm:$0xff]
    %v948 = vld [vmem:[%s0 + $0xa0] sm:$0xff]
    %v949 = vld [vmem:[%s0 + $0xa8] sm:$0xff]
    %v950 = vld [vmem:[%s0 + $0xb0] sm:$0xff]
    %v951 = vld [vmem:[%s0 + $0xb8] sm:$0xff]
    %v952 = vld [vmem:[%s0 + $0xc0] sm:$0xff]
    %v953 = vld [vmem:[%s0 + $0xc8] sm:$0xff]
    %v954 = vld [vmem:[%s0 + $0xd0] sm:$0xff]
    %v955 = vld [vmem:[%s0 + $0xd8] sm:$0xff]
    %v956 = vld [vmem:[%s0 + $0xe0] sm:$0xff]
    %v957 = vld [vmem:[%s0 + $0xe8] sm:$0xff]
    %v958 = vld [vmem:[%s0 + $0xf0] sm:$0xff]
    %v959 = vld [vmem:[%s0 + $0xf8] sm:$0xff]
    %v960 = vld [vmem:[%s0 + $0x100] sm:$0xff]
    %v961 = vld [vmem:[%s0 + $0x108] sm:$0xff]
    %v962 = vld [vmem:[%s0 + $0x110] sm:$0xff]
    %v963 = vld [vmem:[%s0 + $0x118] sm:$0xff]
    %v964 = vld [vmem:[%s0 + $0x120] sm:$0xff]
    %v965 = vld [vmem:[%s0 + $0x128] sm:$0xff]
    %v966 = vld [vmem:[%s0 + $0x130] sm:$0xff]
    %v967 = vld [vmem:[%s0 + $0x138] sm:$0xff]
    %v968 = vld [vmem:[%s0 + $0x140] sm:$0xff]
    %v969 = vld [vmem:[%s0 + $0x148] sm:$0xff]
    %v970 = vld [vmem:[%s0 + $0x150] sm:$0xff]
    %v971 = vld [vmem:[%s0 + $0x158] sm:$0xff]
    %v972 = vld [vmem:[%s0 + $0x160] sm:$0xff]
    %v973 = vld [vmem:[%s0 + $0x168] sm:$0xff]
    %v974 = vld [vmem:[%s0 + $0x170] sm:$0xff]
    %v975 = vld [vmem:[%s0 + $0x178] sm:$0xff]
    %v976 = vld [vmem:[%s0 + $0x180] sm:$0xff]
    %v977 = vld [vmem:[%s0 + $0x188] sm:$0xff]
    %v978 = vld [vmem:[%s0 + $0x190] sm:$0xff]
    %v979 = vld [vmem:[%s0 + $0x198] sm:$0xff]
    %v980 = vld [vmem:[%s0 + $0x1a0] sm:$0xff]
    %v981 = vld [vmem:[%s0 + $0x1a8] sm:$0xff]
    %v982 = vld [vmem:[%s1] sm:$0xff]
    %v983 = vld [vmem:[%s1 + $0x8] sm:$0xff]
    %v984 = vld [vmem:[%s1 + $0x10] sm:$0xff]
    %v985 = vld [vmem:[%s1 + $0x18] sm:$0xff]
    %v986 = vld [vmem:[%s1 + $0x20] sm:$0xff]
    %v987 = vld [vmem:[%s1 + $0x28] sm:$0xff]
    %v988 = vld [vmem:[%s1 + $0x30] sm:$0xff]
    %v989 = vld [vmem:[%s1 + $0x38] sm:$0xff]
    %v990 = vld [vmem:[%s1 + $0x40] sm:$0xff]
    %v991 = vld [vmem:[%s1 + $0x48] sm:$0xff]
    %v992 = vld [vmem:[%s1 + $0x50] sm:$0xff]
    %v993 = vld [vmem:[%s1 + $0x58] sm:$0xff]
    %v994 = vld [vmem:[%s1 + $0x60] sm:$0xff]
    %v995 = vld [vmem:[%s1 + $0x68] sm:$0xff]
    %v996 = vld [vmem:[%s1 + $0x70] sm:$0xff]
    %v997 = vld [vmem:[%s1 + $0x78] sm:$0xff]
    %v998 = vld [vmem:[%s1 + $0x80] sm:$0xff]
    %v999 = vld [vmem:[%s1 + $0x88] sm:$0xff]
    %v1000 = vld [vmem:[%s1 + $0x90] sm:$0xff]
    %v1001 = vld [vmem:[%s1 + $0x98] sm:$0xff]
    %v1002 = vld [vmem:[%s1 + $0xa0] sm:$0xff]
    %v1003 = vld [vmem:[%s1 + $0xa8] sm:$0xff]
    %v1004 = vld [vmem:[%s1 + $0xb0] sm:$0xff]
    %v1005 = vld [vmem:[%s1 + $0xb8] sm:$0xff]
    %v1006 = vld [vmem:[%s1 + $0xc0] sm:$0xff]
    %v1007 = vld [vmem:[%s1 + $0xc8] sm:$0xff]
    %v1008 = vld [vmem:[%s1 + $0xd0] sm:$0xff]
    %v1009 = vld [vmem:[%s1 + $0xd8] sm:$0xff]
    %v1010 = vld [vmem:[%s1 + $0xe0] sm:$0xff]
    %v1011 = vld [vmem:[%s1 + $0xe8] sm:$0xff]
    %v1012 = vld [vmem:[%s1 + $0xf0] sm:$0xff]
    %v1013 = vld [vmem:[%s1 + $0xf8] sm:$0xff]
    %v1014 = vld [vmem:[%s1 + $0x100] sm:$0xff]
    %v1015 = vld [vmem:[%s1 + $0x108] sm:$0xff]
    %v1016 = vld [vmem:[%s1 + $0x110] sm:$0xff]
    %v1017 = vld [vmem:[%s1 + $0x118] sm:$0xff]
    %v1018 = vld [vmem:[%s1 + $0x120] sm:$0xff]
    %v1019 = vld [vmem:[%s1 + $0x128] sm:$0xff]
    %v1020 = vld [vmem:[%s1 + $0x130] sm:$0xff]
    %v1021 = vld [vmem:[%s1 + $0x138] sm:$0xff]
    %v1022 = vld [vmem:[%s1 + $0x140] sm:$0xff]
    %v1023 = vld [vmem:[%s1 + $0x148] sm:$0xff]
    %v1024 = vld [vmem:[%s1 + $0x150] sm:$0xff]
    %v1025 = vld [vmem:[%s1 + $0x158] sm:$0xff]
    %v1026 = vld [vmem:[%s1 + $0x160] sm:$0xff]
    %v1027 = vld [vmem:[%s1 + $0x168] sm:$0xff]
    %v1028 = vld [vmem:[%s1 + $0x170] sm:$0xff]
    %v1029 = vld [vmem:[%s1 + $0x178] sm:$0xff]
    %v1030 = vld [vmem:[%s1 + $0x180] sm:$0xff]
    %v1031 = vld [vmem:[%s1 + $0x188] sm:$0xff]
    %v1032 = vld [vmem:[%s1 + $0x190] sm:$0xff]
    %v1033 = vld [vmem:[%s1 + $0x198] sm:$0xff]
    %v1034 = vld [vmem:[%s1 + $0x1a0] sm:$0xff]
    %v1035 = vld [vmem:[%s1 + $0x1a8] sm:$0xff]
    %v1036 = vld [vmem:[%s1 + $0x1b0] sm:$0xff]
    %v1037 = vld [vmem:[%s1 + $0x1b8] sm:$0xff]
    %v1038 = vld [vmem:[%s1 + $0x1c0] sm:$0xff]
    %v1039 = vld [vmem:[%s1 + $0x1c8] sm:$0xff]
    %v1040 = vld [vmem:[%s1 + $0x1d0] sm:$0xff]
    %v1041 = vld [vmem:[%s1 + $0x1d8] sm:$0xff]
    %v1042 = vld [vmem:[%s1 + $0x1e0] sm:$0xff]
    %v1043 = vld [vmem:[%s1 + $0x1e8] sm:$0xff]
    %v1044 = vld [vmem:[%s1 + $0x1f0] sm:$0xff]
    %v1045 = vld [vmem:[%s1 + $0x1f8] sm:$0xff]
    %v1046 = vld [vmem:[%s1 + $0x200] sm:$0xff]
    %v1047 = vld [vmem:[%s1 + $0x208] sm:$0xff]
    %v1048 = vld [vmem:[%s1 + $0x210] sm:$0xff]
    %v1049 = vld [vmem:[%s1 + $0x218] sm:$0xff]
    %v1050 = vld [vmem:[%s1 + $0x220] sm:$0xff]
    %v1051 = vld [vmem:[%s1 + $0x228] sm:$0xff]
    %v1052 = vld [vmem:[%s1 + $0x230] sm:$0xff]
    %v1053 = vld [vmem:[%s1 + $0x238] sm:$0xff]
    %v1054 = vld [vmem:[%s1 + $0x240] sm:$0xff]
    %v1055 = vld [vmem:[%s1 + $0x248] sm:$0xff]
    %v1056 = vld [vmem:[%s1 + $0x250] sm:$0xff]
    %v1057 = vld [vmem:[%s1 + $0x258] sm:$0xff]
    %v1058 = vld [vmem:[%s1 + $0x260] sm:$0xff]
    %v1059 = vld [vmem:[%s1 + $0x268] sm:$0xff]
    %v1060 = vld [vmem:[%s1 + $0x270] sm:$0xff]
    %v1061 = vld [vmem:[%s1 + $0x278] sm:$0xff]
    %v1062 = vld [vmem:[%s1 + $0x280] sm:$0xff]
    %v1063 = vld [vmem:[%s1 + $0x288] sm:$0xff]
    %v1064 = vld [vmem:[%s1 + $0x290] sm:$0xff]
    %v1065 = vld [vmem:[%s1 + $0x298] sm:$0xff]
    %v1066 = vld [vmem:[%s1 + $0x2a0] sm:$0xff]
    %v1067 = vld [vmem:[%s1 + $0x2a8] sm:$0xff]
    %v1068 = vld [vmem:[%s1 + $0x2b0] sm:$0xff]
    %v1069 = vld [vmem:[%s1 + $0x2b8] sm:$0xff]
    %v1070 = vld [vmem:[%s1 + $0x2c0] sm:$0xff]
    %v1071 = vld [vmem:[%s1 + $0x2c8] sm:$0xff]
    %v1072 = vld [vmem:[%s1 + $0x2d0] sm:$0xff]
    %v1073 = vld [vmem:[%s1 + $0x2d8] sm:$0xff]
    %v1074 = vld [vmem:[%s1 + $0x2e0] sm:$0xff]
    %v1075 = vld [vmem:[%s1 + $0x2e8] sm:$0xff]
    %v1076 = vld [vmem:[%s1 + $0x2f0] sm:$0xff]
    %v1077 = vld [vmem:[%s1 + $0x2f8] sm:$0xff]
    %v1078 = vld [vmem:[%s1 + $0x300] sm:$0xff]
    %v1079 = vld [vmem:[%s1 + $0x308] sm:$0xff]
    %v1080 = vld [vmem:[%s1 + $0x310] sm:$0xff]
    %v1081 = vld [vmem:[%s1 + $0x318] sm:$0xff]
    %v1082 = vld [vmem:[%s1 + $0x320] sm:$0xff]
    %v1083 = vld [vmem:[%s1 + $0x328] sm:$0xff]
    %v1084 = vld [vmem:[%s1 + $0x330] sm:$0xff]
    %v1085 = vld [vmem:[%s1 + $0x338] sm:$0xff]
    %v1086 = vld [vmem:[%s1 + $0x340] sm:$0xff]
    %v1087 = vld [vmem:[%s1 + $0x348] sm:$0xff]
    %v1088 = vld [vmem:[%s1 + $0x350] sm:$0xff]
    %v1089 = vld [vmem:[%s1 + $0x358] sm:$0xff]
    %v1090 = vld [vmem:[%s1 + $0x360] sm:$0xff]
    %v1091 = vld [vmem:[%s1 + $0x368] sm:$0xff]
    %v1092 = vld [vmem:[%s1 + $0x370] sm:$0xff]
    %v1093 = vld [vmem:[%s1 + $0x378] sm:$0xff]
    %v1094 = vld [vmem:[%s1 + $0x380] sm:$0xff]
    %v1095 = vld [vmem:[%s1 + $0x388] sm:$0xff]
    %v1096 = vld [vmem:[%s1 + $0x390] sm:$0xff]
    %v1097 = vld [vmem:[%s1 + $0x398] sm:$0xff]
    %v1098 = vld [vmem:[%s1 + $0x3a0] sm:$0xff]
    %v1099 = vld [vmem:[%s1 + $0x3a8] sm:$0xff]
    %v1100 = vld [vmem:[%s1 + $0x3b0] sm:$0xff]
    %v1101 = vld [vmem:[%s1 + $0x3b8] sm:$0xff]
    %v1102 = vld [vmem:[%s1 + $0x3c0] sm:$0xff]
    %v1103 = vld [vmem:[%s1 + $0x3c8] sm:$0xff]
    %v1104 = vld [vmem:[%s1 + $0x3d0] sm:$0xff]
    %v1105 = vld [vmem:[%s1 + $0x3d8] sm:$0xff]
    %v1106 = vld [vmem:[%s1 + $0x3e0] sm:$0xff]
    %v1107 = vld [vmem:[%s1 + $0x3e8] sm:$0xff]
    %v1108 = vld [vmem:[%s1 + $0x3f0] sm:$0xff]
    %v1109 = vld [vmem:[%s1 + $0x3f8] sm:$0xff]
    %v1110 = vld [vmem:[%s1 + $0x400] sm:$0xff]
    %v1111 = vld [vmem:[%s1 + $0x408] sm:$0xff]
    %v1112 = vld [vmem:[%s1 + $0x410] sm:$0xff]
    %v1113 = vld [vmem:[%s1 + $0x418] sm:$0xff]
    %v1114 = vld [vmem:[%s1 + $0x420] sm:$0xff]
    %v1115 = vld [vmem:[%s1 + $0x428] sm:$0xff]
    %v1116 = vld [vmem:[%s1 + $0x430] sm:$0xff]
    %v1117 = vld [vmem:[%s1 + $0x438] sm:$0xff]
    %v1118 = vld [vmem:[%s1 + $0x440] sm:$0xff]
    %v1119 = vld [vmem:[%s1 + $0x448] sm:$0xff]
    %v1120 = vld [vmem:[%s1 + $0x450] sm:$0xff]
    %v1121 = vld [vmem:[%s1 + $0x458] sm:$0xff]
    %v1122 = vld [vmem:[%s1 + $0x460] sm:$0xff]
    %v1123 = vld [vmem:[%s1 + $0x468] sm:$0xff]
    %v1124 = vld [vmem:[%s1 + $0x470] sm:$0xff]
    %v1125 = vld [vmem:[%s1 + $0x478] sm:$0xff]
    %v1126 = vld [vmem:[%s1 + $0x480] sm:$0xff]
    %v1127 = vld [vmem:[%s1 + $0x488] sm:$0xff]
    %v1128 = vld [vmem:[%s1 + $0x490] sm:$0xff]
    %v1129 = vld [vmem:[%s1 + $0x498] sm:$0xff]
    %v1130 = vld [vmem:[%s1 + $0x4a0] sm:$0xff]
    %v1131 = vld [vmem:[%s1 + $0x4a8] sm:$0xff]
    %v1132 = vld [vmem:[%s1 + $0x4b0] sm:$0xff]
    %v1133 = vld [vmem:[%s1 + $0x4b8] sm:$0xff]
    %v1134 = vld [vmem:[%s1 + $0x4c0] sm:$0xff]
    %v1135 = vld [vmem:[%s1 + $0x4c8] sm:$0xff]
    %v1136 = vld [vmem:[%s1 + $0x4d0] sm:$0xff]
    %v1137 = vld [vmem:[%s1 + $0x4d8] sm:$0xff]
    %v1138 = vld [vmem:[%s1 + $0x4e0] sm:$0xff]
    %v1139 = vld [vmem:[%s1 + $0x4e8] sm:$0xff]
    %v1140 = vld [vmem:[%s1 + $0x4f0] sm:$0xff]
    %v1141 = vld [vmem:[%s1 + $0x4f8] sm:$0xff]
    %v1142 = vld [vmem:[%s1 + $0x500] sm:$0xff]
    %v1143 = vld [vmem:[%s1 + $0x508] sm:$0xff]
    %v1144 = vld [vmem:[%s1 + $0x510] sm:$0xff]
    %v1145 = vld [vmem:[%s1 + $0x518] sm:$0xff]
    %v1146 = vld [vmem:[%s1 + $0x520] sm:$0xff]
    %v1147 = vld [vmem:[%s1 + $0x528] sm:$0xff]
    %v1148 = vld [vmem:[%s1 + $0x530] sm:$0xff]
    %v1149 = vld [vmem:[%s1 + $0x538] sm:$0xff]
    %v1150 = vld [vmem:[%s1 + $0x540] sm:$0xff]
    %v1151 = vld [vmem:[%s1 + $0x548] sm:$0xff]
    %v1152 = vld [vmem:[%s1 + $0x550] sm:$0xff]
    %v1153 = vld [vmem:[%s1 + $0x558] sm:$0xff]
    %v1154 = vld [vmem:[%s1 + $0x560] sm:$0xff]
    %v1155 = vld [vmem:[%s1 + $0x568] sm:$0xff]
    %v1156 = vld [vmem:[%s1 + $0x570] sm:$0xff]
    %v1157 = vld [vmem:[%s1 + $0x578] sm:$0xff]
    %v1158 = vld [vmem:[%s1 + $0x580] sm:$0xff]
    %v1159 = vld [vmem:[%s1 + $0x588] sm:$0xff]
    %v1160 = vld [vmem:[%s1 + $0x590] sm:$0xff]
    %v1161 = vld [vmem:[%s1 + $0x598] sm:$0xff]
    %v1162 = vld [vmem:[%s1 + $0x5a0] sm:$0xff]
    %v1163 = vld [vmem:[%s1 + $0x5a8] sm:$0xff]
    %v1164 = vld [vmem:[%s1 + $0x5b0] sm:$0xff]
    %v1165 = vld [vmem:[%s1 + $0x5b8] sm:$0xff]
    %v1166 = vld [vmem:[%s1 + $0x5c0] sm:$0xff]
    %v1167 = vld [vmem:[%s1 + $0x5c8] sm:$0xff]
    %v1168 = vld [vmem:[%s1 + $0x5d0] sm:$0xff]
    %v1169 = vld [vmem:[%s1 + $0x5d8] sm:$0xff]
    %v1170 = vld [vmem:[%s1 + $0x5e0] sm:$0xff]
    %v1171 = vld [vmem:[%s1 + $0x5e8] sm:$0xff]
    %v1172 = vld [vmem:[%s1 + $0x5f0] sm:$0xff]
    %v1173 = vld [vmem:[%s1 + $0x5f8] sm:$0xff]
    %v1174 = vld [vmem:[%s1 + $0x600] sm:$0xff]
    %v1175 = vld [vmem:[%s1 + $0x608] sm:$0xff]
    %v1176 = vld [vmem:[%s1 + $0x610] sm:$0xff]
    %v1177 = vld [vmem:[%s1 + $0x618] sm:$0xff]
    %v1178 = vld [vmem:[%s1 + $0x620] sm:$0xff]
    %v1179 = vld [vmem:[%s1 + $0x628] sm:$0xff]
    %v1180 = vld [vmem:[%s1 + $0x630] sm:$0xff]
    %v1181 = vld [vmem:[%s1 + $0x638] sm:$0xff]
    %v1182 = vld [vmem:[%s1 + $0x640] sm:$0xff]
    %v1183 = vld [vmem:[%s1 + $0x648] sm:$0xff]
    %v1184 = vld [vmem:[%s1 + $0x650] sm:$0xff]
    %v1185 = vld [vmem:[%s1 + $0x658] sm:$0xff]
    %v1186 = vld [vmem:[%s1 + $0x660] sm:$0xff]
    %v1187 = vld [vmem:[%s1 + $0x668] sm:$0xff]
    %v1188 = vld [vmem:[%s1 + $0x670] sm:$0xff]
    %v1189 = vld [vmem:[%s1 + $0x678] sm:$0xff]
    %v1190 = vld [vmem:[%s1 + $0x680] sm:$0xff]
    %v1191 = vld [vmem:[%s1 + $0x688] sm:$0xff]
    %v1192 = vld [vmem:[%s1 + $0x690] sm:$0xff]
    %v1193 = vld [vmem:[%s1 + $0x698] sm:$0xff]
    %v1194 = vld [vmem:[%s1 + $0x6a0] sm:$0xff]
    %v1195 = vld [vmem:[%s1 + $0x6a8] sm:$0xff]
    %v1196 = vld [vmem:[%s1 + $0x6b0] sm:$0xff]
    %v1197 = vld [vmem:[%s1 + $0x6b8] sm:$0xff]
    %v1198 = vld [vmem:[%s1 + $0x6c0] sm:$0xff]
    %v1199 = vld [vmem:[%s1 + $0x6c8] sm:$0xff]
    %v1200 = vld [vmem:[%s1 + $0x6d0] sm:$0xff]
    %v1201 = vld [vmem:[%s1 + $0x6d8] sm:$0xff]
    %v1202 = vld [vmem:[%s1 + $0x6e0] sm:$0xff]
    %v1203 = vld [vmem:[%s1 + $0x6e8] sm:$0xff]
    %v1204 = vld [vmem:[%s1 + $0x6f0] sm:$0xff]
    %v1205 = vld [vmem:[%s1 + $0x6f8] sm:$0xff]
    %v1206 = vld [vmem:[%s1 + $0x700] sm:$0xff]
    %v1207 = vld [vmem:[%s1 + $0x708] sm:$0xff]
    %v1208 = vld [vmem:[%s1 + $0x710] sm:$0xff]
    %v1209 = vld [vmem:[%s1 + $0x718] sm:$0xff]
    %v1210 = vld [vmem:[%s1 + $0x720] sm:$0xff]
    %v1211 = vld [vmem:[%s1 + $0x728] sm:$0xff]
    %v1212 = vld [vmem:[%s1 + $0x730] sm:$0xff]
    %v1213 = vld [vmem:[%s1 + $0x738] sm:$0xff]
    %v1214 = vld [vmem:[%s1 + $0x740] sm:$0xff]
    %v1215 = vld [vmem:[%s1 + $0x748] sm:$0xff]
    %v1216 = vld [vmem:[%s1 + $0x750] sm:$0xff]
    %v1217 = vld [vmem:[%s1 + $0x758] sm:$0xff]
    %v1218 = vld [vmem:[%s1 + $0x760] sm:$0xff]
    %v1219 = vld [vmem:[%s1 + $0x768] sm:$0xff]
    %v1220 = vld [vmem:[%s1 + $0x770] sm:$0xff]
    %v1221 = vld [vmem:[%s1 + $0x778] sm:$0xff]
    %v1222 = vld [vmem:[%s1 + $0x780] sm:$0xff]
    %v1223 = vld [vmem:[%s1 + $0x788] sm:$0xff]
    %v1224 = vld [vmem:[%s1 + $0x790] sm:$0xff]
    %v1225 = vld [vmem:[%s1 + $0x798] sm:$0xff]
    %v1226 = vld [vmem:[%s1 + $0x7a0] sm:$0xff]
    %v1227 = vld [vmem:[%s1 + $0x7a8] sm:$0xff]
    %v1228 = vld [vmem:[%s1 + $0x7b0] sm:$0xff]
    %v1229 = vld [vmem:[%s1 + $0x7b8] sm:$0xff]
    %v1230 = vld [vmem:[%s1 + $0x7c0] sm:$0xff]
    %v1231 = vld [vmem:[%s1 + $0x7c8] sm:$0xff]
    %v1232 = vld [vmem:[%s1 + $0x7d0] sm:$0xff]
    %v1233 = vld [vmem:[%s1 + $0x7d8] sm:$0xff]
    %v1234 = vld [vmem:[%s1 + $0x7e0] sm:$0xff]
    %v1235 = vld [vmem:[%s1 + $0x7e8] sm:$0xff]
    %v1236 = vld [vmem:[%s1 + $0x7f0] sm:$0xff]
    %v1237 = vld [vmem:[%s1 + $0x7f8] sm:$0xff]
    %v1238 = vld [vmem:[%s1 + $0x800] sm:$0xff]
    %v1239 = vld [vmem:[%s1 + $0x808] sm:$0xff]
    %v1240 = vld [vmem:[%s1 + $0x810] sm:$0xff]
    %v1241 = vld [vmem:[%s1 + $0x818] sm:$0xff]
    %v1242 = vld [vmem:[%s1 + $0x820] sm:$0xff]
    %v1243 = vld [vmem:[%s1 + $0x828] sm:$0xff]
    %v1244 = vld [vmem:[%s1 + $0x830] sm:$0xff]
    %v1245 = vld [vmem:[%s1 + $0x838] sm:$0xff]
    %v1246 = vld [vmem:[%s1 + $0x840] sm:$0xff]
    %v1247 = vld [vmem:[%s1 + $0x848] sm:$0xff]
    %v1248 = vld [vmem:[%s1 + $0x850] sm:$0xff]
    %v1249 = vld [vmem:[%s1 + $0x858] sm:$0xff]
    %v1250 = vld [vmem:[%s1 + $0x860] sm:$0xff]
    %v1251 = vld [vmem:[%s1 + $0x868] sm:$0xff]
    %v1252 = vld [vmem:[%s1 + $0x870] sm:$0xff]
    %v1253 = vld [vmem:[%s1 + $0x878] sm:$0xff]
    %v1254 = vld [vmem:[%s1 + $0x880] sm:$0xff]
    %v1255 = vld [vmem:[%s1 + $0x888] sm:$0xff]
    %v1256 = vld [vmem:[%s1 + $0x890] sm:$0xff]
    %v1257 = vld [vmem:[%s1 + $0x898] sm:$0xff]
    %v1258 = vld [vmem:[%s1 + $0x8a0] sm:$0xff]
    %v1259 = vld [vmem:[%s1 + $0x8a8] sm:$0xff]
    %v1260 = vld [vmem:[%s1 + $0x8b0] sm:$0xff]
    %v1261 = vld [vmem:[%s1 + $0x8b8] sm:$0xff]
    %v1262 = vld [vmem:[%s1 + $0x8c0] sm:$0xff]
    %v1263 = vld [vmem:[%s1 + $0x8c8] sm:$0xff]
    %v1264 = vld [vmem:[%s1 + $0x8d0] sm:$0xff]
    %v1265 = vld [vmem:[%s1 + $0x8d8] sm:$0xff]
    %v1266 = vld [vmem:[%s1 + $0x8e0] sm:$0xff]
    %v1267 = vld [vmem:[%s1 + $0x8e8] sm:$0xff]
    %v1268 = vld [vmem:[%s1 + $0x8f0] sm:$0xff]
    %v1269 = vld [vmem:[%s1 + $0x8f8] sm:$0xff]
    %v1270 = vld [vmem:[%s1 + $0x900] sm:$0xff]
    %v1271 = vld [vmem:[%s1 + $0x908] sm:$0xff]
    %v1272 = vld [vmem:[%s1 + $0x910] sm:$0xff]
    %v1273 = vld [vmem:[%s1 + $0x918] sm:$0xff]
    %v1274 = vld [vmem:[%s1 + $0x920] sm:$0xff]
    %v1275 = vld [vmem:[%s1 + $0x928] sm:$0xff]
    %v1276 = vld [vmem:[%s1 + $0x930] sm:$0xff]
    %v1277 = vld [vmem:[%s1 + $0x938] sm:$0xff]
    %v1278 = vld [vmem:[%s1 + $0x940] sm:$0xff]
    %v1279 = vld [vmem:[%s1 + $0x948] sm:$0xff]
    %v1280 = vld [vmem:[%s1 + $0x950] sm:$0xff]
    %v1281 = vld [vmem:[%s1 + $0x958] sm:$0xff]
    %v1282 = vld [vmem:[%s1 + $0x960] sm:$0xff]
    %v1283 = vld [vmem:[%s1 + $0x968] sm:$0xff]
    %v1284 = vld [vmem:[%s1 + $0x970] sm:$0xff]
    %v1285 = vld [vmem:[%s1 + $0x978] sm:$0xff]
    %v1286 = vld [vmem:[%s1 + $0x980] sm:$0xff]
    %v1287 = vld [vmem:[%s1 + $0x988] sm:$0xff]
    %v1288 = vld [vmem:[%s1 + $0x990] sm:$0xff]
    %v1289 = vld [vmem:[%s1 + $0x998] sm:$0xff]
    %v1290 = vld [vmem:[%s1 + $0x9a0] sm:$0xff]
    %v1291 = vld [vmem:[%s1 + $0x9a8] sm:$0xff]
    %v1292 = vld [vmem:[%s1 + $0x9b0] sm:$0xff]
    %v1293 = vld [vmem:[%s1 + $0x9b8] sm:$0xff]
    %v1294 = vld [vmem:[%s1 + $0x9c0] sm:$0xff]
    %v1295 = vld [vmem:[%s1 + $0x9c8] sm:$0xff]
    %v1296 = vld [vmem:[%s1 + $0x9d0] sm:$0xff]
    %v1297 = vld [vmem:[%s1 + $0x9d8] sm:$0xff]
    %v1298 = vld [vmem:[%s1 + $0x9e0] sm:$0xff]
    %v1299 = vld [vmem:[%s1 + $0x9e8] sm:$0xff]
    %v1300 = vld [vmem:[%s1 + $0x9f0] sm:$0xff]
    %v1301 = vld [vmem:[%s1 + $0x9f8] sm:$0xff]
    %v1302 = vld [vmem:[%s1 + $0xa00] sm:$0xff]
    %v1303 = vld [vmem:[%s1 + $0xa08] sm:$0xff]
    %v1304 = vld [vmem:[%s1 + $0xa10] sm:$0xff]
    %v1305 = vld [vmem:[%s1 + $0xa18] sm:$0xff]
    %v1306 = vld [vmem:[%s1 + $0xa20] sm:$0xff]
    %v1307 = vld [vmem:[%s1 + $0xa28] sm:$0xff]
    %v1308 = vld [vmem:[%s1 + $0xa30] sm:$0xff]
    %v1309 = vld [vmem:[%s1 + $0xa38] sm:$0xff]
    %v1310 = vld [vmem:[%s1 + $0xa40] sm:$0xff]
    %v1311 = vld [vmem:[%s1 + $0xa48] sm:$0xff]
    %v1312 = vld [vmem:[%s1 + $0xa50] sm:$0xff]
    %v1313 = vld [vmem:[%s1 + $0xa58] sm:$0xff]
    %v1314 = vld [vmem:[%s1 + $0xa60] sm:$0xff]
    %v1315 = vld [vmem:[%s1 + $0xa68] sm:$0xff]
    %v1316 = vld [vmem:[%s1 + $0xa70] sm:$0xff]
    %v1317 = vld [vmem:[%s1 + $0xa78] sm:$0xff]
    %v1318 = vld [vmem:[%s1 + $0xa80] sm:$0xff]
    %v1319 = vld [vmem:[%s1 + $0xa88] sm:$0xff]
    %v1320 = vld [vmem:[%s1 + $0xa90] sm:$0xff]
    %v1321 = vld [vmem:[%s1 + $0xa98] sm:$0xff]
    %v1322 = vld [vmem:[%s1 + $0xaa0] sm:$0xff]
    %v1323 = vld [vmem:[%s1 + $0xaa8] sm:$0xff]
    %v1324 = vld [vmem:[%s1 + $0xab0] sm:$0xff]
    %v1325 = vld [vmem:[%s1 + $0xab8] sm:$0xff]
    %v1326 = vld [vmem:[%s1 + $0xac0] sm:$0xff]
    %v1327 = vld [vmem:[%s1 + $0xac8] sm:$0xff]
    %v1328 = vld [vmem:[%s1 + $0xad0] sm:$0xff]
    %v1329 = vld [vmem:[%s1 + $0xad8] sm:$0xff]
    %v1330 = vld [vmem:[%s1 + $0xae0] sm:$0xff]
    %v1331 = vld [vmem:[%s1 + $0xae8] sm:$0xff]
    %v1332 = vld [vmem:[%s1 + $0xaf0] sm:$0xff]
    %v1333 = vld [vmem:[%s1 + $0xaf8] sm:$0xff]
    %v1334 = vld [vmem:[%s1 + $0xb00] sm:$0xff]
    %v1335 = vld [vmem:[%s1 + $0xb08] sm:$0xff]
    %v1336 = vld [vmem:[%s1 + $0xb10] sm:$0xff]
    %v1337 = vld [vmem:[%s1 + $0xb18] sm:$0xff]
    %v1338 = vld [vmem:[%s1 + $0xb20] sm:$0xff]
    %v1339 = vld [vmem:[%s1 + $0xb28] sm:$0xff]
    %v1340 = vld [vmem:[%s1 + $0xb30] sm:$0xff]
    %v1341 = vld [vmem:[%s1 + $0xb38] sm:$0xff]
    %v1342 = vld [vmem:[%s1 + $0xb40] sm:$0xff]
    %v1343 = vld [vmem:[%s1 + $0xb48] sm:$0xff]
    %v1344 = vld [vmem:[%s1 + $0xb50] sm:$0xff]
    %v1345 = vld [vmem:[%s1 + $0xb58] sm:$0xff]
    %v1346 = vld [vmem:[%s1 + $0xb60] sm:$0xff]
    %v1347 = vld [vmem:[%s1 + $0xb68] sm:$0xff]
    %v1348 = vld [vmem:[%s1 + $0xb70] sm:$0xff]
    %v1349 = vld [vmem:[%s1 + $0xb78] sm:$0xff]
    %v1350 = vld [vmem:[%s1 + $0xb80] sm:$0xff]
    %v1351 = vld [vmem:[%s1 + $0xb88] sm:$0xff]
    %v1352 = vld [vmem:[%s1 + $0xb90] sm:$0xff]
    %v1353 = vld [vmem:[%s1 + $0xb98] sm:$0xff]
    %v1354 = vld [vmem:[%s1 + $0xba0] sm:$0xff]
    %v1355 = vld [vmem:[%s1 + $0xba8] sm:$0xff]
    %v1356 = vld [vmem:[%s1 + $0xbb0] sm:$0xff]
    %v1357 = vld [vmem:[%s1 + $0xbb8] sm:$0xff]
    %v1358 = vld [vmem:[%s1 + $0xbc0] sm:$0xff]
    %v1359 = vld [vmem:[%s1 + $0xbc8] sm:$0xff]
    %v1360 = vld [vmem:[%s1 + $0xbd0] sm:$0xff]
    %v1361 = vld [vmem:[%s1 + $0xbd8] sm:$0xff]
    %v1362 = vld [vmem:[%s1 + $0xbe0] sm:$0xff]
    %v1363 = vld [vmem:[%s1 + $0xbe8] sm:$0xff]
    %v1364 = vld [vmem:[%s1 + $0xbf0] sm:$0xff]
    %v1365 = vld [vmem:[%s1 + $0xbf8] sm:$0xff]
    %v1366 = vld [vmem:[%s1 + $0xc00] sm:$0xff]
    %v1367 = vld [vmem:[%s1 + $0xc08] sm:$0xff]
    %v1368 = vld [vmem:[%s1 + $0xc10] sm:$0xff]
    %v1369 = vld [vmem:[%s1 + $0xc18] sm:$0xff]
    %v1370 = vld [vmem:[%s1 + $0xc20] sm:$0xff]
    %v1371 = vld [vmem:[%s1 + $0xc28] sm:$0xff]
    %v1372 = vld [vmem:[%s1 + $0xc30] sm:$0xff]
    %v1373 = vld [vmem:[%s1 + $0xc38] sm:$0xff]
    %v1374 = vld [vmem:[%s1 + $0xc40] sm:$0xff]
    %v1375 = vld [vmem:[%s1 + $0xc48] sm:$0xff]
    %v1376 = vld [vmem:[%s1 + $0xc50] sm:$0xff]
    %v1377 = vld [vmem:[%s1 + $0xc58] sm:$0xff]
    %v1378 = vld [vmem:[%s1 + $0xc60] sm:$0xff]
    %v1379 = vld [vmem:[%s1 + $0xc68] sm:$0xff]
    %v1380 = vld [vmem:[%s1 + $0xc70] sm:$0xff]
    %v1381 = vld [vmem:[%s1 + $0xc78] sm:$0xff]
    %v1382 = vld [vmem:[%s1 + $0xc80] sm:$0xff]
    %v1383 = vld [vmem:[%s1 + $0xc88] sm:$0xff]
    %v1384 = vld [vmem:[%s1 + $0xc90] sm:$0xff]
    %v1385 = vld [vmem:[%s1 + $0xc98] sm:$0xff]
    %v1386 = vld [vmem:[%s1 + $0xca0] sm:$0xff]
    %v1387 = vld [vmem:[%s1 + $0xca8] sm:$0xff]
    %v1388 = vld [vmem:[%s1 + $0xcb0] sm:$0xff]
    %v1389 = vld [vmem:[%s1 + $0xcb8] sm:$0xff]
    %v1390 = vld [vmem:[%s1 + $0xcc0] sm:$0xff]
    %v1391 = vld [vmem:[%s1 + $0xcc8] sm:$0xff]
    %v1392 = vld [vmem:[%s1 + $0xcd0] sm:$0xff]
    %v1393 = vld [vmem:[%s1 + $0xcd8] sm:$0xff]
    %v1394 = vld [vmem:[%s1 + $0xce0] sm:$0xff]
    %v1395 = vld [vmem:[%s1 + $0xce8] sm:$0xff]
    %v1396 = vld [vmem:[%s1 + $0xcf0] sm:$0xff]
    %v1397 = vld [vmem:[%s1 + $0xcf8] sm:$0xff]
    %v1398 = vld [vmem:[%s1 + $0xd00] sm:$0xff]
    %v1399 = vld [vmem:[%s1 + $0xd08] sm:$0x1f]
    %v1400 = vld [vmem:[%s7] sm:$0x1]
    %v1402 = vlaneseq
    %v1403 = vshrl.u32 %v1402, 7
    %v1404 = vsub.s32 0, %v1403
    %v1405 = vrot.slane %v1400, %v1404
    %vm1407 = vcmask 105472
    %v1409 = vsel %vm1407, %v954, 0
    %v1412 = vsel %vm1407, %v981, 0
    %vm1414 = vcmask 1044480
    %v1416 = vsel %vm1414, %v1399, 0
    %1418 = vmatprep.subr.mxu0 0.0
    %1419 = vmatpush1.msra.mxu0 %v982
    %1420 = vmatprep.subr.mxu0 0.0
    %1421 = vmatpush1.msra.mxu0 %v983
    %1422 = vmatprep.subr.mxu0 0.0
    %1423 = vmatpush1.msra.mxu0 %v984
    %1424 = vmatprep.subr.mxu0 0.0
    %1425 = vmatpush1.msra.mxu0 %v985
    %1426 = vmatprep.subr.mxu0 0.0
    %1427 = vmatpush1.msra.mxu0 %v986
    %1428 = vmatprep.subr.mxu0 0.0
    %1429 = vmatpush1.msra.mxu0 %v987
    %1430 = vmatprep.subr.mxu0 0.0
    %1431 = vmatpush1.msra.mxu0 %v988
    %1432 = vmatprep.subr.mxu0 0.0
    %1433 = vmatpush1.msra.mxu0 %v989
    %1434 = vmatprep.subr.mxu0 0.0
    %1435 = vmatpush1.msra.mxu0 %v990
    %1436 = vmatprep.subr.mxu0 0.0
    %1437 = vmatpush1.msra.mxu0 %v991
    %1438 = vmatprep.subr.mxu0 0.0
    %1439 = vmatpush1.msra.mxu0 %v992
    %1440 = vmatprep.subr.mxu0 0.0
    %1441 = vmatpush1.msra.mxu0 %v993
    %1442 = vmatprep.subr.mxu0 0.0
    %1443 = vmatpush1.msra.mxu0 %v994
    %1444 = vmatprep.subr.mxu0 0.0
    %1445 = vmatpush1.msra.mxu0 %v995
    %1446 = vmatprep.subr.mxu0 0.0
    %1447 = vmatpush1.msra.mxu0 %v996
    %1448 = vmatprep.subr.mxu0 0.0
    %1449 = vmatpush1.msra.mxu0 %v997
    %1450 = vmatprep.subr.mxu0 0.0
    %1451 = vmatpush1.msra.mxu0 %v998
    %1452 = vmatprep.subr.mxu0 0.0
    %1453 = vmatpush1.msra.mxu0 %v999
    %1454 = vmatprep.subr.mxu0 0.0
    %1455 = vmatpush1.msra.mxu0 %v1000
    %1456 = vmatprep.subr.mxu0 0.0
    %1457 = vmatpush1.msra.mxu0 %v1001
    %1458 = vmatprep.subr.mxu0 0.0
    %1459 = vmatpush1.msra.mxu0 %v1002
    %1460 = vmatprep.subr.mxu0 0.0
    %1461 = vmatpush1.msra.mxu0 %v1003
    %1462 = vmatprep.subr.mxu0 0.0
    %1463 = vmatpush1.msra.mxu0 %v1004
    %1464 = vmatprep.subr.mxu0 0.0
    %1465 = vmatpush1.msra.mxu0 %v1005
    %1466 = vmatprep.subr.mxu0 0.0
    %1467 = vmatpush1.msra.mxu0 %v1006
    %1468 = vmatprep.subr.mxu0 0.0
    %1469 = vmatpush1.msra.mxu0 %v1007
    %1470 = vmatprep.subr.mxu0 0.0
    %1471 = vmatpush1.msra.mxu0 %v1008
    %1472 = vmatprep.subr.mxu0 0.0
    %1473 = vmatpush1.msra.mxu0 %v1009
    %1474 = vmatprep.subr.mxu0 0.0
    %1475 = vmatpush1.msra.mxu0 %v1010
    %1476 = vmatprep.subr.mxu0 0.0
    %1477 = vmatpush1.msra.mxu0 %v1011
    %1478 = vmatprep.subr.mxu0 0.0
    %1479 = vmatpush1.msra.mxu0 %v1012
    %1480 = vmatprep.subr.mxu0 0.0
    %1481 = vmatpush1.msra.mxu0 %v1013
    %1482 = vmatprep.mubr.f32.mxu0 %v929
    %1483 = vmatmul.mubr.f32.gmra.mrb[0].mxu0 %v928
    %v1484 = vpop.f32.mrb[0].mxu0
    %v1485 = vadd.f32 %v1405, %v1484
    %v1486 = vpop.f32.mrb[0].mxu0
    %1487 = vmatprep.mubr.f32.mxu0 %v956
    %1488 = vmatmul.mubr.f32.gmra.mrb[0].mxu0 %v955
    %v1489 = vpop.f32.mrb[0].mxu0
    %v1490 = vadd.f32 %v1405, %v1489
    %v1491 = vpop.f32.mrb[0].mxu0
    %1492 = vdwg.mxu0
    %1493 = vmatprep.subr.mxu0 0.0
    %1494 = vmatpush1.msra.mxu0 %v1014
    %1495 = vmatprep.subr.mxu0 0.0
    %1496 = vmatpush1.msra.mxu0 %v1015
    %1497 = vmatprep.subr.mxu0 0.0
    %1498 = vmatpush1.msra.mxu0 %v1016
    %1499 = vmatprep.subr.mxu0 0.0
    %1500 = vmatpush1.msra.mxu0 %v1017
    %1501 = vmatprep.subr.mxu0 0.0
    %1502 = vmatpush1.msra.mxu0 %v1018
    %1503 = vmatprep.subr.mxu0 0.0
    %1504 = vmatpush1.msra.mxu0 %v1019
    %1505 = vmatprep.subr.mxu0 0.0
    %1506 = vmatpush1.msra.mxu0 %v1020
    %1507 = vmatprep.subr.mxu0 0.0
    %1508 = vmatpush1.msra.mxu0 %v1021
    %1509 = vmatprep.subr.mxu0 0.0
    %1510 = vmatpush1.msra.mxu0 %v1022
    %1511 = vmatprep.subr.mxu0 0.0
    %1512 = vmatpush1.msra.mxu0 %v1023
    %1513 = vmatprep.subr.mxu0 0.0
    %1514 = vmatpush1.msra.mxu0 %v1024
    %1515 = vmatprep.subr.mxu0 0.0
    %1516 = vmatpush1.msra.mxu0 %v1025
    %1517 = vmatprep.subr.mxu0 0.0
    %1518 = vmatpush1.msra.mxu0 %v1026
    %1519 = vmatprep.subr.mxu0 0.0
    %1520 = vmatpush1.msra.mxu0 %v1027
    %1521 = vmatprep.subr.mxu0 0.0
    %1522 = vmatpush1.msra.mxu0 %v1028
    %1523 = vmatprep.subr.mxu0 0.0
    %1524 = vmatpush1.msra.mxu0 %v1029
    %1525 = vmatprep.subr.mxu0 0.0
    %1526 = vmatpush1.msra.mxu0 %v1030
    %1527 = vmatprep.subr.mxu0 0.0
    %1528 = vmatpush1.msra.mxu0 %v1031
    %1529 = vmatprep.subr.mxu0 0.0
    %1530 = vmatpush1.msra.mxu0 %v1032
    %1531 = vmatprep.subr.mxu0 0.0
    %1532 = vmatpush1.msra.mxu0 %v1033
    %1533 = vmatprep.subr.mxu0 0.0
    %1534 = vmatpush1.msra.mxu0 %v1034
    %1535 = vmatprep.subr.mxu0 0.0
    %1536 = vmatpush1.msra.mxu0 %v1035
    %1537 = vmatprep.subr.mxu0 0.0
    %1538 = vmatpush1.msra.mxu0 %v1036
    %1539 = vmatprep.subr.mxu0 0.0
    %1540 = vmatpush1.msra.mxu0 %v1037
    %1541 = vmatprep.subr.mxu0 0.0
    %1542 = vmatpush1.msra.mxu0 %v1038
    %1543 = vmatprep.subr.mxu0 0.0
    %1544 = vmatpush1.msra.mxu0 %v1039
    %1545 = vmatprep.subr.mxu0 0.0
    %1546 = vmatpush1.msra.mxu0 %v1040
    %1547 = vmatprep.subr.mxu0 0.0
    %1548 = vmatpush1.msra.mxu0 %v1041
    %1549 = vmatprep.subr.mxu0 0.0
    %1550 = vmatpush1.msra.mxu0 %v1042
    %1551 = vmatprep.subr.mxu0 0.0
    %1552 = vmatpush1.msra.mxu0 %v1043
    %1553 = vmatprep.subr.mxu0 0.0
    %1554 = vmatpush1.msra.mxu0 %v1044
    %1555 = vmatprep.subr.mxu0 0.0
    %1556 = vmatpush1.msra.mxu0 %v1045
    %1557 = vmatprep.mubr.f32.mxu0 %v931
    %1558 = vmatmul.mubr.f32.gmra.mrb[0].mxu0 %v930
    %v1559 = vpop.f32.mrb[0].mxu0
    %v1560 = vadd.f32 %v1485, %v1559
    %v1561 = vpop.f32.mrb[0].mxu0
    %1562 = vmatprep.mubr.f32.mxu0 %v958
    %1563 = vmatmul.mubr.f32.gmra.mrb[0].mxu0 %v957
    %v1564 = vpop.f32.mrb[0].mxu0
    %v1565 = vadd.f32 %v1490, %v1564
    %v1566 = vpop.f32.mrb[0].mxu0
    %1567 = vdwg.mxu0
    %1568 = vmatprep.subr.mxu0 0.0
    %1569 = vmatpush1.msra.mxu0 %v1046
    %1570 = vmatprep.subr.mxu0 0.0
    %1571 = vmatpush1.msra.mxu0 %v1047
    %1572 = vmatprep.subr.mxu0 0.0
    %1573 = vmatpush1.msra.mxu0 %v1048
    %1574 = vmatprep.subr.mxu0 0.0
    %1575 = vmatpush1.msra.mxu0 %v1049
    %1576 = vmatprep.subr.mxu0 0.0
    %1577 = vmatpush1.msra.mxu0 %v1050
    %1578 = vmatprep.subr.mxu0 0.0
    %1579 = vmatpush1.msra.mxu0 %v1051
    %1580 = vmatprep.subr.mxu0 0.0
    %1581 = vmatpush1.msra.mxu0 %v1052
    %1582 = vmatprep.subr.mxu0 0.0
    %1583 = vmatpush1.msra.mxu0 %v1053
    %1584 = vmatprep.subr.mxu0 0.0
    %1585 = vmatpush1.msra.mxu0 %v1054
    %1586 = vmatprep.subr.mxu0 0.0
    %1587 = vmatpush1.msra.mxu0 %v1055
    %1588 = vmatprep.subr.mxu0 0.0
    %1589 = vmatpush1.msra.mxu0 %v1056
    %1590 = vmatprep.subr.mxu0 0.0
    %1591 = vmatpush1.msra.mxu0 %v1057
    %1592 = vmatprep.subr.mxu0 0.0
    %1593 = vmatpush1.msra.mxu0 %v1058
    %1594 = vmatprep.subr.mxu0 0.0
    %1595 = vmatpush1.msra.mxu0 %v1059
    %1596 = vmatprep.subr.mxu0 0.0
    %1597 = vmatpush1.msra.mxu0 %v1060
    %1598 = vmatprep.subr.mxu0 0.0
    %1599 = vmatpush1.msra.mxu0 %v1061
    %1600 = vmatprep.subr.mxu0 0.0
    %1601 = vmatpush1.msra.mxu0 %v1062
    %1602 = vmatprep.subr.mxu0 0.0
    %1603 = vmatpush1.msra.mxu0 %v1063
    %1604 = vmatprep.subr.mxu0 0.0
    %1605 = vmatpush1.msra.mxu0 %v1064
    %1606 = vmatprep.subr.mxu0 0.0
    %1607 = vmatpush1.msra.mxu0 %v1065
    %1608 = vmatprep.subr.mxu0 0.0
    %1609 = vmatpush1.msra.mxu0 %v1066
    %1610 = vmatprep.subr.mxu0 0.0
    %1611 = vmatpush1.msra.mxu0 %v1067
    %1612 = vmatprep.subr.mxu0 0.0
    %1613 = vmatpush1.msra.mxu0 %v1068
    %1614 = vmatprep.subr.mxu0 0.0
    %1615 = vmatpush1.msra.mxu0 %v1069
    %1616 = vmatprep.subr.mxu0 0.0
    %1617 = vmatpush1.msra.mxu0 %v1070
    %1618 = vmatprep.subr.mxu0 0.0
    %1619 = vmatpush1.msra.mxu0 %v1071
    %1620 = vmatprep.subr.mxu0 0.0
    %1621 = vmatpush1.msra.mxu0 %v1072
    %1622 = vmatprep.subr.mxu0 0.0
    %1623 = vmatpush1.msra.mxu0 %v1073
    %1624 = vmatprep.subr.mxu0 0.0
    %1625 = vmatpush1.msra.mxu0 %v1074
    %1626 = vmatprep.subr.mxu0 0.0
    %1627 = vmatpush1.msra.mxu0 %v1075
    %1628 = vmatprep.subr.mxu0 0.0
    %1629 = vmatpush1.msra.mxu0 %v1076
    %1630 = vmatprep.subr.mxu0 0.0
    %1631 = vmatpush1.msra.mxu0 %v1077
    %1632 = vmatprep.mubr.f32.mxu0 %v933
    %1633 = vmatmul.mubr.f32.gmra.mrb[0].mxu0 %v932
    %v1634 = vpop.f32.mrb[0].mxu0
    %v1635 = vadd.f32 %v1560, %v1634
    %v1636 = vpop.f32.mrb[0].mxu0
    %1637 = vmatprep.mubr.f32.mxu0 %v960
    %1638 = vmatmul.mubr.f32.gmra.mrb[0].mxu0 %v959
    %v1639 = vpop.f32.mrb[0].mxu0
    %v1640 = vadd.f32 %v1565, %v1639
    %v1641 = vpop.f32.mrb[0].mxu0
    %1642 = vdwg.mxu0
    %1643 = vmatprep.subr.mxu0 0.0
    %1644 = vmatpush1.msra.mxu0 %v1078
    %1645 = vmatprep.subr.mxu0 0.0
    %1646 = vmatpush1.msra.mxu0 %v1079
    %1647 = vmatprep.subr.mxu0 0.0
    %1648 = vmatpush1.msra.mxu0 %v1080
    %1649 = vmatprep.subr.mxu0 0.0
    %1650 = vmatpush1.msra.mxu0 %v1081
    %1651 = vmatprep.subr.mxu0 0.0
    %1652 = vmatpush1.msra.mxu0 %v1082
    %1653 = vmatprep.subr.mxu0 0.0
    %1654 = vmatpush1.msra.mxu0 %v1083
    %1655 = vmatprep.subr.mxu0 0.0
    %1656 = vmatpush1.msra.mxu0 %v1084
    %1657 = vmatprep.subr.mxu0 0.0
    %1658 = vmatpush1.msra.mxu0 %v1085
    %1659 = vmatprep.subr.mxu0 0.0
    %1660 = vmatpush1.msra.mxu0 %v1086
    %1661 = vmatprep.subr.mxu0 0.0
    %1662 = vmatpush1.msra.mxu0 %v1087
    %1663 = vmatprep.subr.mxu0 0.0
    %1664 = vmatpush1.msra.mxu0 %v1088
    %1665 = vmatprep.subr.mxu0 0.0
    %1666 = vmatpush1.msra.mxu0 %v1089
    %1667 = vmatprep.subr.mxu0 0.0
    %1668 = vmatpush1.msra.mxu0 %v1090
    %1669 = vmatprep.subr.mxu0 0.0
    %1670 = vmatpush1.msra.mxu0 %v1091
    %1671 = vmatprep.subr.mxu0 0.0
    %1672 = vmatpush1.msra.mxu0 %v1092
    %1673 = vmatprep.subr.mxu0 0.0
    %1674 = vmatpush1.msra.mxu0 %v1093
    %1675 = vmatprep.subr.mxu0 0.0
    %1676 = vmatpush1.msra.mxu0 %v1094
    %1677 = vmatprep.subr.mxu0 0.0
    %1678 = vmatpush1.msra.mxu0 %v1095
    %1679 = vmatprep.subr.mxu0 0.0
    %1680 = vmatpush1.msra.mxu0 %v1096
    %1681 = vmatprep.subr.mxu0 0.0
    %1682 = vmatpush1.msra.mxu0 %v1097
    %1683 = vmatprep.subr.mxu0 0.0
    %1684 = vmatpush1.msra.mxu0 %v1098
    %1685 = vmatprep.subr.mxu0 0.0
    %1686 = vmatpush1.msra.mxu0 %v1099
    %1687 = vmatprep.subr.mxu0 0.0
    %1688 = vmatpush1.msra.mxu0 %v1100
    %1689 = vmatprep.subr.mxu0 0.0
    %1690 = vmatpush1.msra.mxu0 %v1101
    %1691 = vmatprep.subr.mxu0 0.0
    %1692 = vmatpush1.msra.mxu0 %v1102
    %1693 = vmatprep.subr.mxu0 0.0
    %1694 = vmatpush1.msra.mxu0 %v1103
    %1695 = vmatprep.subr.mxu0 0.0
    %1696 = vmatpush1.msra.mxu0 %v1104
    %1697 = vmatprep.subr.mxu0 0.0
    %1698 = vmatpush1.msra.mxu0 %v1105
    %1699 = vmatprep.subr.mxu0 0.0
    %1700 = vmatpush1.msra.mxu0 %v1106
    %1701 = vmatprep.subr.mxu0 0.0
    %1702 = vmatpush1.msra.mxu0 %v1107
    %1703 = vmatprep.subr.mxu0 0.0
    %1704 = vmatpush1.msra.mxu0 %v1108
    %1705 = vmatprep.subr.mxu0 0.0
    %1706 = vmatpush1.msra.mxu0 %v1109
    %1707 = vmatprep.mubr.f32.mxu0 %v935
    %1708 = vmatmul.mubr.f32.gmra.mrb[0].mxu0 %v934
    %v1709 = vpop.f32.mrb[0].mxu0
    %v1710 = vadd.f32 %v1635, %v1709
    %v1711 = vpop.f32.mrb[0].mxu0
    %1712 = vmatprep.mubr.f32.mxu0 %v962
    %1713 = vmatmul.mubr.f32.gmra.mrb[0].mxu0 %v961
    %v1714 = vpop.f32.mrb[0].mxu0
    %v1715 = vadd.f32 %v1640, %v1714
    %v1716 = vpop.f32.mrb[0].mxu0
    %1717 = vdwg.mxu0
    %1718 = vmatprep.subr.mxu0 0.0
    %1719 = vmatpush1.msra.mxu0 %v1110
    %1720 = vmatprep.subr.mxu0 0.0
    %1721 = vmatpush1.msra.mxu0 %v1111
    %1722 = vmatprep.subr.mxu0 0.0
    %1723 = vmatpush1.msra.mxu0 %v1112
    %1724 = vmatprep.subr.mxu0 0.0
    %1725 = vmatpush1.msra.mxu0 %v1113
    %1726 = vmatprep.subr.mxu0 0.0
    %1727 = vmatpush1.msra.mxu0 %v1114
    %1728 = vmatprep.subr.mxu0 0.0
    %1729 = vmatpush1.msra.mxu0 %v1115
    %1730 = vmatprep.subr.mxu0 0.0
    %1731 = vmatpush1.msra.mxu0 %v1116
    %1732 = vmatprep.subr.mxu0 0.0
    %1733 = vmatpush1.msra.mxu0 %v1117
    %1734 = vmatprep.subr.mxu0 0.0
    %1735 = vmatpush1.msra.mxu0 %v1118
    %1736 = vmatprep.subr.mxu0 0.0
    %1737 = vmatpush1.msra.mxu0 %v1119
    %1738 = vmatprep.subr.mxu0 0.0
    %1739 = vmatpush1.msra.mxu0 %v1120
    %1740 = vmatprep.subr.mxu0 0.0
    %1741 = vmatpush1.msra.mxu0 %v1121
    %1742 = vmatprep.subr.mxu0 0.0
    %1743 = vmatpush1.msra.mxu0 %v1122
    %1744 = vmatprep.subr.mxu0 0.0
    %1745 = vmatpush1.msra.mxu0 %v1123
    %1746 = vmatprep.subr.mxu0 0.0
    %1747 = vmatpush1.msra.mxu0 %v1124
    %1748 = vmatprep.subr.mxu0 0.0
    %1749 = vmatpush1.msra.mxu0 %v1125
    %1750 = vmatprep.subr.mxu0 0.0
    %1751 = vmatpush1.msra.mxu0 %v1126
    %1752 = vmatprep.subr.mxu0 0.0
    %1753 = vmatpush1.msra.mxu0 %v1127
    %1754 = vmatprep.subr.mxu0 0.0
    %1755 = vmatpush1.msra.mxu0 %v1128
    %1756 = vmatprep.subr.mxu0 0.0
    %1757 = vmatpush1.msra.mxu0 %v1129
    %1758 = vmatprep.subr.mxu0 0.0
    %1759 = vmatpush1.msra.mxu0 %v1130
    %1760 = vmatprep.subr.mxu0 0.0
    %1761 = vmatpush1.msra.mxu0 %v1131
    %1762 = vmatprep.subr.mxu0 0.0
    %1763 = vmatpush1.msra.mxu0 %v1132
    %1764 = vmatprep.subr.mxu0 0.0
    %1765 = vmatpush1.msra.mxu0 %v1133
    %1766 = vmatprep.subr.mxu0 0.0
    %1767 = vmatpush1.msra.mxu0 %v1134
    %1768 = vmatprep.subr.mxu0 0.0
    %1769 = vmatpush1.msra.mxu0 %v1135
    %1770 = vmatprep.subr.mxu0 0.0
    %1771 = vmatpush1.msra.mxu0 %v1136
    %1772 = vmatprep.subr.mxu0 0.0
    %1773 = vmatpush1.msra.mxu0 %v1137
    %1774 = vmatprep.subr.mxu0 0.0
    %1775 = vmatpush1.msra.mxu0 %v1138
    %1776 = vmatprep.subr.mxu0 0.0
    %1777 = vmatpush1.msra.mxu0 %v1139
    %1778 = vmatprep.subr.mxu0 0.0
    %1779 = vmatpush1.msra.mxu0 %v1140
    %1780 = vmatprep.subr.mxu0 0.0
    %1781 = vmatpush1.msra.mxu0 %v1141
    %1782 = vmatprep.mubr.f32.mxu0 %v937
    %1783 = vmatmul.mubr.f32.gmra.mrb[0].mxu0 %v936
    %v1784 = vpop.f32.mrb[0].mxu0
    %v1785 = vadd.f32 %v1710, %v1784
    %v1786 = vpop.f32.mrb[0].mxu0
    %1787 = vmatprep.mubr.f32.mxu0 %v964
    %1788 = vmatmul.mubr.f32.gmra.mrb[0].mxu0 %v963
    %v1789 = vpop.f32.mrb[0].mxu0
    %v1790 = vadd.f32 %v1715, %v1789
    %v1791 = vpop.f32.mrb[0].mxu0
    %1792 = vdwg.mxu0
    %1793 = vmatprep.subr.mxu0 0.0
    %1794 = vmatpush1.msra.mxu0 %v1142
    %1795 = vmatprep.subr.mxu0 0.0
    %1796 = vmatpush1.msra.mxu0 %v1143
    %1797 = vmatprep.subr.mxu0 0.0
    %1798 = vmatpush1.msra.mxu0 %v1144
    %1799 = vmatprep.subr.mxu0 0.0
    %1800 = vmatpush1.msra.mxu0 %v1145
    %1801 = vmatprep.subr.mxu0 0.0
    %1802 = vmatpush1.msra.mxu0 %v1146
    %1803 = vmatprep.subr.mxu0 0.0
    %1804 = vmatpush1.msra.mxu0 %v1147
    %1805 = vmatprep.subr.mxu0 0.0
    %1806 = vmatpush1.msra.mxu0 %v1148
    %1807 = vmatprep.subr.mxu0 0.0
    %1808 = vmatpush1.msra.mxu0 %v1149
    %1809 = vmatprep.subr.mxu0 0.0
    %1810 = vmatpush1.msra.mxu0 %v1150
    %1811 = vmatprep.subr.mxu0 0.0
    %1812 = vmatpush1.msra.mxu0 %v1151
    %1813 = vmatprep.subr.mxu0 0.0
    %1814 = vmatpush1.msra.mxu0 %v1152
    %1815 = vmatprep.subr.mxu0 0.0
    %1816 = vmatpush1.msra.mxu0 %v1153
    %1817 = vmatprep.subr.mxu0 0.0
    %1818 = vmatpush1.msra.mxu0 %v1154
    %1819 = vmatprep.subr.mxu0 0.0
    %1820 = vmatpush1.msra.mxu0 %v1155
    %1821 = vmatprep.subr.mxu0 0.0
    %1822 = vmatpush1.msra.mxu0 %v1156
    %1823 = vmatprep.subr.mxu0 0.0
    %1824 = vmatpush1.msra.mxu0 %v1157
    %1825 = vmatprep.subr.mxu0 0.0
    %1826 = vmatpush1.msra.mxu0 %v1158
    %1827 = vmatprep.subr.mxu0 0.0
    %1828 = vmatpush1.msra.mxu0 %v1159
    %1829 = vmatprep.subr.mxu0 0.0
    %1830 = vmatpush1.msra.mxu0 %v1160
    %1831 = vmatprep.subr.mxu0 0.0
    %1832 = vmatpush1.msra.mxu0 %v1161
    %1833 = vmatprep.subr.mxu0 0.0
    %1834 = vmatpush1.msra.mxu0 %v1162
    %1835 = vmatprep.subr.mxu0 0.0
    %1836 = vmatpush1.msra.mxu0 %v1163
    %1837 = vmatprep.subr.mxu0 0.0
    %1838 = vmatpush1.msra.mxu0 %v1164
    %1839 = vmatprep.subr.mxu0 0.0
    %1840 = vmatpush1.msra.mxu0 %v1165
    %1841 = vmatprep.subr.mxu0 0.0
    %1842 = vmatpush1.msra.mxu0 %v1166
    %1843 = vmatprep.subr.mxu0 0.0
    %1844 = vmatpush1.msra.mxu0 %v1167
    %1845 = vmatprep.subr.mxu0 0.0
    %1846 = vmatpush1.msra.mxu0 %v1168
    %1847 = vmatprep.subr.mxu0 0.0
    %1848 = vmatpush1.msra.mxu0 %v1169
    %1849 = vmatprep.subr.mxu0 0.0
    %1850 = vmatpush1.msra.mxu0 %v1170
    %1851 = vmatprep.subr.mxu0 0.0
    %1852 = vmatpush1.msra.mxu0 %v1171
    %1853 = vmatprep.subr.mxu0 0.0
    %1854 = vmatpush1.msra.mxu0 %v1172
    %1855 = vmatprep.subr.mxu0 0.0
    %1856 = vmatpush1.msra.mxu0 %v1173
    %1857 = vmatprep.mubr.f32.mxu0 %v939
    %1858 = vmatmul.mubr.f32.gmra.mrb[0].mxu0 %v938
    %v1859 = vpop.f32.mrb[0].mxu0
    %v1860 = vadd.f32 %v1785, %v1859
    %v1861 = vpop.f32.mrb[0].mxu0
    %1862 = vmatprep.mubr.f32.mxu0 %v966
    %1863 = vmatmul.mubr.f32.gmra.mrb[0].mxu0 %v965
    %v1864 = vpop.f32.mrb[0].mxu0
    %v1865 = vadd.f32 %v1790, %v1864
    %v1866 = vpop.f32.mrb[0].mxu0
    %1867 = vdwg.mxu0
    %1868 = vmatprep.subr.mxu0 0.0
    %1869 = vmatpush1.msra.mxu0 %v1174
    %1870 = vmatprep.subr.mxu0 0.0
    %1871 = vmatpush1.msra.mxu0 %v1175
    %1872 = vmatprep.subr.mxu0 0.0
    %1873 = vmatpush1.msra.mxu0 %v1176
    %1874 = vmatprep.subr.mxu0 0.0
    %1875 = vmatpush1.msra.mxu0 %v1177
    %1876 = vmatprep.subr.mxu0 0.0
    %1877 = vmatpush1.msra.mxu0 %v1178
    %1878 = vmatprep.subr.mxu0 0.0
    %1879 = vmatpush1.msra.mxu0 %v1179
    %1880 = vmatprep.subr.mxu0 0.0
    %1881 = vmatpush1.msra.mxu0 %v1180
    %1882 = vmatprep.subr.mxu0 0.0
    %1883 = vmatpush1.msra.mxu0 %v1181
    %1884 = vmatprep.subr.mxu0 0.0
    %1885 = vmatpush1.msra.mxu0 %v1182
    %1886 = vmatprep.subr.mxu0 0.0
    %1887 = vmatpush1.msra.mxu0 %v1183
    %1888 = vmatprep.subr.mxu0 0.0
    %1889 = vmatpush1.msra.mxu0 %v1184
    %1890 = vmatprep.subr.mxu0 0.0
    %1891 = vmatpush1.msra.mxu0 %v1185
    %1892 = vmatprep.subr.mxu0 0.0
    %1893 = vmatpush1.msra.mxu0 %v1186
    %1894 = vmatprep.subr.mxu0 0.0
    %1895 = vmatpush1.msra.mxu0 %v1187
    %1896 = vmatprep.subr.mxu0 0.0
    %1897 = vmatpush1.msra.mxu0 %v1188
    %1898 = vmatprep.subr.mxu0 0.0
    %1899 = vmatpush1.msra.mxu0 %v1189
    %1900 = vmatprep.subr.mxu0 0.0
    %1901 = vmatpush1.msra.mxu0 %v1190
    %1902 = vmatprep.subr.mxu0 0.0
    %1903 = vmatpush1.msra.mxu0 %v1191
    %1904 = vmatprep.subr.mxu0 0.0
    %1905 = vmatpush1.msra.mxu0 %v1192
    %1906 = vmatprep.subr.mxu0 0.0
    %1907 = vmatpush1.msra.mxu0 %v1193
    %1908 = vmatprep.subr.mxu0 0.0
    %1909 = vmatpush1.msra.mxu0 %v1194
    %1910 = vmatprep.subr.mxu0 0.0
    %1911 = vmatpush1.msra.mxu0 %v1195
    %1912 = vmatprep.subr.mxu0 0.0
    %1913 = vmatpush1.msra.mxu0 %v1196
    %1914 = vmatprep.subr.mxu0 0.0
    %1915 = vmatpush1.msra.mxu0 %v1197
    %1916 = vmatprep.subr.mxu0 0.0
    %1917 = vmatpush1.msra.mxu0 %v1198
    %1918 = vmatprep.subr.mxu0 0.0
    %1919 = vmatpush1.msra.mxu0 %v1199
    %1920 = vmatprep.subr.mxu0 0.0
    %1921 = vmatpush1.msra.mxu0 %v1200
    %1922 = vmatprep.subr.mxu0 0.0
    %1923 = vmatpush1.msra.mxu0 %v1201
    %1924 = vmatprep.subr.mxu0 0.0
    %1925 = vmatpush1.msra.mxu0 %v1202
    %1926 = vmatprep.subr.mxu0 0.0
    %1927 = vmatpush1.msra.mxu0 %v1203
    %1928 = vmatprep.subr.mxu0 0.0
    %1929 = vmatpush1.msra.mxu0 %v1204
    %1930 = vmatprep.subr.mxu0 0.0
    %1931 = vmatpush1.msra.mxu0 %v1205
    %1932 = vmatprep.mubr.f32.mxu0 %v941
    %1933 = vmatmul.mubr.f32.gmra.mrb[0].mxu0 %v940
    %v1934 = vpop.f32.mrb[0].mxu0
    %v1935 = vadd.f32 %v1860, %v1934
    %v1936 = vpop.f32.mrb[0].mxu0
    %1937 = vmatprep.mubr.f32.mxu0 %v968
    %1938 = vmatmul.mubr.f32.gmra.mrb[0].mxu0 %v967
    %v1939 = vpop.f32.mrb[0].mxu0
    %v1940 = vadd.f32 %v1865, %v1939
    %v1941 = vpop.f32.mrb[0].mxu0
    %1942 = vdwg.mxu0
    %1943 = vmatprep.subr.mxu0 0.0
    %1944 = vmatpush1.msra.mxu0 %v1206
    %1945 = vmatprep.subr.mxu0 0.0
    %1946 = vmatpush1.msra.mxu0 %v1207
    %1947 = vmatprep.subr.mxu0 0.0
    %1948 = vmatpush1.msra.mxu0 %v1208
    %1949 = vmatprep.subr.mxu0 0.0
    %1950 = vmatpush1.msra.mxu0 %v1209
    %1951 = vmatprep.subr.mxu0 0.0
    %1952 = vmatpush1.msra.mxu0 %v1210
    %1953 = vmatprep.subr.mxu0 0.0
    %1954 = vmatpush1.msra.mxu0 %v1211
    %1955 = vmatprep.subr.mxu0 0.0
    %1956 = vmatpush1.msra.mxu0 %v1212
    %1957 = vmatprep.subr.mxu0 0.0
    %1958 = vmatpush1.msra.mxu0 %v1213
    %1959 = vmatprep.subr.mxu0 0.0
    %1960 = vmatpush1.msra.mxu0 %v1214
    %1961 = vmatprep.subr.mxu0 0.0
    %1962 = vmatpush1.msra.mxu0 %v1215
    %1963 = vmatprep.subr.mxu0 0.0
    %1964 = vmatpush1.msra.mxu0 %v1216
    %1965 = vmatprep.subr.mxu0 0.0
    %1966 = vmatpush1.msra.mxu0 %v1217
    %1967 = vmatprep.subr.mxu0 0.0
    %1968 = vmatpush1.msra.mxu0 %v1218
    %1969 = vmatprep.subr.mxu0 0.0
    %1970 = vmatpush1.msra.mxu0 %v1219
    %1971 = vmatprep.subr.mxu0 0.0
    %1972 = vmatpush1.msra.mxu0 %v1220
    %1973 = vmatprep.subr.mxu0 0.0
    %1974 = vmatpush1.msra.mxu0 %v1221
    %1975 = vmatprep.subr.mxu0 0.0
    %1976 = vmatpush1.msra.mxu0 %v1222
    %1977 = vmatprep.subr.mxu0 0.0
    %1978 = vmatpush1.msra.mxu0 %v1223
    %1979 = vmatprep.subr.mxu0 0.0
    %1980 = vmatpush1.msra.mxu0 %v1224
    %1981 = vmatprep.subr.mxu0 0.0
    %1982 = vmatpush1.msra.mxu0 %v1225
    %1983 = vmatprep.subr.mxu0 0.0
    %1984 = vmatpush1.msra.mxu0 %v1226
    %1985 = vmatprep.subr.mxu0 0.0
    %1986 = vmatpush1.msra.mxu0 %v1227
    %1987 = vmatprep.subr.mxu0 0.0
    %1988 = vmatpush1.msra.mxu0 %v1228
    %1989 = vmatprep.subr.mxu0 0.0
    %1990 = vmatpush1.msra.mxu0 %v1229
    %1991 = vmatprep.subr.mxu0 0.0
    %1992 = vmatpush1.msra.mxu0 %v1230
    %1993 = vmatprep.subr.mxu0 0.0
    %1994 = vmatpush1.msra.mxu0 %v1231
    %1995 = vmatprep.subr.mxu0 0.0
    %1996 = vmatpush1.msra.mxu0 %v1232
    %1997 = vmatprep.subr.mxu0 0.0
    %1998 = vmatpush1.msra.mxu0 %v1233
    %1999 = vmatprep.subr.mxu0 0.0
    %2000 = vmatpush1.msra.mxu0 %v1234
    %2001 = vmatprep.subr.mxu0 0.0
    %2002 = vmatpush1.msra.mxu0 %v1235
    %2003 = vmatprep.subr.mxu0 0.0
    %2004 = vmatpush1.msra.mxu0 %v1236
    %2005 = vmatprep.subr.mxu0 0.0
    %2006 = vmatpush1.msra.mxu0 %v1237
    %2007 = vmatprep.mubr.f32.mxu0 %v943
    %2008 = vmatmul.mubr.f32.gmra.mrb[0].mxu0 %v942
    %v2009 = vpop.f32.mrb[0].mxu0
    %v2010 = vadd.f32 %v1935, %v2009
    %v2011 = vpop.f32.mrb[0].mxu0
    %2012 = vmatprep.mubr.f32.mxu0 %v970
    %2013 = vmatmul.mubr.f32.gmra.mrb[0].mxu0 %v969
    %v2014 = vpop.f32.mrb[0].mxu0
    %v2015 = vadd.f32 %v1940, %v2014
    %v2016 = vpop.f32.mrb[0].mxu0
    %2017 = vdwg.mxu0
    %2018 = vmatprep.subr.mxu0 0.0
    %2019 = vmatpush1.msra.mxu0 %v1238
    %2020 = vmatprep.subr.mxu0 0.0
    %2021 = vmatpush1.msra.mxu0 %v1239
    %2022 = vmatprep.subr.mxu0 0.0
    %2023 = vmatpush1.msra.mxu0 %v1240
    %2024 = vmatprep.subr.mxu0 0.0
    %2025 = vmatpush1.msra.mxu0 %v1241
    %2026 = vmatprep.subr.mxu0 0.0
    %2027 = vmatpush1.msra.mxu0 %v1242
    %2028 = vmatprep.subr.mxu0 0.0
    %2029 = vmatpush1.msra.mxu0 %v1243
    %2030 = vmatprep.subr.mxu0 0.0
    %2031 = vmatpush1.msra.mxu0 %v1244
    %2032 = vmatprep.subr.mxu0 0.0
    %2033 = vmatpush1.msra.mxu0 %v1245
    %2034 = vmatprep.subr.mxu0 0.0
    %2035 = vmatpush1.msra.mxu0 %v1246
    %2036 = vmatprep.subr.mxu0 0.0
    %2037 = vmatpush1.msra.mxu0 %v1247
    %2038 = vmatprep.subr.mxu0 0.0
    %2039 = vmatpush1.msra.mxu0 %v1248
    %2040 = vmatprep.subr.mxu0 0.0
    %2041 = vmatpush1.msra.mxu0 %v1249
    %2042 = vmatprep.subr.mxu0 0.0
    %2043 = vmatpush1.msra.mxu0 %v1250
    %2044 = vmatprep.subr.mxu0 0.0
    %2045 = vmatpush1.msra.mxu0 %v1251
    %2046 = vmatprep.subr.mxu0 0.0
    %2047 = vmatpush1.msra.mxu0 %v1252
    %2048 = vmatprep.subr.mxu0 0.0
    %2049 = vmatpush1.msra.mxu0 %v1253
    %2050 = vmatprep.subr.mxu0 0.0
    %2051 = vmatpush1.msra.mxu0 %v1254
    %2052 = vmatprep.subr.mxu0 0.0
    %2053 = vmatpush1.msra.mxu0 %v1255
    %2054 = vmatprep.subr.mxu0 0.0
    %2055 = vmatpush1.msra.mxu0 %v1256
    %2056 = vmatprep.subr.mxu0 0.0
    %2057 = vmatpush1.msra.mxu0 %v1257
    %2058 = vmatprep.subr.mxu0 0.0
    %2059 = vmatpush1.msra.mxu0 %v1258
    %2060 = vmatprep.subr.mxu0 0.0
    %2061 = vmatpush1.msra.mxu0 %v1259
    %2062 = vmatprep.subr.mxu0 0.0
    %2063 = vmatpush1.msra.mxu0 %v1260
    %2064 = vmatprep.subr.mxu0 0.0
    %2065 = vmatpush1.msra.mxu0 %v1261
    %2066 = vmatprep.subr.mxu0 0.0
    %2067 = vmatpush1.msra.mxu0 %v1262
    %2068 = vmatprep.subr.mxu0 0.0
    %2069 = vmatpush1.msra.mxu0 %v1263
    %2070 = vmatprep.subr.mxu0 0.0
    %2071 = vmatpush1.msra.mxu0 %v1264
    %2072 = vmatprep.subr.mxu0 0.0
    %2073 = vmatpush1.msra.mxu0 %v1265
    %2074 = vmatprep.subr.mxu0 0.0
    %2075 = vmatpush1.msra.mxu0 %v1266
    %2076 = vmatprep.subr.mxu0 0.0
    %2077 = vmatpush1.msra.mxu0 %v1267
    %2078 = vmatprep.subr.mxu0 0.0
    %2079 = vmatpush1.msra.mxu0 %v1268
    %2080 = vmatprep.subr.mxu0 0.0
    %2081 = vmatpush1.msra.mxu0 %v1269
    %2082 = vmatprep.mubr.f32.mxu0 %v945
    %2083 = vmatmul.mubr.f32.gmra.mrb[0].mxu0 %v944
    %v2084 = vpop.f32.mrb[0].mxu0
    %v2085 = vadd.f32 %v2010, %v2084
    %v2086 = vpop.f32.mrb[0].mxu0
    %2087 = vmatprep.mubr.f32.mxu0 %v972
    %2088 = vmatmul.mubr.f32.gmra.mrb[0].mxu0 %v971
    %v2089 = vpop.f32.mrb[0].mxu0
    %v2090 = vadd.f32 %v2015, %v2089
    %v2091 = vpop.f32.mrb[0].mxu0
    %2092 = vdwg.mxu0
    %2093 = vmatprep.subr.mxu0 0.0
    %2094 = vmatpush1.msra.mxu0 %v1270
    %2095 = vmatprep.subr.mxu0 0.0
    %2096 = vmatpush1.msra.mxu0 %v1271
    %2097 = vmatprep.subr.mxu0 0.0
    %2098 = vmatpush1.msra.mxu0 %v1272
    %2099 = vmatprep.subr.mxu0 0.0
    %2100 = vmatpush1.msra.mxu0 %v1273
    %2101 = vmatprep.subr.mxu0 0.0
    %2102 = vmatpush1.msra.mxu0 %v1274
    %2103 = vmatprep.subr.mxu0 0.0
    %2104 = vmatpush1.msra.mxu0 %v1275
    %2105 = vmatprep.subr.mxu0 0.0
    %2106 = vmatpush1.msra.mxu0 %v1276
    %2107 = vmatprep.subr.mxu0 0.0
    %2108 = vmatpush1.msra.mxu0 %v1277
    %2109 = vmatprep.subr.mxu0 0.0
    %2110 = vmatpush1.msra.mxu0 %v1278
    %2111 = vmatprep.subr.mxu0 0.0
    %2112 = vmatpush1.msra.mxu0 %v1279
    %2113 = vmatprep.subr.mxu0 0.0
    %2114 = vmatpush1.msra.mxu0 %v1280
    %2115 = vmatprep.subr.mxu0 0.0
    %2116 = vmatpush1.msra.mxu0 %v1281
    %2117 = vmatprep.subr.mxu0 0.0
    %2118 = vmatpush1.msra.mxu0 %v1282
    %2119 = vmatprep.subr.mxu0 0.0
    %2120 = vmatpush1.msra.mxu0 %v1283
    %2121 = vmatprep.subr.mxu0 0.0
    %2122 = vmatpush1.msra.mxu0 %v1284
    %2123 = vmatprep.subr.mxu0 0.0
    %2124 = vmatpush1.msra.mxu0 %v1285
    %2125 = vmatprep.subr.mxu0 0.0
    %2126 = vmatpush1.msra.mxu0 %v1286
    %2127 = vmatprep.subr.mxu0 0.0
    %2128 = vmatpush1.msra.mxu0 %v1287
    %2129 = vmatprep.subr.mxu0 0.0
    %2130 = vmatpush1.msra.mxu0 %v1288
    %2131 = vmatprep.subr.mxu0 0.0
    %2132 = vmatpush1.msra.mxu0 %v1289
    %2133 = vmatprep.subr.mxu0 0.0
    %2134 = vmatpush1.msra.mxu0 %v1290
    %2135 = vmatprep.subr.mxu0 0.0
    %2136 = vmatpush1.msra.mxu0 %v1291
    %2137 = vmatprep.subr.mxu0 0.0
    %2138 = vmatpush1.msra.mxu0 %v1292
    %2139 = vmatprep.subr.mxu0 0.0
    %2140 = vmatpush1.msra.mxu0 %v1293
    %2141 = vmatprep.subr.mxu0 0.0
    %2142 = vmatpush1.msra.mxu0 %v1294
    %2143 = vmatprep.subr.mxu0 0.0
    %2144 = vmatpush1.msra.mxu0 %v1295
    %2145 = vmatprep.subr.mxu0 0.0
    %2146 = vmatpush1.msra.mxu0 %v1296
    %2147 = vmatprep.subr.mxu0 0.0
    %2148 = vmatpush1.msra.mxu0 %v1297
    %2149 = vmatprep.subr.mxu0 0.0
    %2150 = vmatpush1.msra.mxu0 %v1298
    %2151 = vmatprep.subr.mxu0 0.0
    %2152 = vmatpush1.msra.mxu0 %v1299
    %2153 = vmatprep.subr.mxu0 0.0
    %2154 = vmatpush1.msra.mxu0 %v1300
    %2155 = vmatprep.subr.mxu0 0.0
    %2156 = vmatpush1.msra.mxu0 %v1301
    %2157 = vmatprep.mubr.f32.mxu0 %v947
    %2158 = vmatmul.mubr.f32.gmra.mrb[0].mxu0 %v946
    %v2159 = vpop.f32.mrb[0].mxu0
    %v2160 = vadd.f32 %v2085, %v2159
    %v2161 = vpop.f32.mrb[0].mxu0
    %2162 = vmatprep.mubr.f32.mxu0 %v974
    %2163 = vmatmul.mubr.f32.gmra.mrb[0].mxu0 %v973
    %v2164 = vpop.f32.mrb[0].mxu0
    %v2165 = vadd.f32 %v2090, %v2164
    %v2166 = vpop.f32.mrb[0].mxu0
    %2167 = vdwg.mxu0
    %2168 = vmatprep.subr.mxu0 0.0
    %2169 = vmatpush1.msra.mxu0 %v1302
    %2170 = vmatprep.subr.mxu0 0.0
    %2171 = vmatpush1.msra.mxu0 %v1303
    %2172 = vmatprep.subr.mxu0 0.0
    %2173 = vmatpush1.msra.mxu0 %v1304
    %2174 = vmatprep.subr.mxu0 0.0
    %2175 = vmatpush1.msra.mxu0 %v1305
    %2176 = vmatprep.subr.mxu0 0.0
    %2177 = vmatpush1.msra.mxu0 %v1306
    %2178 = vmatprep.subr.mxu0 0.0
    %2179 = vmatpush1.msra.mxu0 %v1307
    %2180 = vmatprep.subr.mxu0 0.0
    %2181 = vmatpush1.msra.mxu0 %v1308
    %2182 = vmatprep.subr.mxu0 0.0
    %2183 = vmatpush1.msra.mxu0 %v1309
    %2184 = vmatprep.subr.mxu0 0.0
    %2185 = vmatpush1.msra.mxu0 %v1310
    %2186 = vmatprep.subr.mxu0 0.0
    %2187 = vmatpush1.msra.mxu0 %v1311
    %2188 = vmatprep.subr.mxu0 0.0
    %2189 = vmatpush1.msra.mxu0 %v1312
    %2190 = vmatprep.subr.mxu0 0.0
    %2191 = vmatpush1.msra.mxu0 %v1313
    %2192 = vmatprep.subr.mxu0 0.0
    %2193 = vmatpush1.msra.mxu0 %v1314
    %2194 = vmatprep.subr.mxu0 0.0
    %2195 = vmatpush1.msra.mxu0 %v1315
    %2196 = vmatprep.subr.mxu0 0.0
    %2197 = vmatpush1.msra.mxu0 %v1316
    %2198 = vmatprep.subr.mxu0 0.0
    %2199 = vmatpush1.msra.mxu0 %v1317
    %2200 = vmatprep.subr.mxu0 0.0
    %2201 = vmatpush1.msra.mxu0 %v1318
    %2202 = vmatprep.subr.mxu0 0.0
    %2203 = vmatpush1.msra.mxu0 %v1319
    %2204 = vmatprep.subr.mxu0 0.0
    %2205 = vmatpush1.msra.mxu0 %v1320
    %2206 = vmatprep.subr.mxu0 0.0
    %2207 = vmatpush1.msra.mxu0 %v1321
    %2208 = vmatprep.subr.mxu0 0.0
    %2209 = vmatpush1.msra.mxu0 %v1322
    %2210 = vmatprep.subr.mxu0 0.0
    %2211 = vmatpush1.msra.mxu0 %v1323
    %2212 = vmatprep.subr.mxu0 0.0
    %2213 = vmatpush1.msra.mxu0 %v1324
    %2214 = vmatprep.subr.mxu0 0.0
    %2215 = vmatpush1.msra.mxu0 %v1325
    %2216 = vmatprep.subr.mxu0 0.0
    %2217 = vmatpush1.msra.mxu0 %v1326
    %2218 = vmatprep.subr.mxu0 0.0
    %2219 = vmatpush1.msra.mxu0 %v1327
    %2220 = vmatprep.subr.mxu0 0.0
    %2221 = vmatpush1.msra.mxu0 %v1328
    %2222 = vmatprep.subr.mxu0 0.0
    %2223 = vmatpush1.msra.mxu0 %v1329
    %2224 = vmatprep.subr.mxu0 0.0
    %2225 = vmatpush1.msra.mxu0 %v1330
    %2226 = vmatprep.subr.mxu0 0.0
    %2227 = vmatpush1.msra.mxu0 %v1331
    %2228 = vmatprep.subr.mxu0 0.0
    %2229 = vmatpush1.msra.mxu0 %v1332
    %2230 = vmatprep.subr.mxu0 0.0
    %2231 = vmatpush1.msra.mxu0 %v1333
    %2232 = vmatprep.mubr.f32.mxu0 %v949
    %2233 = vmatmul.mubr.f32.gmra.mrb[0].mxu0 %v948
    %v2234 = vpop.f32.mrb[0].mxu0
    %v2235 = vadd.f32 %v2160, %v2234
    %v2236 = vpop.f32.mrb[0].mxu0
    %2237 = vmatprep.mubr.f32.mxu0 %v976
    %2238 = vmatmul.mubr.f32.gmra.mrb[0].mxu0 %v975
    %v2239 = vpop.f32.mrb[0].mxu0
    %v2240 = vadd.f32 %v2165, %v2239
    %v2241 = vpop.f32.mrb[0].mxu0
    %2242 = vdwg.mxu0
    %2243 = vmatprep.subr.mxu0 0.0
    %2244 = vmatpush1.msra.mxu0 %v1334
    %2245 = vmatprep.subr.mxu0 0.0
    %2246 = vmatpush1.msra.mxu0 %v1335
    %2247 = vmatprep.subr.mxu0 0.0
    %2248 = vmatpush1.msra.mxu0 %v1336
    %2249 = vmatprep.subr.mxu0 0.0
    %2250 = vmatpush1.msra.mxu0 %v1337
    %2251 = vmatprep.subr.mxu0 0.0
    %2252 = vmatpush1.msra.mxu0 %v1338
    %2253 = vmatprep.subr.mxu0 0.0
    %2254 = vmatpush1.msra.mxu0 %v1339
    %2255 = vmatprep.subr.mxu0 0.0
    %2256 = vmatpush1.msra.mxu0 %v1340
    %2257 = vmatprep.subr.mxu0 0.0
    %2258 = vmatpush1.msra.mxu0 %v1341
    %2259 = vmatprep.subr.mxu0 0.0
    %2260 = vmatpush1.msra.mxu0 %v1342
    %2261 = vmatprep.subr.mxu0 0.0
    %2262 = vmatpush1.msra.mxu0 %v1343
    %2263 = vmatprep.subr.mxu0 0.0
    %2264 = vmatpush1.msra.mxu0 %v1344
    %2265 = vmatprep.subr.mxu0 0.0
    %2266 = vmatpush1.msra.mxu0 %v1345
    %2267 = vmatprep.subr.mxu0 0.0
    %2268 = vmatpush1.msra.mxu0 %v1346
    %2269 = vmatprep.subr.mxu0 0.0
    %2270 = vmatpush1.msra.mxu0 %v1347
    %2271 = vmatprep.subr.mxu0 0.0
    %2272 = vmatpush1.msra.mxu0 %v1348
    %2273 = vmatprep.subr.mxu0 0.0
    %2274 = vmatpush1.msra.mxu0 %v1349
    %2275 = vmatprep.subr.mxu0 0.0
    %2276 = vmatpush1.msra.mxu0 %v1350
    %2277 = vmatprep.subr.mxu0 0.0
    %2278 = vmatpush1.msra.mxu0 %v1351
    %2279 = vmatprep.subr.mxu0 0.0
    %2280 = vmatpush1.msra.mxu0 %v1352
    %2281 = vmatprep.subr.mxu0 0.0
    %2282 = vmatpush1.msra.mxu0 %v1353
    %2283 = vmatprep.subr.mxu0 0.0
    %2284 = vmatpush1.msra.mxu0 %v1354
    %2285 = vmatprep.subr.mxu0 0.0
    %2286 = vmatpush1.msra.mxu0 %v1355
    %2287 = vmatprep.subr.mxu0 0.0
    %2288 = vmatpush1.msra.mxu0 %v1356
    %2289 = vmatprep.subr.mxu0 0.0
    %2290 = vmatpush1.msra.mxu0 %v1357
    %2291 = vmatprep.subr.mxu0 0.0
    %2292 = vmatpush1.msra.mxu0 %v1358
    %2293 = vmatprep.subr.mxu0 0.0
    %2294 = vmatpush1.msra.mxu0 %v1359
    %2295 = vmatprep.subr.mxu0 0.0
    %2296 = vmatpush1.msra.mxu0 %v1360
    %2297 = vmatprep.subr.mxu0 0.0
    %2298 = vmatpush1.msra.mxu0 %v1361
    %2299 = vmatprep.subr.mxu0 0.0
    %2300 = vmatpush1.msra.mxu0 %v1362
    %2301 = vmatprep.subr.mxu0 0.0
    %2302 = vmatpush1.msra.mxu0 %v1363
    %2303 = vmatprep.subr.mxu0 0.0
    %2304 = vmatpush1.msra.mxu0 %v1364
    %2305 = vmatprep.subr.mxu0 0.0
    %2306 = vmatpush1.msra.mxu0 %v1365
    %2307 = vmatprep.mubr.f32.mxu0 %v951
    %2308 = vmatmul.mubr.f32.gmra.mrb[0].mxu0 %v950
    %v2309 = vpop.f32.mrb[0].mxu0
    %v2310 = vadd.f32 %v2235, %v2309
    %v2311 = vpop.f32.mrb[0].mxu0
    %2312 = vmatprep.mubr.f32.mxu0 %v978
    %2313 = vmatmul.mubr.f32.gmra.mrb[0].mxu0 %v977
    %v2314 = vpop.f32.mrb[0].mxu0
    %v2315 = vadd.f32 %v2240, %v2314
    %v2316 = vpop.f32.mrb[0].mxu0
    %2317 = vdwg.mxu0
    %2318 = vmatprep.subr.mxu0 0.0
    %2319 = vmatpush1.msra.mxu0 %v1366
    %2320 = vmatprep.subr.mxu0 0.0
    %2321 = vmatpush1.msra.mxu0 %v1367
    %2322 = vmatprep.subr.mxu0 0.0
    %2323 = vmatpush1.msra.mxu0 %v1368
    %2324 = vmatprep.subr.mxu0 0.0
    %2325 = vmatpush1.msra.mxu0 %v1369
    %2326 = vmatprep.subr.mxu0 0.0
    %2327 = vmatpush1.msra.mxu0 %v1370
    %2328 = vmatprep.subr.mxu0 0.0
    %2329 = vmatpush1.msra.mxu0 %v1371
    %2330 = vmatprep.subr.mxu0 0.0
    %2331 = vmatpush1.msra.mxu0 %v1372
    %2332 = vmatprep.subr.mxu0 0.0
    %2333 = vmatpush1.msra.mxu0 %v1373
    %2334 = vmatprep.subr.mxu0 0.0
    %2335 = vmatpush1.msra.mxu0 %v1374
    %2336 = vmatprep.subr.mxu0 0.0
    %2337 = vmatpush1.msra.mxu0 %v1375
    %2338 = vmatprep.subr.mxu0 0.0
    %2339 = vmatpush1.msra.mxu0 %v1376
    %2340 = vmatprep.subr.mxu0 0.0
    %2341 = vmatpush1.msra.mxu0 %v1377
    %2342 = vmatprep.subr.mxu0 0.0
    %2343 = vmatpush1.msra.mxu0 %v1378
    %2344 = vmatprep.subr.mxu0 0.0
    %2345 = vmatpush1.msra.mxu0 %v1379
    %2346 = vmatprep.subr.mxu0 0.0
    %2347 = vmatpush1.msra.mxu0 %v1380
    %2348 = vmatprep.subr.mxu0 0.0
    %2349 = vmatpush1.msra.mxu0 %v1381
    %2350 = vmatprep.subr.mxu0 0.0
    %2351 = vmatpush1.msra.mxu0 %v1382
    %2352 = vmatprep.subr.mxu0 0.0
    %2353 = vmatpush1.msra.mxu0 %v1383
    %2354 = vmatprep.subr.mxu0 0.0
    %2355 = vmatpush1.msra.mxu0 %v1384
    %2356 = vmatprep.subr.mxu0 0.0
    %2357 = vmatpush1.msra.mxu0 %v1385
    %2358 = vmatprep.subr.mxu0 0.0
    %2359 = vmatpush1.msra.mxu0 %v1386
    %2360 = vmatprep.subr.mxu0 0.0
    %2361 = vmatpush1.msra.mxu0 %v1387
    %2362 = vmatprep.subr.mxu0 0.0
    %2363 = vmatpush1.msra.mxu0 %v1388
    %2364 = vmatprep.subr.mxu0 0.0
    %2365 = vmatpush1.msra.mxu0 %v1389
    %2366 = vmatprep.subr.mxu0 0.0
    %2367 = vmatpush1.msra.mxu0 %v1390
    %2368 = vmatprep.subr.mxu0 0.0
    %2369 = vmatpush1.msra.mxu0 %v1391
    %2370 = vmatprep.subr.mxu0 0.0
    %2371 = vmatpush1.msra.mxu0 %v1392
    %2372 = vmatprep.subr.mxu0 0.0
    %2373 = vmatpush1.msra.mxu0 %v1393
    %2374 = vmatprep.subr.mxu0 0.0
    %2375 = vmatpush1.msra.mxu0 %v1394
    %2376 = vmatprep.subr.mxu0 0.0
    %2377 = vmatpush1.msra.mxu0 %v1395
    %2378 = vmatprep.subr.mxu0 0.0
    %2379 = vmatpush1.msra.mxu0 %v1396
    %2380 = vmatprep.subr.mxu0 0.0
    %2381 = vmatpush1.msra.mxu0 %v1397
    %2382 = vmatprep.mubr.f32.mxu0 %v953
    %2383 = vmatmul.mubr.f32.gmra.mrb[0].mxu0 %v952
    %v2384 = vpop.f32.mrb[0].mxu0
    %v2385 = vadd.f32 %v2310, %v2384
    %v2386 = vpop.f32.mrb[0].mxu0
    %2387 = vmatprep.mubr.f32.mxu0 %v980
    %2388 = vmatmul.mubr.f32.gmra.mrb[0].mxu0 %v979
    %v2389 = vpop.f32.mrb[0].mxu0
    %v2390 = vadd.f32 %v2315, %v2389
    %v2391 = vpop.f32.mrb[0].mxu0
    %2392 = vdwg.mxu0
    %2393 = vmatprep.subr.mxu0 0.0
    %2394 = vmatpush1.msra.mxu0 %v1398
    %2395 = vmatprep.subr.mxu0 0.0
    %2396 = vmatpush1.msra.mxu0 %v1416
    %2397 = vmatprep.subr.mxu0 0.0
    %2398 = vmatpush1.msra.mxu0 0.0
    %2399 = vmatprep.subr.mxu0 0.0
    %2400 = vmatpush1.msra.mxu0 0.0
    %2401 = vmatprep.subr.mxu0 0.0
    %2402 = vmatpush1.msra.mxu0 0.0
    %2403 = vmatprep.subr.mxu0 0.0
    %2404 = vmatpush1.msra.mxu0 0.0
    %2405 = vmatprep.subr.mxu0 0.0
    %2406 = vmatpush1.msra.mxu0 0.0
    %2407 = vmatprep.subr.mxu0 0.0
    %2408 = vmatpush1.msra.mxu0 0.0
    %2409 = vmatprep.subr.mxu0 0.0
    %2410 = vmatpush1.msra.mxu0 0.0
    %2411 = vmatprep.subr.mxu0 0.0
    %2412 = vmatpush1.msra.mxu0 0.0
    %2413 = vmatprep.subr.mxu0 0.0
    %2414 = vmatpush1.msra.mxu0 0.0
    %2415 = vmatprep.subr.mxu0 0.0
    %2416 = vmatpush1.msra.mxu0 0.0
    %2417 = vmatprep.subr.mxu0 0.0
    %2418 = vmatpush1.msra.mxu0 0.0
    %2419 = vmatprep.subr.mxu0 0.0
    %2420 = vmatpush1.msra.mxu0 0.0
    %2421 = vmatprep.subr.mxu0 0.0
    %2422 = vmatpush1.msra.mxu0 0.0
    %2423 = vmatprep.subr.mxu0 0.0
    %2424 = vmatpush1.msra.mxu0 0.0
    %2425 = vmatprep.subr.mxu0 0.0
    %2426 = vmatpush1.msra.mxu0 0.0
    %2427 = vmatprep.subr.mxu0 0.0
    %2428 = vmatpush1.msra.mxu0 0.0
    %2429 = vmatprep.subr.mxu0 0.0
    %2430 = vmatpush1.msra.mxu0 0.0
    %2431 = vmatprep.subr.mxu0 0.0
    %2432 = vmatpush1.msra.mxu0 0.0
    %2433 = vmatprep.subr.mxu0 0.0
    %2434 = vmatpush1.msra.mxu0 0.0
    %2435 = vmatprep.subr.mxu0 0.0
    %2436 = vmatpush1.msra.mxu0 0.0
    %2437 = vmatprep.subr.mxu0 0.0
    %2438 = vmatpush1.msra.mxu0 0.0
    %2439 = vmatprep.subr.mxu0 0.0
    %2440 = vmatpush1.msra.mxu0 0.0
    %2441 = vmatprep.subr.mxu0 0.0
    %2442 = vmatpush1.msra.mxu0 0.0
    %2443 = vmatprep.subr.mxu0 0.0
    %2444 = vmatpush1.msra.mxu0 0.0
    %2445 = vmatprep.subr.mxu0 0.0
    %2446 = vmatpush1.msra.mxu0 0.0
    %2447 = vmatprep.subr.mxu0 0.0
    %2448 = vmatpush1.msra.mxu0 0.0
    %2449 = vmatprep.subr.mxu0 0.0
    %2450 = vmatpush1.msra.mxu0 0.0
    %2451 = vmatprep.subr.mxu0 0.0
    %2452 = vmatpush1.msra.mxu0 0.0
    %2453 = vmatprep.subr.mxu0 0.0
    %2454 = vmatpush1.msra.mxu0 0.0
    %2455 = vmatprep.subr.mxu0 0.0
    %2456 = vmatpush1.msra.mxu0 0.0
    %2457 = vmatprep.mubr.f32.mxu0 0.0
    %2458 = vmatmul.mubr.f32.gmra.mrb[0].mxu0 %v1409
    %v2459 = vpop.f32.mrb[0].mxu0
    %v2460 = vadd.f32 %v2385, %v2459
    %v2461 = vpop.f32.mrb[0].mxu0
    %2462 = vmatprep.mubr.f32.mxu0 0.0
    %2463 = vmatmul.mubr.f32.gmra.mrb[0].mxu0 %v1412
    %v2464 = vpop.f32.mrb[0].mxu0
    %v2465 = vadd.f32 %v2390, %v2464
    %v2466 = vpop.f32.mrb[0].mxu0
    %2467 = vdwg.mxu0
    %v2468 = vmax.f32 %v2460, 0.0
    %v2469 = vmax.f32 %v2465, 0.0
    %v2470 = vld [vmem:[%s2] sm:$0xff]
    %v2471 = vld [vmem:[%s2 + $0x8] sm:$0xf]
    %vm2472 = vcmask 97280
    %v2474 = vsel %vm2472, %v2468, 0
    %v2477 = vsel %vm2472, %v2469, 0
    %vm2479 = vcmask 1043456
    %v2481 = vsel %vm2479, %v2471, 0
    %2483 = vmatprep.subr.mxu0 0.0
    %2484 = vmatpush1.msra.mxu0 %v2470
    %2485 = vmatprep.subr.mxu0 0.0
    %2486 = vmatpush1.msra.mxu0 %v2481
    %2487 = vmatprep.subr.mxu0 0.0
    %2488 = vmatpush1.msra.mxu0 0.0
    %2489 = vmatprep.subr.mxu0 0.0
    %2490 = vmatpush1.msra.mxu0 0.0
    %2491 = vmatprep.subr.mxu0 0.0
    %2492 = vmatpush1.msra.mxu0 0.0
    %2493 = vmatprep.subr.mxu0 0.0
    %2494 = vmatpush1.msra.mxu0 0.0
    %2495 = vmatprep.subr.mxu0 0.0
    %2496 = vmatpush1.msra.mxu0 0.0
    %2497 = vmatprep.subr.mxu0 0.0
    %2498 = vmatpush1.msra.mxu0 0.0
    %2499 = vmatprep.subr.mxu0 0.0
    %2500 = vmatpush1.msra.mxu0 0.0
    %2501 = vmatprep.subr.mxu0 0.0
    %2502 = vmatpush1.msra.mxu0 0.0
    %2503 = vmatprep.subr.mxu0 0.0
    %2504 = vmatpush1.msra.mxu0 0.0
    %2505 = vmatprep.subr.mxu0 0.0
    %2506 = vmatpush1.msra.mxu0 0.0
    %2507 = vmatprep.subr.mxu0 0.0
    %2508 = vmatpush1.msra.mxu0 0.0
    %2509 = vmatprep.subr.mxu0 0.0
    %2510 = vmatpush1.msra.mxu0 0.0
    %2511 = vmatprep.subr.mxu0 0.0
    %2512 = vmatpush1.msra.mxu0 0.0
    %2513 = vmatprep.subr.mxu0 0.0
    %2514 = vmatpush1.msra.mxu0 0.0
    %2515 = vmatprep.subr.mxu0 0.0
    %2516 = vmatpush1.msra.mxu0 0.0
    %2517 = vmatprep.subr.mxu0 0.0
    %2518 = vmatpush1.msra.mxu0 0.0
    %2519 = vmatprep.subr.mxu0 0.0
    %2520 = vmatpush1.msra.mxu0 0.0
    %2521 = vmatprep.subr.mxu0 0.0
    %2522 = vmatpush1.msra.mxu0 0.0
    %2523 = vmatprep.subr.mxu0 0.0
    %2524 = vmatpush1.msra.mxu0 0.0
    %2525 = vmatprep.subr.mxu0 0.0
    %2526 = vmatpush1.msra.mxu0 0.0
    %2527 = vmatprep.subr.mxu0 0.0
    %2528 = vmatpush1.msra.mxu0 0.0
    %2529 = vmatprep.subr.mxu0 0.0
    %2530 = vmatpush1.msra.mxu0 0.0
    %2531 = vmatprep.subr.mxu0 0.0
    %2532 = vmatpush1.msra.mxu0 0.0
    %2533 = vmatprep.subr.mxu0 0.0
    %2534 = vmatpush1.msra.mxu0 0.0
    %2535 = vmatprep.subr.mxu0 0.0
    %2536 = vmatpush1.msra.mxu0 0.0
    %2537 = vmatprep.subr.mxu0 0.0
    %2538 = vmatpush1.msra.mxu0 0.0
    %2539 = vmatprep.subr.mxu0 0.0
    %2540 = vmatpush1.msra.mxu0 0.0
    %2541 = vmatprep.subr.mxu0 0.0
    %2542 = vmatpush1.msra.mxu0 0.0
    %2543 = vmatprep.subr.mxu0 0.0
    %2544 = vmatpush1.msra.mxu0 0.0
    %2545 = vmatprep.subr.mxu0 0.0
    %2546 = vmatpush1.msra.mxu0 0.0
    %2547 = vmatprep.mubr.f32.mxu0 0.0
    %2548 = vmatmul.mubr.f32.gmra.mrb[0].mxu0 %v2474
    %v2549 = vpop.f32.mrb[0].mxu0
    %v2550 = vadd.f32 0.0, %v2549
    %v2551 = vpop.f32.mrb[0].mxu0
    %2552 = vmatprep.mubr.f32.mxu0 0.0
    %2553 = vmatmul.mubr.f32.gmra.mrb[0].mxu0 %v2477
    %v2554 = vpop.f32.mrb[0].mxu0
    %v2555 = vadd.f32 0.0, %v2554
    %v2556 = vpop.f32.mrb[0].mxu0
    %2557 = vdwg.mxu0
    %v2558 = vld [vmem:[%s4] sm:$0xff]
    %v2559 = vld [vmem:[%s4 + $0x8] sm:$0xff]
    %v2560 = vmul.f32 %v2550, %v2558
    %v2561 = vmul.f32 %v2555, %v2559
    %v2562 = vld [vmem:[%s5] sm:$0x3]
    %vm2563 = vcmask 130048
    %v2565 = vsel %vm2563, %v2562, 0
    %2567 = vmatprep.subr.mxu0 0.0
    %2568 = vmatpush1.msra.mxu0 %v2560
    %2569 = vmatprep.subr.mxu0 0.0
    %2570 = vmatpush1.msra.mxu0 %v2561
    %2571 = vmatprep.subr.mxu0 0.0
    %2572 = vmatpush1.msra.mxu0 0.0
    %2573 = vmatprep.subr.mxu0 0.0
    %2574 = vmatpush1.msra.mxu0 0.0
    %2575 = vmatprep.subr.mxu0 0.0
    %2576 = vmatpush1.msra.mxu0 0.0
    %2577 = vmatprep.subr.mxu0 0.0
    %2578 = vmatpush1.msra.mxu0 0.0
    %2579 = vmatprep.subr.mxu0 0.0
    %2580 = vmatpush1.msra.mxu0 0.0
    %2581 = vmatprep.subr.mxu0 0.0
    %2582 = vmatpush1.msra.mxu0 0.0
    %2583 = vmatprep.subr.mxu0 0.0
    %2584 = vmatpush1.msra.mxu0 0.0
    %2585 = vmatprep.subr.mxu0 0.0
    %2586 = vmatpush1.msra.mxu0 0.0
    %2587 = vmatprep.subr.mxu0 0.0
    %2588 = vmatpush1.msra.mxu0 0.0
    %2589 = vmatprep.subr.mxu0 0.0
    %2590 = vmatpush1.msra.mxu0 0.0
    %2591 = vmatprep.subr.mxu0 0.0
    %2592 = vmatpush1.msra.mxu0 0.0
    %2593 = vmatprep.subr.mxu0 0.0
    %2594 = vmatpush1.msra.mxu0 0.0
    %2595 = vmatprep.subr.mxu0 0.0
    %2596 = vmatpush1.msra.mxu0 0.0
    %2597 = vmatprep.subr.mxu0 0.0
    %2598 = vmatpush1.msra.mxu0 0.0
    %2599 = vmatprep.subr.mxu0 0.0
    %2600 = vmatpush1.msra.mxu0 0.0
    %2601 = vmatprep.subr.mxu0 0.0
    %2602 = vmatpush1.msra.mxu0 0.0
    %2603 = vmatprep.subr.mxu0 0.0
    %2604 = vmatpush1.msra.mxu0 0.0
    %2605 = vmatprep.subr.mxu0 0.0
    %2606 = vmatpush1.msra.mxu0 0.0
    %2607 = vmatprep.subr.mxu0 0.0
    %2608 = vmatpush1.msra.mxu0 0.0
    %2609 = vmatprep.subr.mxu0 0.0
    %2610 = vmatpush1.msra.mxu0 0.0
    %2611 = vmatprep.subr.mxu0 0.0
    %2612 = vmatpush1.msra.mxu0 0.0
    %2613 = vmatprep.subr.mxu0 0.0
    %2614 = vmatpush1.msra.mxu0 0.0
    %2615 = vmatprep.subr.mxu0 0.0
    %2616 = vmatpush1.msra.mxu0 0.0
    %2617 = vmatprep.subr.mxu0 0.0
    %2618 = vmatpush1.msra.mxu0 0.0
    %2619 = vmatprep.subr.mxu0 0.0
    %2620 = vmatpush1.msra.mxu0 0.0
    %2621 = vmatprep.subr.mxu0 0.0
    %2622 = vmatpush1.msra.mxu0 0.0
    %2623 = vmatprep.subr.mxu0 0.0
    %2624 = vmatpush1.msra.mxu0 0.0
    %2625 = vmatprep.subr.mxu0 0.0
    %2626 = vmatpush1.msra.mxu0 0.0
    %2627 = vmatprep.subr.mxu0 0.0
    %2628 = vmatpush1.msra.mxu0 0.0
    %2629 = vmatprep.subr.mxu0 0.0
    %2630 = vmatpush1.msra.mxu0 0.0
    %2631 = vmatprep.mubr.f32.mxu0 0.0
    %2632 = vmatmul.mubr.f32.gmra.mrb[0].mxu0 %v2565
    %v2633 = vpop.f32.mrb[0].mxu0
    %v2634 = vadd.f32 0.0, %v2633
    %v2635 = vpop.f32.mrb[0].mxu0
    %2636 = vdwg.mxu0
    %s2637 = smul.u32 96, 1
    %s2638 = sshll.u32 %s2637, 4
    %2639 = dma.done [#allocation10], %s2638
    %v2640 = vld [vmem:[#allocation2] sm:$0xff]
    %v2641 = vld [vmem:[#allocation2 + $0x8] sm:$0xff]
    %v2642 = vld [vmem:[#allocation2 + $0x10] sm:$0xff]
    %v2643 = vld [vmem:[#allocation2 + $0x18] sm:$0xff]
    %v2644 = vld [vmem:[#allocation2 + $0x20] sm:$0xff]
    %v2645 = vld [vmem:[#allocation2 + $0x28] sm:$0xff]
    %v2646 = vld [vmem:[#allocation2 + $0x30] sm:$0xff]
    %v2647 = vld [vmem:[#allocation2 + $0x38] sm:$0xff]
    %v2648 = vld [vmem:[#allocation2 + $0x40] sm:$0xff]
    %v2649 = vld [vmem:[#allocation2 + $0x48] sm:$0xff]
    %v2650 = vld [vmem:[#allocation2 + $0x50] sm:$0xff]
    %v2651 = vld [vmem:[#allocation2 + $0x58] sm:$0xff]
    %v2652 = vld [vmem:[%s7 + $0x1] sm:$0x1]
    %v2654 = vlaneseq
    %v2655 = vshrl.u32 %v2654, 7
    %v2656 = vsub.s32 0, %v2655
    %v2657 = vrot.slane %v2652, %v2656
    %vm2659 = vcmask 785408
    %v2661 = vsel %vm2659, %v2634, 0
    %2663 = vmatprep.subr.mxu0 0.0
    %2664 = vmatpush1.msra.mxu0 %v2640
    %2665 = vmatprep.subr.mxu0 0.0
    %2666 = vmatpush1.msra.mxu0 %v2641
    %2667 = vmatprep.subr.mxu0 0.0
    %2668 = vmatpush1.msra.mxu0 %v2642
    %2669 = vmatprep.subr.mxu0 0.0
    %2670 = vmatpush1.msra.mxu0 %v2643
    %2671 = vmatprep.subr.mxu0 0.0
    %2672 = vmatpush1.msra.mxu0 %v2644
    %2673 = vmatprep.subr.mxu0 0.0
    %2674 = vmatpush1.msra.mxu0 %v2645
    %2675 = vmatprep.subr.mxu0 0.0
    %2676 = vmatpush1.msra.mxu0 %v2646
    %2677 = vmatprep.subr.mxu0 0.0
    %2678 = vmatpush1.msra.mxu0 %v2647
    %2679 = vmatprep.subr.mxu0 0.0
    %2680 = vmatpush1.msra.mxu0 %v2648
    %2681 = vmatprep.subr.mxu0 0.0
    %2682 = vmatpush1.msra.mxu0 %v2649
    %2683 = vmatprep.subr.mxu0 0.0
    %2684 = vmatpush1.msra.mxu0 %v2650
    %2685 = vmatprep.subr.mxu0 0.0
    %2686 = vmatpush1.msra.mxu0 %v2651
    %2687 = vmatprep.subr.mxu0 0.0
    %2688 = vmatpush1.msra.mxu0 0.0
    %2689 = vmatprep.subr.mxu0 0.0
    %2690 = vmatpush1.msra.mxu0 0.0
    %2691 = vmatprep.subr.mxu0 0.0
    %2692 = vmatpush1.msra.mxu0 0.0
    %2693 = vmatprep.subr.mxu0 0.0
    %2694 = vmatpush1.msra.mxu0 0.0
    %2695 = vmatprep.subr.mxu0 0.0
    %2696 = vmatpush1.msra.mxu0 0.0
    %2697 = vmatprep.subr.mxu0 0.0
    %2698 = vmatpush1.msra.mxu0 0.0
    %2699 = vmatprep.subr.mxu0 0.0
    %2700 = vmatpush1.msra.mxu0 0.0
    %2701 = vmatprep.subr.mxu0 0.0
    %2702 = vmatpush1.msra.mxu0 0.0
    %2703 = vmatprep.subr.mxu0 0.0
    %2704 = vmatpush1.msra.mxu0 0.0
    %2705 = vmatprep.subr.mxu0 0.0
    %2706 = vmatpush1.msra.mxu0 0.0
    %2707 = vmatprep.subr.mxu0 0.0
    %2708 = vmatpush1.msra.mxu0 0.0
    %2709 = vmatprep.subr.mxu0 0.0
    %2710 = vmatpush1.msra.mxu0 0.0
    %2711 = vmatprep.subr.mxu0 0.0
    %2712 = vmatpush1.msra.mxu0 0.0
    %2713 = vmatprep.subr.mxu0 0.0
    %2714 = vmatpush1.msra.mxu0 0.0
    %2715 = vmatprep.subr.mxu0 0.0
    %2716 = vmatpush1.msra.mxu0 0.0
    %2717 = vmatprep.subr.mxu0 0.0
    %2718 = vmatpush1.msra.mxu0 0.0
    %2719 = vmatprep.subr.mxu0 0.0
    %2720 = vmatpush1.msra.mxu0 0.0
    %2721 = vmatprep.subr.mxu0 0.0
    %2722 = vmatpush1.msra.mxu0 0.0
    %2723 = vmatprep.subr.mxu0 0.0
    %2724 = vmatpush1.msra.mxu0 0.0
    %2725 = vmatprep.subr.mxu0 0.0
    %2726 = vmatpush1.msra.mxu0 0.0
    %2727 = vmatprep.mubr.f32.mxu0 0.0
    %2728 = vmatmul.mubr.f32.gmra.mrb[0].mxu0 %v2661
    %v2729 = vpop.f32.mrb[0].mxu0
    %v2730 = vadd.f32 %v2657, %v2729
    %v2731 = vpop.f32.mrb[0].mxu0
    %2732 = vdwg.mxu0
    %v2733 = vmax.f32 %v2730, 0.0
    %s2734 = smul.u32 8, 16
    %s2735 = smul.u32 %s2734, 2
    %s2736 = sshll.u32 %s2735, 4
    %2737 = dma.done %s105, %s2736
    %v2738 = vld [vmem:[#allocation3] sm:$0xff]
    %v2739 = vld [vmem:[#allocation3 + $0x8] sm:$0xff]
    %v2740 = vld [vmem:[#allocation3 + $0x10] sm:$0xff]
    %v2741 = vld [vmem:[#allocation3 + $0x18] sm:$0xff]
    %v2742 = vld [vmem:[#allocation3 + $0x20] sm:$0xff]
    %v2743 = vld [vmem:[#allocation3 + $0x28] sm:$0xff]
    %v2744 = vld [vmem:[#allocation3 + $0x30] sm:$0xff]
    %v2745 = vld [vmem:[#allocation3 + $0x38] sm:$0xff]
    %v2746 = vld [vmem:[#allocation3 + $0x40] sm:$0xff]
    %v2747 = vld [vmem:[#allocation3 + $0x48] sm:$0xff]
    %v2748 = vld [vmem:[#allocation3 + $0x50] sm:$0xff]
    %v2749 = vld [vmem:[#allocation3 + $0x58] sm:$0xff]
    %v2750 = vld [vmem:[#allocation3 + $0x60] sm:$0xff]
    %v2751 = vld [vmem:[#allocation3 + $0x68] sm:$0xff]
    %v2752 = vld [vmem:[#allocation3 + $0x70] sm:$0xff]
    %v2753 = vld [vmem:[#allocation3 + $0x78] sm:$0xff]
    %v2754 = vld [vmem:[#allocation3 + $0x80] sm:$0xff]
    %v2755 = vld [vmem:[#allocation3 + $0x88] sm:$0xff]
    %v2756 = vld [vmem:[#allocation3 + $0x90] sm:$0xff]
    %v2757 = vld [vmem:[#allocation3 + $0x98] sm:$0xff]
    %v2758 = vld [vmem:[#allocation3 + $0xa0] sm:$0xff]
    %v2759 = vld [vmem:[#allocation3 + $0xa8] sm:$0xff]
    %v2760 = vld [vmem:[#allocation3 + $0xb0] sm:$0xff]
    %v2761 = vld [vmem:[#allocation3 + $0xb8] sm:$0xff]
    %v2762 = vld [vmem:[#allocation3 + $0xc0] sm:$0xff]
    %v2763 = vld [vmem:[#allocation3 + $0xc8] sm:$0xff]
    %v2764 = vld [vmem:[#allocation3 + $0xd0] sm:$0xff]
    %v2765 = vld [vmem:[#allocation3 + $0xd8] sm:$0xff]
    %v2766 = vld [vmem:[#allocation3 + $0xe0] sm:$0xff]
    %v2767 = vld [vmem:[#allocation3 + $0xe8] sm:$0xff]
    %v2768 = vld [vmem:[#allocation3 + $0xf0] sm:$0xff]
    %v2769 = vld [vmem:[#allocation3 + $0xf8] sm:$0xff]
    %v2770 = vld [vmem:[%s7 + $0x2] sm:$0x3]
    %v2772 = vlaneseq
    %v2773 = vshrl.u32 %v2772, 7
    %v2774 = vsub.s32 0, %v2773
    %v2775 = vrot.slane %v2770, %v2774
    %v2776 = vlaneseq
    %v2777 = vshrl.u32 %v2776, 7
    %v2778 = vsub.s32 1, %v2777
    %v2779 = vrot.slane %v2770, %v2778
    %2782 = vmatprep.subr.mxu0 %v2739
    %2783 = vmatpush1.msra.mxu0 %v2738
    %2784 = vmatprep.subr.mxu0 %v2741
    %2785 = vmatpush1.msra.mxu0 %v2740
    %2786 = vmatprep.subr.mxu0 %v2743
    %2787 = vmatpush1.msra.mxu0 %v2742
    %2788 = vmatprep.subr.mxu0 %v2745
    %2789 = vmatpush1.msra.mxu0 %v2744
    %2790 = vmatprep.subr.mxu0 %v2747
    %2791 = vmatpush1.msra.mxu0 %v2746
    %2792 = vmatprep.subr.mxu0 %v2749
    %2793 = vmatpush1.msra.mxu0 %v2748
    %2794 = vmatprep.subr.mxu0 %v2751
    %2795 = vmatpush1.msra.mxu0 %v2750
    %2796 = vmatprep.subr.mxu0 %v2753
    %2797 = vmatpush1.msra.mxu0 %v2752
    %2798 = vmatprep.subr.mxu0 %v2755
    %2799 = vmatpush1.msra.mxu0 %v2754
    %2800 = vmatprep.subr.mxu0 %v2757
    %2801 = vmatpush1.msra.mxu0 %v2756
    %2802 = vmatprep.subr.mxu0 %v2759
    %2803 = vmatpush1.msra.mxu0 %v2758
    %2804 = vmatprep.subr.mxu0 %v2761
    %2805 = vmatpush1.msra.mxu0 %v2760
    %2806 = vmatprep.subr.mxu0 %v2763
    %2807 = vmatpush1.msra.mxu0 %v2762
    %2808 = vmatprep.subr.mxu0 %v2765
    %2809 = vmatpush1.msra.mxu0 %v2764
    %2810 = vmatprep.subr.mxu0 %v2767
    %2811 = vmatpush1.msra.mxu0 %v2766
    %2812 = vmatprep.subr.mxu0 %v2769
    %2813 = vmatpush1.msra.mxu0 %v2768
    %2814 = vmatprep.subr.mxu0 0.0
    %2815 = vmatpush1.msra.mxu0 0.0
    %2816 = vmatprep.subr.mxu0 0.0
    %2817 = vmatpush1.msra.mxu0 0.0
    %2818 = vmatprep.subr.mxu0 0.0
    %2819 = vmatpush1.msra.mxu0 0.0
    %2820 = vmatprep.subr.mxu0 0.0
    %2821 = vmatpush1.msra.mxu0 0.0
    %2822 = vmatprep.subr.mxu0 0.0
    %2823 = vmatpush1.msra.mxu0 0.0
    %2824 = vmatprep.subr.mxu0 0.0
    %2825 = vmatpush1.msra.mxu0 0.0
    %2826 = vmatprep.subr.mxu0 0.0
    %2827 = vmatpush1.msra.mxu0 0.0
    %2828 = vmatprep.subr.mxu0 0.0
    %2829 = vmatpush1.msra.mxu0 0.0
    %2830 = vmatprep.subr.mxu0 0.0
    %2831 = vmatpush1.msra.mxu0 0.0
    %2832 = vmatprep.subr.mxu0 0.0
    %2833 = vmatpush1.msra.mxu0 0.0
    %2834 = vmatprep.subr.mxu0 0.0
    %2835 = vmatpush1.msra.mxu0 0.0
    %2836 = vmatprep.subr.mxu0 0.0
    %2837 = vmatpush1.msra.mxu0 0.0
    %2838 = vmatprep.subr.mxu0 0.0
    %2839 = vmatpush1.msra.mxu0 0.0
    %2840 = vmatprep.subr.mxu0 0.0
    %2841 = vmatpush1.msra.mxu0 0.0
    %2842 = vmatprep.subr.mxu0 0.0
    %2843 = vmatpush1.msra.mxu0 0.0
    %2844 = vmatprep.subr.mxu0 0.0
    %2845 = vmatpush1.msra.mxu0 0.0
    %2846 = vmatprep.mubr.f32.mxu0 0.0
    %2847 = vmatmul.mubr.f32.gmra.mrb[0].mxu0 %v2733
    %v2848 = vpop.f32.mrb[0].mxu0
    %v2849 = vadd.f32 %v2775, %v2848
    %v2850 = vpop.f32.mrb[0].mxu0
    %v2851 = vadd.f32 %v2779, %v2850
    %2852 = vdwg.mxu0
    %v2853 = vmax.f32 %v2849, 0.0
    %v2854 = vmax.f32 %v2851, 0.0
    %s2855 = smul.u32 8, 20
    %s2856 = smul.u32 %s2855, 2
    %s2857 = sshll.u32 %s2856, 4
    %2858 = dma.done %s210, %s2857
    %v2859 = vld [vmem:[#allocation4] sm:$0xff]
    %v2860 = vld [vmem:[#allocation4 + $0x8] sm:$0xff]
    %v2861 = vld [vmem:[#allocation4 + $0x10] sm:$0xff]
    %v2862 = vld [vmem:[#allocation4 + $0x18] sm:$0xff]
    %v2863 = vld [vmem:[#allocation4 + $0x20] sm:$0xff]
    %v2864 = vld [vmem:[#allocation4 + $0x28] sm:$0xff]
    %v2865 = vld [vmem:[#allocation4 + $0x30] sm:$0xff]
    %v2866 = vld [vmem:[#allocation4 + $0x38] sm:$0xff]
    %v2867 = vld [vmem:[#allocation4 + $0x40] sm:$0xff]
    %v2868 = vld [vmem:[#allocation4 + $0x48] sm:$0xff]
    %v2869 = vld [vmem:[#allocation4 + $0x50] sm:$0xff]
    %v2870 = vld [vmem:[#allocation4 + $0x58] sm:$0xff]
    %v2871 = vld [vmem:[#allocation4 + $0x60] sm:$0xff]
    %v2872 = vld [vmem:[#allocation4 + $0x68] sm:$0xff]
    %v2873 = vld [vmem:[#allocation4 + $0x70] sm:$0xff]
    %v2874 = vld [vmem:[#allocation4 + $0x78] sm:$0xff]
    %v2875 = vld [vmem:[#allocation4 + $0x80] sm:$0xff]
    %v2876 = vld [vmem:[#allocation4 + $0x88] sm:$0xff]
    %v2877 = vld [vmem:[#allocation4 + $0x90] sm:$0xff]
    %v2878 = vld [vmem:[#allocation4 + $0x98] sm:$0xff]
    %v2879 = vld [vmem:[#allocation4 + $0xa0] sm:$0xff]
    %v2880 = vld [vmem:[#allocation4 + $0xa8] sm:$0xff]
    %v2881 = vld [vmem:[#allocation4 + $0xb0] sm:$0xff]
    %v2882 = vld [vmem:[#allocation4 + $0xb8] sm:$0xff]
    %v2883 = vld [vmem:[#allocation4 + $0xc0] sm:$0xff]
    %v2884 = vld [vmem:[#allocation4 + $0xc8] sm:$0xff]
    %v2885 = vld [vmem:[#allocation4 + $0xd0] sm:$0xff]
    %v2886 = vld [vmem:[#allocation4 + $0xd8] sm:$0xff]
    %v2887 = vld [vmem:[#allocation4 + $0xe0] sm:$0xff]
    %v2888 = vld [vmem:[#allocation4 + $0xe8] sm:$0xff]
    %v2889 = vld [vmem:[#allocation4 + $0xf0] sm:$0xff]
    %v2890 = vld [vmem:[#allocation4 + $0xf8] sm:$0xff]
    %v2891 = vld [vmem:[#allocation4 + $0x100] sm:$0xff]
    %v2892 = vld [vmem:[#allocation4 + $0x108] sm:$0xff]
    %v2893 = vld [vmem:[#allocation4 + $0x110] sm:$0xff]
    %v2894 = vld [vmem:[#allocation4 + $0x118] sm:$0xff]
    %v2895 = vld [vmem:[#allocation4 + $0x120] sm:$0xff]
    %v2896 = vld [vmem:[#allocation4 + $0x128] sm:$0xff]
    %v2897 = vld [vmem:[#allocation4 + $0x130] sm:$0xff]
    %v2898 = vld [vmem:[#allocation4 + $0x138] sm:$0xff]
    %v2899 = vld [vmem:[%s7 + $0x4] sm:$0x3]
    %v2901 = vlaneseq
    %v2902 = vshrl.u32 %v2901, 7
    %v2903 = vsub.s32 0, %v2902
    %v2904 = vrot.slane %v2899, %v2903
    %v2905 = vlaneseq
    %v2906 = vshrl.u32 %v2905, 7
    %v2907 = vsub.s32 1, %v2906
    %v2908 = vrot.slane %v2899, %v2907
    %vm2911 = vcmask 261120
    %v2913 = vsel %vm2911, %v2854, 0
    %2915 = vmatprep.subr.mxu0 %v2860
    %2916 = vmatpush1.msra.mxu0 %v2859
    %2917 = vmatprep.subr.mxu0 %v2862
    %2918 = vmatpush1.msra.mxu0 %v2861
    %2919 = vmatprep.subr.mxu0 %v2864
    %2920 = vmatpush1.msra.mxu0 %v2863
    %2921 = vmatprep.subr.mxu0 %v2866
    %2922 = vmatpush1.msra.mxu0 %v2865
    %2923 = vmatprep.subr.mxu0 %v2868
    %2924 = vmatpush1.msra.mxu0 %v2867
    %2925 = vmatprep.subr.mxu0 %v2870
    %2926 = vmatpush1.msra.mxu0 %v2869
    %2927 = vmatprep.subr.mxu0 %v2872
    %2928 = vmatpush1.msra.mxu0 %v2871
    %2929 = vmatprep.subr.mxu0 %v2874
    %2930 = vmatpush1.msra.mxu0 %v2873
    %2931 = vmatprep.subr.mxu0 %v2876
    %2932 = vmatpush1.msra.mxu0 %v2875
    %2933 = vmatprep.subr.mxu0 %v2878
    %2934 = vmatpush1.msra.mxu0 %v2877
    %2935 = vmatprep.subr.mxu0 %v2880
    %2936 = vmatpush1.msra.mxu0 %v2879
    %2937 = vmatprep.subr.mxu0 %v2882
    %2938 = vmatpush1.msra.mxu0 %v2881
    %2939 = vmatprep.subr.mxu0 %v2884
    %2940 = vmatpush1.msra.mxu0 %v2883
    %2941 = vmatprep.subr.mxu0 %v2886
    %2942 = vmatpush1.msra.mxu0 %v2885
    %2943 = vmatprep.subr.mxu0 %v2888
    %2944 = vmatpush1.msra.mxu0 %v2887
    %2945 = vmatprep.subr.mxu0 %v2890
    %2946 = vmatpush1.msra.mxu0 %v2889
    %2947 = vmatprep.subr.mxu0 %v2892
    %2948 = vmatpush1.msra.mxu0 %v2891
    %2949 = vmatprep.subr.mxu0 %v2894
    %2950 = vmatpush1.msra.mxu0 %v2893
    %2951 = vmatprep.subr.mxu0 %v2896
    %2952 = vmatpush1.msra.mxu0 %v2895
    %2953 = vmatprep.subr.mxu0 %v2898
    %2954 = vmatpush1.msra.mxu0 %v2897
    %2955 = vmatprep.subr.mxu0 0.0
    %2956 = vmatpush1.msra.mxu0 0.0
    %2957 = vmatprep.subr.mxu0 0.0
    %2958 = vmatpush1.msra.mxu0 0.0
    %2959 = vmatprep.subr.mxu0 0.0
    %2960 = vmatpush1.msra.mxu0 0.0
    %2961 = vmatprep.subr.mxu0 0.0
    %2962 = vmatpush1.msra.mxu0 0.0
    %2963 = vmatprep.subr.mxu0 0.0
    %2964 = vmatpush1.msra.mxu0 0.0
    %2965 = vmatprep.subr.mxu0 0.0
    %2966 = vmatpush1.msra.mxu0 0.0
    %2967 = vmatprep.subr.mxu0 0.0
    %2968 = vmatpush1.msra.mxu0 0.0
    %2969 = vmatprep.subr.mxu0 0.0
    %2970 = vmatpush1.msra.mxu0 0.0
    %2971 = vmatprep.subr.mxu0 0.0
    %2972 = vmatpush1.msra.mxu0 0.0
    %2973 = vmatprep.subr.mxu0 0.0
    %2974 = vmatpush1.msra.mxu0 0.0
    %2975 = vmatprep.subr.mxu0 0.0
    %2976 = vmatpush1.msra.mxu0 0.0
    %2977 = vmatprep.subr.mxu0 0.0
    %2978 = vmatpush1.msra.mxu0 0.0
    %2979 = vmatprep.mubr.f32.mxu0 %v2913
    %2980 = vmatmul.mubr.f32.gmra.mrb[0].mxu0 %v2853
    %v2981 = vpop.f32.mrb[0].mxu0
    %v2982 = vadd.f32 %v2904, %v2981
    %v2983 = vpop.f32.mrb[0].mxu0
    %v2984 = vadd.f32 %v2908, %v2983
    %2985 = vdwg.mxu0
    %v2986 = vmax.f32 %v2982, 0.0
    %v2987 = vmax.f32 %v2984, 0.0
    %s2988 = smul.u32 8, 24
    %s2989 = smul.u32 %s2988, 2
    %s2990 = sshll.u32 %s2989, 4
    %2991 = dma.done %s331, %s2990
    %v2992 = vld [vmem:[#allocation5] sm:$0xff]
    %v2993 = vld [vmem:[#allocation5 + $0x8] sm:$0xff]
    %v2994 = vld [vmem:[#allocation5 + $0x10] sm:$0xff]
    %v2995 = vld [vmem:[#allocation5 + $0x18] sm:$0xff]
    %v2996 = vld [vmem:[#allocation5 + $0x20] sm:$0xff]
    %v2997 = vld [vmem:[#allocation5 + $0x28] sm:$0xff]
    %v2998 = vld [vmem:[#allocation5 + $0x30] sm:$0xff]
    %v2999 = vld [vmem:[#allocation5 + $0x38] sm:$0xff]
    %v3000 = vld [vmem:[#allocation5 + $0x40] sm:$0xff]
    %v3001 = vld [vmem:[#allocation5 + $0x48] sm:$0xff]
    %v3002 = vld [vmem:[#allocation5 + $0x50] sm:$0xff]
    %v3003 = vld [vmem:[#allocation5 + $0x58] sm:$0xff]
    %v3004 = vld [vmem:[#allocation5 + $0x60] sm:$0xff]
    %v3005 = vld [vmem:[#allocation5 + $0x68] sm:$0xff]
    %v3006 = vld [vmem:[#allocation5 + $0x70] sm:$0xff]
    %v3007 = vld [vmem:[#allocation5 + $0x78] sm:$0xff]
    %v3008 = vld [vmem:[#allocation5 + $0x80] sm:$0xff]
    %v3009 = vld [vmem:[#allocation5 + $0x88] sm:$0xff]
    %v3010 = vld [vmem:[#allocation5 + $0x90] sm:$0xff]
    %v3011 = vld [vmem:[#allocation5 + $0x98] sm:$0xff]
    %v3012 = vld [vmem:[#allocation5 + $0xa0] sm:$0xff]
    %v3013 = vld [vmem:[#allocation5 + $0xa8] sm:$0xff]
    %v3014 = vld [vmem:[#allocation5 + $0xb0] sm:$0xff]
    %v3015 = vld [vmem:[#allocation5 + $0xb8] sm:$0xff]
    %v3016 = vld [vmem:[#allocation5 + $0xc0] sm:$0xff]
    %v3017 = vld [vmem:[#allocation5 + $0xc8] sm:$0xff]
    %v3018 = vld [vmem:[#allocation5 + $0xd0] sm:$0xff]
    %v3019 = vld [vmem:[#allocation5 + $0xd8] sm:$0xff]
    %v3020 = vld [vmem:[#allocation5 + $0xe0] sm:$0xff]
    %v3021 = vld [vmem:[#allocation5 + $0xe8] sm:$0xff]
    %v3022 = vld [vmem:[#allocation5 + $0xf0] sm:$0xff]
    %v3023 = vld [vmem:[#allocation5 + $0xf8] sm:$0xff]
    %v3024 = vld [vmem:[#allocation5 + $0x100] sm:$0xff]
    %v3025 = vld [vmem:[#allocation5 + $0x108] sm:$0xff]
    %v3026 = vld [vmem:[#allocation5 + $0x110] sm:$0xff]
    %v3027 = vld [vmem:[#allocation5 + $0x118] sm:$0xff]
    %v3028 = vld [vmem:[#allocation5 + $0x120] sm:$0xff]
    %v3029 = vld [vmem:[#allocation5 + $0x128] sm:$0xff]
    %v3030 = vld [vmem:[#allocation5 + $0x130] sm:$0xff]
    %v3031 = vld [vmem:[#allocation5 + $0x138] sm:$0xff]
    %v3032 = vld [vmem:[#allocation5 + $0x140] sm:$0xff]
    %v3033 = vld [vmem:[#allocation5 + $0x148] sm:$0xff]
    %v3034 = vld [vmem:[#allocation5 + $0x150] sm:$0xff]
    %v3035 = vld [vmem:[#allocation5 + $0x158] sm:$0xff]
    %v3036 = vld [vmem:[#allocation5 + $0x160] sm:$0xff]
    %v3037 = vld [vmem:[#allocation5 + $0x168] sm:$0xff]
    %v3038 = vld [vmem:[#allocation5 + $0x170] sm:$0xff]
    %v3039 = vld [vmem:[#allocation5 + $0x178] sm:$0xff]
    %v3040 = vld [vmem:[%s7 + $0x6] sm:$0x3]
    %v3042 = vlaneseq
    %v3043 = vshrl.u32 %v3042, 7
    %v3044 = vsub.s32 0, %v3043
    %v3045 = vrot.slane %v3040, %v3044
    %v3046 = vlaneseq
    %v3047 = vshrl.u32 %v3046, 7
    %v3048 = vsub.s32 1, %v3047
    %v3049 = vrot.slane %v3040, %v3048
    %vm3052 = vcmask 523264
    %v3054 = vsel %vm3052, %v2987, 0
    %3056 = vmatprep.subr.mxu0 %v2993
    %3057 = vmatpush1.msra.mxu0 %v2992
    %3058 = vmatprep.subr.mxu0 %v2995
    %3059 = vmatpush1.msra.mxu0 %v2994
    %3060 = vmatprep.subr.mxu0 %v2997
    %3061 = vmatpush1.msra.mxu0 %v2996
    %3062 = vmatprep.subr.mxu0 %v2999
    %3063 = vmatpush1.msra.mxu0 %v2998
    %3064 = vmatprep.subr.mxu0 %v3001
    %3065 = vmatpush1.msra.mxu0 %v3000
    %3066 = vmatprep.subr.mxu0 %v3003
    %3067 = vmatpush1.msra.mxu0 %v3002
    %3068 = vmatprep.subr.mxu0 %v3005
    %3069 = vmatpush1.msra.mxu0 %v3004
    %3070 = vmatprep.subr.mxu0 %v3007
    %3071 = vmatpush1.msra.mxu0 %v3006
    %3072 = vmatprep.subr.mxu0 %v3009
    %3073 = vmatpush1.msra.mxu0 %v3008
    %3074 = vmatprep.subr.mxu0 %v3011
    %3075 = vmatpush1.msra.mxu0 %v3010
    %3076 = vmatprep.subr.mxu0 %v3013
    %3077 = vmatpush1.msra.mxu0 %v3012
    %3078 = vmatprep.subr.mxu0 %v3015
    %3079 = vmatpush1.msra.mxu0 %v3014
    %3080 = vmatprep.subr.mxu0 %v3017
    %3081 = vmatpush1.msra.mxu0 %v3016
    %3082 = vmatprep.subr.mxu0 %v3019
    %3083 = vmatpush1.msra.mxu0 %v3018
    %3084 = vmatprep.subr.mxu0 %v3021
    %3085 = vmatpush1.msra.mxu0 %v3020
    %3086 = vmatprep.subr.mxu0 %v3023
    %3087 = vmatpush1.msra.mxu0 %v3022
    %3088 = vmatprep.subr.mxu0 %v3025
    %3089 = vmatpush1.msra.mxu0 %v3024
    %3090 = vmatprep.subr.mxu0 %v3027
    %3091 = vmatpush1.msra.mxu0 %v3026
    %3092 = vmatprep.subr.mxu0 %v3029
    %3093 = vmatpush1.msra.mxu0 %v3028
    %3094 = vmatprep.subr.mxu0 %v3031
    %3095 = vmatpush1.msra.mxu0 %v3030
    %3096 = vmatprep.subr.mxu0 %v3033
    %3097 = vmatpush1.msra.mxu0 %v3032
    %3098 = vmatprep.subr.mxu0 %v3035
    %3099 = vmatpush1.msra.mxu0 %v3034
    %3100 = vmatprep.subr.mxu0 %v3037
    %3101 = vmatpush1.msra.mxu0 %v3036
    %3102 = vmatprep.subr.mxu0 %v3039
    %3103 = vmatpush1.msra.mxu0 %v3038
    %3104 = vmatprep.subr.mxu0 0.0
    %3105 = vmatpush1.msra.mxu0 0.0
    %3106 = vmatprep.subr.mxu0 0.0
    %3107 = vmatpush1.msra.mxu0 0.0
    %3108 = vmatprep.subr.mxu0 0.0
    %3109 = vmatpush1.msra.mxu0 0.0
    %3110 = vmatprep.subr.mxu0 0.0
    %3111 = vmatpush1.msra.mxu0 0.0
    %3112 = vmatprep.subr.mxu0 0.0
    %3113 = vmatpush1.msra.mxu0 0.0
    %3114 = vmatprep.subr.mxu0 0.0
    %3115 = vmatpush1.msra.mxu0 0.0
    %3116 = vmatprep.subr.mxu0 0.0
    %3117 = vmatpush1.msra.mxu0 0.0
    %3118 = vmatprep.subr.mxu0 0.0
    %3119 = vmatpush1.msra.mxu0 0.0
    %3120 = vmatprep.mubr.f32.mxu0 %v3054
    %3121 = vmatmul.mubr.f32.gmra.mrb[0].mxu0 %v2986
    %v3122 = vpop.f32.mrb[0].mxu0
    %v3123 = vadd.f32 %v3045, %v3122
    %v3124 = vpop.f32.mrb[0].mxu0
    %v3125 = vadd.f32 %v3049, %v3124
    %3126 = vdwg.mxu0
    %v3127 = vmax.f32 %v3123, 0.0
    %v3128 = vmax.f32 %v3125, 0.0
    %s3129 = smul.u32 8, 32
    %s3130 = smul.u32 %s3129, 2
    %s3131 = sshll.u32 %s3130, 4
    %3132 = dma.done %s468, %s3131
    %v3133 = vld [vmem:[#allocation6] sm:$0xff]
    %v3134 = vld [vmem:[#allocation6 + $0x8] sm:$0xff]
    %v3135 = vld [vmem:[#allocation6 + $0x10] sm:$0xff]
    %v3136 = vld [vmem:[#allocation6 + $0x18] sm:$0xff]
    %v3137 = vld [vmem:[#allocation6 + $0x20] sm:$0xff]
    %v3138 = vld [vmem:[#allocation6 + $0x28] sm:$0xff]
    %v3139 = vld [vmem:[#allocation6 + $0x30] sm:$0xff]
    %v3140 = vld [vmem:[#allocation6 + $0x38] sm:$0xff]
    %v3141 = vld [vmem:[#allocation6 + $0x40] sm:$0xff]
    %v3142 = vld [vmem:[#allocation6 + $0x48] sm:$0xff]
    %v3143 = vld [vmem:[#allocation6 + $0x50] sm:$0xff]
    %v3144 = vld [vmem:[#allocation6 + $0x58] sm:$0xff]
    %v3145 = vld [vmem:[#allocation6 + $0x60] sm:$0xff]
    %v3146 = vld [vmem:[#allocation6 + $0x68] sm:$0xff]
    %v3147 = vld [vmem:[#allocation6 + $0x70] sm:$0xff]
    %v3148 = vld [vmem:[#allocation6 + $0x78] sm:$0xff]
    %v3149 = vld [vmem:[#allocation6 + $0x80] sm:$0xff]
    %v3150 = vld [vmem:[#allocation6 + $0x88] sm:$0xff]
    %v3151 = vld [vmem:[#allocation6 + $0x90] sm:$0xff]
    %v3152 = vld [vmem:[#allocation6 + $0x98] sm:$0xff]
    %v3153 = vld [vmem:[#allocation6 + $0xa0] sm:$0xff]
    %v3154 = vld [vmem:[#allocation6 + $0xa8] sm:$0xff]
    %v3155 = vld [vmem:[#allocation6 + $0xb0] sm:$0xff]
    %v3156 = vld [vmem:[#allocation6 + $0xb8] sm:$0xff]
    %v3157 = vld [vmem:[#allocation6 + $0xc0] sm:$0xff]
    %v3158 = vld [vmem:[#allocation6 + $0xc8] sm:$0xff]
    %v3159 = vld [vmem:[#allocation6 + $0xd0] sm:$0xff]
    %v3160 = vld [vmem:[#allocation6 + $0xd8] sm:$0xff]
    %v3161 = vld [vmem:[#allocation6 + $0xe0] sm:$0xff]
    %v3162 = vld [vmem:[#allocation6 + $0xe8] sm:$0xff]
    %v3163 = vld [vmem:[#allocation6 + $0xf0] sm:$0xff]
    %v3164 = vld [vmem:[#allocation6 + $0xf8] sm:$0xff]
    %v3165 = vld [vmem:[#allocation6 + $0x100] sm:$0xff]
    %v3166 = vld [vmem:[#allocation6 + $0x108] sm:$0xff]
    %v3167 = vld [vmem:[#allocation6 + $0x110] sm:$0xff]
    %v3168 = vld [vmem:[#allocation6 + $0x118] sm:$0xff]
    %v3169 = vld [vmem:[#allocation6 + $0x120] sm:$0xff]
    %v3170 = vld [vmem:[#allocation6 + $0x128] sm:$0xff]
    %v3171 = vld [vmem:[#allocation6 + $0x130] sm:$0xff]
    %v3172 = vld [vmem:[#allocation6 + $0x138] sm:$0xff]
    %v3173 = vld [vmem:[#allocation6 + $0x140] sm:$0xff]
    %v3174 = vld [vmem:[#allocation6 + $0x148] sm:$0xff]
    %v3175 = vld [vmem:[#allocation6 + $0x150] sm:$0xff]
    %v3176 = vld [vmem:[#allocation6 + $0x158] sm:$0xff]
    %v3177 = vld [vmem:[#allocation6 + $0x160] sm:$0xff]
    %v3178 = vld [vmem:[#allocation6 + $0x168] sm:$0xff]
    %v3179 = vld [vmem:[#allocation6 + $0x170] sm:$0xff]
    %v3180 = vld [vmem:[#allocation6 + $0x178] sm:$0xff]
    %v3181 = vld [vmem:[#allocation6 + $0x180] sm:$0xff]
    %v3182 = vld [vmem:[#allocation6 + $0x188] sm:$0xff]
    %v3183 = vld [vmem:[#allocation6 + $0x190] sm:$0xff]
    %v3184 = vld [vmem:[#allocation6 + $0x198] sm:$0xff]
    %v3185 = vld [vmem:[#allocation6 + $0x1a0] sm:$0xff]
    %v3186 = vld [vmem:[#allocation6 + $0x1a8] sm:$0xff]
    %v3187 = vld [vmem:[#allocation6 + $0x1b0] sm:$0xff]
    %v3188 = vld [vmem:[#allocation6 + $0x1b8] sm:$0xff]
    %v3189 = vld [vmem:[#allocation6 + $0x1c0] sm:$0xff]
    %v3190 = vld [vmem:[#allocation6 + $0x1c8] sm:$0xff]
    %v3191 = vld [vmem:[#allocation6 + $0x1d0] sm:$0xff]
    %v3192 = vld [vmem:[#allocation6 + $0x1d8] sm:$0xff]
    %v3193 = vld [vmem:[#allocation6 + $0x1e0] sm:$0xff]
    %v3194 = vld [vmem:[#allocation6 + $0x1e8] sm:$0xff]
    %v3195 = vld [vmem:[#allocation6 + $0x1f0] sm:$0xff]
    %v3196 = vld [vmem:[#allocation6 + $0x1f8] sm:$0xff]
    %v3197 = vld [vmem:[%s7 + $0x8] sm:$0x3]
    %v3199 = vlaneseq
    %v3200 = vshrl.u32 %v3199, 7
    %v3201 = vsub.s32 0, %v3200
    %v3202 = vrot.slane %v3197, %v3201
    %v3203 = vlaneseq
    %v3204 = vshrl.u32 %v3203, 7
    %v3205 = vsub.s32 1, %v3204
    %v3206 = vrot.slane %v3197, %v3205
    %3209 = vmatprep.subr.mxu0 %v3134
    %3210 = vmatpush1.msra.mxu0 %v3133
    %3211 = vmatprep.subr.mxu0 %v3136
    %3212 = vmatpush1.msra.mxu0 %v3135
    %3213 = vmatprep.subr.mxu0 %v3138
    %3214 = vmatpush1.msra.mxu0 %v3137
    %3215 = vmatprep.subr.mxu0 %v3140
    %3216 = vmatpush1.msra.mxu0 %v3139
    %3217 = vmatprep.subr.mxu0 %v3142
    %3218 = vmatpush1.msra.mxu0 %v3141
    %3219 = vmatprep.subr.mxu0 %v3144
    %3220 = vmatpush1.msra.mxu0 %v3143
    %3221 = vmatprep.subr.mxu0 %v3146
    %3222 = vmatpush1.msra.mxu0 %v3145
    %3223 = vmatprep.subr.mxu0 %v3148
    %3224 = vmatpush1.msra.mxu0 %v3147
    %3225 = vmatprep.subr.mxu0 %v3150
    %3226 = vmatpush1.msra.mxu0 %v3149
    %3227 = vmatprep.subr.mxu0 %v3152
    %3228 = vmatpush1.msra.mxu0 %v3151
    %3229 = vmatprep.subr.mxu0 %v3154
    %3230 = vmatpush1.msra.mxu0 %v3153
    %3231 = vmatprep.subr.mxu0 %v3156
    %3232 = vmatpush1.msra.mxu0 %v3155
    %3233 = vmatprep.subr.mxu0 %v3158
    %3234 = vmatpush1.msra.mxu0 %v3157
    %3235 = vmatprep.subr.mxu0 %v3160
    %3236 = vmatpush1.msra.mxu0 %v3159
    %3237 = vmatprep.subr.mxu0 %v3162
    %3238 = vmatpush1.msra.mxu0 %v3161
    %3239 = vmatprep.subr.mxu0 %v3164
    %3240 = vmatpush1.msra.mxu0 %v3163
    %3241 = vmatprep.subr.mxu0 %v3166
    %3242 = vmatpush1.msra.mxu0 %v3165
    %3243 = vmatprep.subr.mxu0 %v3168
    %3244 = vmatpush1.msra.mxu0 %v3167
    %3245 = vmatprep.subr.mxu0 %v3170
    %3246 = vmatpush1.msra.mxu0 %v3169
    %3247 = vmatprep.subr.mxu0 %v3172
    %3248 = vmatpush1.msra.mxu0 %v3171
    %3249 = vmatprep.subr.mxu0 %v3174
    %3250 = vmatpush1.msra.mxu0 %v3173
    %3251 = vmatprep.subr.mxu0 %v3176
    %3252 = vmatpush1.msra.mxu0 %v3175
    %3253 = vmatprep.subr.mxu0 %v3178
    %3254 = vmatpush1.msra.mxu0 %v3177
    %3255 = vmatprep.subr.mxu0 %v3180
    %3256 = vmatpush1.msra.mxu0 %v3179
    %3257 = vmatprep.subr.mxu0 %v3182
    %3258 = vmatpush1.msra.mxu0 %v3181
    %3259 = vmatprep.subr.mxu0 %v3184
    %3260 = vmatpush1.msra.mxu0 %v3183
    %3261 = vmatprep.subr.mxu0 %v3186
    %3262 = vmatpush1.msra.mxu0 %v3185
    %3263 = vmatprep.subr.mxu0 %v3188
    %3264 = vmatpush1.msra.mxu0 %v3187
    %3265 = vmatprep.subr.mxu0 %v3190
    %3266 = vmatpush1.msra.mxu0 %v3189
    %3267 = vmatprep.subr.mxu0 %v3192
    %3268 = vmatpush1.msra.mxu0 %v3191
    %3269 = vmatprep.subr.mxu0 %v3194
    %3270 = vmatpush1.msra.mxu0 %v3193
    %3271 = vmatprep.subr.mxu0 %v3196
    %3272 = vmatpush1.msra.mxu0 %v3195
    %3273 = vmatprep.mubr.f32.mxu0 %v3128
    %3274 = vmatmul.mubr.f32.gmra.mrb[0].mxu0 %v3127
    %v3275 = vpop.f32.mrb[0].mxu0
    %v3276 = vadd.f32 %v3202, %v3275
    %v3277 = vpop.f32.mrb[0].mxu0
    %v3278 = vadd.f32 %v3206, %v3277
    %3279 = vdwg.mxu0
    %v3280 = vmax.f32 %v3276, 0.0
    %v3281 = vmax.f32 %v3278, 0.0
    %s3282 = sshll.u32 %s2989, 4
    %3283 = dma.done %s637, %s3282
    %v3284 = vld [vmem:[#allocation7] sm:$0xff]
    %v3285 = vld [vmem:[#allocation7 + $0x8] sm:$0xff]
    %v3286 = vld [vmem:[#allocation7 + $0x10] sm:$0xff]
    %v3287 = vld [vmem:[#allocation7 + $0x18] sm:$0xff]
    %v3288 = vld [vmem:[#allocation7 + $0x20] sm:$0xff]
    %v3289 = vld [vmem:[#allocation7 + $0x28] sm:$0xff]
    %v3290 = vld [vmem:[#allocation7 + $0x30] sm:$0xff]
    %v3291 = vld [vmem:[#allocation7 + $0x38] sm:$0xff]
    %v3292 = vld [vmem:[#allocation7 + $0x40] sm:$0xff]
    %v3293 = vld [vmem:[#allocation7 + $0x48] sm:$0xff]
    %v3294 = vld [vmem:[#allocation7 + $0x50] sm:$0xff]
    %v3295 = vld [vmem:[#allocation7 + $0x58] sm:$0xff]
    %v3296 = vld [vmem:[#allocation7 + $0x60] sm:$0xff]
    %v3297 = vld [vmem:[#allocation7 + $0x68] sm:$0xff]
    %v3298 = vld [vmem:[#allocation7 + $0x70] sm:$0xff]
    %v3299 = vld [vmem:[#allocation7 + $0x78] sm:$0xff]
    %v3300 = vld [vmem:[#allocation7 + $0x80] sm:$0xff]
    %v3301 = vld [vmem:[#allocation7 + $0x88] sm:$0xff]
    %v3302 = vld [vmem:[#allocation7 + $0x90] sm:$0xff]
    %v3303 = vld [vmem:[#allocation7 + $0x98] sm:$0xff]
    %v3304 = vld [vmem:[#allocation7 + $0xa0] sm:$0xff]
    %v3305 = vld [vmem:[#allocation7 + $0xa8] sm:$0xff]
    %v3306 = vld [vmem:[#allocation7 + $0xb0] sm:$0xff]
    %v3307 = vld [vmem:[#allocation7 + $0xb8] sm:$0xff]
    %v3308 = vld [vmem:[#allocation7 + $0xc0] sm:$0xff]
    %v3309 = vld [vmem:[#allocation7 + $0xc8] sm:$0xff]
    %v3310 = vld [vmem:[#allocation7 + $0xd0] sm:$0xff]
    %v3311 = vld [vmem:[#allocation7 + $0xd8] sm:$0xff]
    %v3312 = vld [vmem:[#allocation7 + $0xe0] sm:$0xff]
    %v3313 = vld [vmem:[#allocation7 + $0xe8] sm:$0xff]
    %v3314 = vld [vmem:[#allocation7 + $0xf0] sm:$0xff]
    %v3315 = vld [vmem:[#allocation7 + $0xf8] sm:$0xff]
    %v3316 = vld [vmem:[#allocation7 + $0x100] sm:$0xff]
    %v3317 = vld [vmem:[#allocation7 + $0x108] sm:$0xff]
    %v3318 = vld [vmem:[#allocation7 + $0x110] sm:$0xff]
    %v3319 = vld [vmem:[#allocation7 + $0x118] sm:$0xff]
    %v3320 = vld [vmem:[#allocation7 + $0x120] sm:$0xff]
    %v3321 = vld [vmem:[#allocation7 + $0x128] sm:$0xff]
    %v3322 = vld [vmem:[#allocation7 + $0x130] sm:$0xff]
    %v3323 = vld [vmem:[#allocation7 + $0x138] sm:$0xff]
    %v3324 = vld [vmem:[#allocation7 + $0x140] sm:$0xff]
    %v3325 = vld [vmem:[#allocation7 + $0x148] sm:$0xff]
    %v3326 = vld [vmem:[#allocation7 + $0x150] sm:$0xff]
    %v3327 = vld [vmem:[#allocation7 + $0x158] sm:$0xff]
    %v3328 = vld [vmem:[#allocation7 + $0x160] sm:$0xff]
    %v3329 = vld [vmem:[#allocation7 + $0x168] sm:$0xff]
    %v3330 = vld [vmem:[#allocation7 + $0x170] sm:$0xff]
    %v3331 = vld [vmem:[#allocation7 + $0x178] sm:$0xff]
    %v3332 = vld [vmem:[%s7 + $0xa] sm:$0x3]
    %v3334 = vlaneseq
    %v3335 = vshrl.u32 %v3334, 7
    %v3336 = vsub.s32 0, %v3335
    %v3337 = vrot.slane %v3332, %v3336
    %v3338 = vlaneseq
    %v3339 = vshrl.u32 %v3338, 7
    %v3340 = vsub.s32 1, %v3339
    %v3341 = vrot.slane %v3332, %v3340
    %v3345 = vsel %vm3052, %v3281, 0
    %3347 = vmatprep.subr.mxu0 %v3285
    %3348 = vmatpush1.msra.mxu0 %v3284
    %3349 = vmatprep.subr.mxu0 %v3287
    %3350 = vmatpush1.msra.mxu0 %v3286
    %3351 = vmatprep.subr.mxu0 %v3289
    %3352 = vmatpush1.msra.mxu0 %v3288
    %3353 = vmatprep.subr.mxu0 %v3291
    %3354 = vmatpush1.msra.mxu0 %v3290
    %3355 = vmatprep.subr.mxu0 %v3293
    %3356 = vmatpush1.msra.mxu0 %v3292
    %3357 = vmatprep.subr.mxu0 %v3295
    %3358 = vmatpush1.msra.mxu0 %v3294
    %3359 = vmatprep.subr.mxu0 %v3297
    %3360 = vmatpush1.msra.mxu0 %v3296
    %3361 = vmatprep.subr.mxu0 %v3299
    %3362 = vmatpush1.msra.mxu0 %v3298
    %3363 = vmatprep.subr.mxu0 %v3301
    %3364 = vmatpush1.msra.mxu0 %v3300
    %3365 = vmatprep.subr.mxu0 %v3303
    %3366 = vmatpush1.msra.mxu0 %v3302
    %3367 = vmatprep.subr.mxu0 %v3305
    %3368 = vmatpush1.msra.mxu0 %v3304
    %3369 = vmatprep.subr.mxu0 %v3307
    %3370 = vmatpush1.msra.mxu0 %v3306
    %3371 = vmatprep.subr.mxu0 %v3309
    %3372 = vmatpush1.msra.mxu0 %v3308
    %3373 = vmatprep.subr.mxu0 %v3311
    %3374 = vmatpush1.msra.mxu0 %v3310
    %3375 = vmatprep.subr.mxu0 %v3313
    %3376 = vmatpush1.msra.mxu0 %v3312
    %3377 = vmatprep.subr.mxu0 %v3315
    %3378 = vmatpush1.msra.mxu0 %v3314
    %3379 = vmatprep.subr.mxu0 %v3317
    %3380 = vmatpush1.msra.mxu0 %v3316
    %3381 = vmatprep.subr.mxu0 %v3319
    %3382 = vmatpush1.msra.mxu0 %v3318
    %3383 = vmatprep.subr.mxu0 %v3321
    %3384 = vmatpush1.msra.mxu0 %v3320
    %3385 = vmatprep.subr.mxu0 %v3323
    %3386 = vmatpush1.msra.mxu0 %v3322
    %3387 = vmatprep.subr.mxu0 %v3325
    %3388 = vmatpush1.msra.mxu0 %v3324
    %3389 = vmatprep.subr.mxu0 %v3327
    %3390 = vmatpush1.msra.mxu0 %v3326
    %3391 = vmatprep.subr.mxu0 %v3329
    %3392 = vmatpush1.msra.mxu0 %v3328
    %3393 = vmatprep.subr.mxu0 %v3331
    %3394 = vmatpush1.msra.mxu0 %v3330
    %3395 = vmatprep.subr.mxu0 0.0
    %3396 = vmatpush1.msra.mxu0 0.0
    %3397 = vmatprep.subr.mxu0 0.0
    %3398 = vmatpush1.msra.mxu0 0.0
    %3399 = vmatprep.subr.mxu0 0.0
    %3400 = vmatpush1.msra.mxu0 0.0
    %3401 = vmatprep.subr.mxu0 0.0
    %3402 = vmatpush1.msra.mxu0 0.0
    %3403 = vmatprep.subr.mxu0 0.0
    %3404 = vmatpush1.msra.mxu0 0.0
    %3405 = vmatprep.subr.mxu0 0.0
    %3406 = vmatpush1.msra.mxu0 0.0
    %3407 = vmatprep.subr.mxu0 0.0
    %3408 = vmatpush1.msra.mxu0 0.0
    %3409 = vmatprep.subr.mxu0 0.0
    %3410 = vmatpush1.msra.mxu0 0.0
    %3411 = vmatprep.mubr.f32.mxu0 %v3345
    %3412 = vmatmul.mubr.f32.gmra.mrb[0].mxu0 %v3280
    %v3413 = vpop.f32.mrb[0].mxu0
    %v3414 = vadd.f32 %v3337, %v3413
    %v3415 = vpop.f32.mrb[0].mxu0
    %v3416 = vadd.f32 %v3341, %v3415
    %3417 = vdwg.mxu0
    %v3418 = vmax.f32 %v3414, 0.0
    %v3419 = vmax.f32 %v3416, 0.0
    %s3420 = smul.u32 160, 1
    %s3421 = sshll.u32 %s3420, 4
    %3422 = dma.done %s774, %s3421
    %v3423 = vld [vmem:[#allocation8] sm:$0xff]
    %v3424 = vld [vmem:[#allocation8 + $0x8] sm:$0xff]
    %v3425 = vld [vmem:[#allocation8 + $0x10] sm:$0xff]
    %v3426 = vld [vmem:[#allocation8 + $0x18] sm:$0xff]
    %v3427 = vld [vmem:[#allocation8 + $0x20] sm:$0xff]
    %v3428 = vld [vmem:[#allocation8 + $0x28] sm:$0xff]
    %v3429 = vld [vmem:[#allocation8 + $0x30] sm:$0xff]
    %v3430 = vld [vmem:[#allocation8 + $0x38] sm:$0xff]
    %v3431 = vld [vmem:[#allocation8 + $0x40] sm:$0xff]
    %v3432 = vld [vmem:[#allocation8 + $0x48] sm:$0xff]
    %v3433 = vld [vmem:[#allocation8 + $0x50] sm:$0xff]
    %v3434 = vld [vmem:[#allocation8 + $0x58] sm:$0xff]
    %v3435 = vld [vmem:[#allocation8 + $0x60] sm:$0xff]
    %v3436 = vld [vmem:[#allocation8 + $0x68] sm:$0xff]
    %v3437 = vld [vmem:[#allocation8 + $0x70] sm:$0xff]
    %v3438 = vld [vmem:[#allocation8 + $0x78] sm:$0xff]
    %v3439 = vld [vmem:[#allocation8 + $0x80] sm:$0xff]
    %v3440 = vld [vmem:[#allocation8 + $0x88] sm:$0xff]
    %v3441 = vld [vmem:[#allocation8 + $0x90] sm:$0xff]
    %v3442 = vld [vmem:[#allocation8 + $0x98] sm:$0xff]
    %v3443 = vld [vmem:[%s7 + $0xc] sm:$0x1]
    %v3445 = vlaneseq
    %v3446 = vshrl.u32 %v3445, 7
    %v3447 = vsub.s32 0, %v3446
    %v3448 = vrot.slane %v3443, %v3447
    %v3451 = vsel %vm2911, %v3419, 0
    %3453 = vmatprep.subr.mxu0 0.0
    %3454 = vmatpush1.msra.mxu0 %v3423
    %3455 = vmatprep.subr.mxu0 0.0
    %3456 = vmatpush1.msra.mxu0 %v3424
    %3457 = vmatprep.subr.mxu0 0.0
    %3458 = vmatpush1.msra.mxu0 %v3425
    %3459 = vmatprep.subr.mxu0 0.0
    %3460 = vmatpush1.msra.mxu0 %v3426
    %3461 = vmatprep.subr.mxu0 0.0
    %3462 = vmatpush1.msra.mxu0 %v3427
    %3463 = vmatprep.subr.mxu0 0.0
    %3464 = vmatpush1.msra.mxu0 %v3428
    %3465 = vmatprep.subr.mxu0 0.0
    %3466 = vmatpush1.msra.mxu0 %v3429
    %3467 = vmatprep.subr.mxu0 0.0
    %3468 = vmatpush1.msra.mxu0 %v3430
    %3469 = vmatprep.subr.mxu0 0.0
    %3470 = vmatpush1.msra.mxu0 %v3431
    %3471 = vmatprep.subr.mxu0 0.0
    %3472 = vmatpush1.msra.mxu0 %v3432
    %3473 = vmatprep.subr.mxu0 0.0
    %3474 = vmatpush1.msra.mxu0 %v3433
    %3475 = vmatprep.subr.mxu0 0.0
    %3476 = vmatpush1.msra.mxu0 %v3434
    %3477 = vmatprep.subr.mxu0 0.0
    %3478 = vmatpush1.msra.mxu0 %v3435
    %3479 = vmatprep.subr.mxu0 0.0
    %3480 = vmatpush1.msra.mxu0 %v3436
    %3481 = vmatprep.subr.mxu0 0.0
    %3482 = vmatpush1.msra.mxu0 %v3437
    %3483 = vmatprep.subr.mxu0 0.0
    %3484 = vmatpush1.msra.mxu0 %v3438
    %3485 = vmatprep.subr.mxu0 0.0
    %3486 = vmatpush1.msra.mxu0 %v3439
    %3487 = vmatprep.subr.mxu0 0.0
    %3488 = vmatpush1.msra.mxu0 %v3440
    %3489 = vmatprep.subr.mxu0 0.0
    %3490 = vmatpush1.msra.mxu0 %v3441
    %3491 = vmatprep.subr.mxu0 0.0
    %3492 = vmatpush1.msra.mxu0 %v3442
    %3493 = vmatprep.subr.mxu0 0.0
    %3494 = vmatpush1.msra.mxu0 0.0
    %3495 = vmatprep.subr.mxu0 0.0
    %3496 = vmatpush1.msra.mxu0 0.0
    %3497 = vmatprep.subr.mxu0 0.0
    %3498 = vmatpush1.msra.mxu0 0.0
    %3499 = vmatprep.subr.mxu0 0.0
    %3500 = vmatpush1.msra.mxu0 0.0
    %3501 = vmatprep.subr.mxu0 0.0
    %3502 = vmatpush1.msra.mxu0 0.0
    %3503 = vmatprep.subr.mxu0 0.0
    %3504 = vmatpush1.msra.mxu0 0.0
    %3505 = vmatprep.subr.mxu0 0.0
    %3506 = vmatpush1.msra.mxu0 0.0
    %3507 = vmatprep.subr.mxu0 0.0
    %3508 = vmatpush1.msra.mxu0 0.0
    %3509 = vmatprep.subr.mxu0 0.0
    %3510 = vmatpush1.msra.mxu0 0.0
    %3511 = vmatprep.subr.mxu0 0.0
    %3512 = vmatpush1.msra.mxu0 0.0
    %3513 = vmatprep.subr.mxu0 0.0
    %3514 = vmatpush1.msra.mxu0 0.0
    %3515 = vmatprep.subr.mxu0 0.0
    %3516 = vmatpush1.msra.mxu0 0.0
    %3517 = vmatprep.mubr.f32.mxu0 %v3451
    %3518 = vmatmul.mubr.f32.gmra.mrb[0].mxu0 %v3418
    %v3519 = vpop.f32.mrb[0].mxu0
    %v3520 = vadd.f32 %v3448, %v3519
    %v3521 = vpop.f32.mrb[0].mxu0
    %3522 = vdwg.mxu0
    %v3523 = vmax.f32 %v3520, 0.0
    %s3524 = smul.u32 128, 1
    %s3525 = sshll.u32 %s3524, 4
    %3526 = dma.done %s855, %s3525
    %v3527 = vld [vmem:[#allocation9] sm:$0xff]
    %v3528 = vld [vmem:[#allocation9 + $0x8] sm:$0xff]
    %v3529 = vld [vmem:[#allocation9 + $0x10] sm:$0xff]
    %v3530 = vld [vmem:[#allocation9 + $0x18] sm:$0xff]
    %v3531 = vld [vmem:[#allocation9 + $0x20] sm:$0xff]
    %v3532 = vld [vmem:[#allocation9 + $0x28] sm:$0xff]
    %v3533 = vld [vmem:[#allocation9 + $0x30] sm:$0xff]
    %v3534 = vld [vmem:[#allocation9 + $0x38] sm:$0xff]
    %v3535 = vld [vmem:[#allocation9 + $0x40] sm:$0xff]
    %v3536 = vld [vmem:[#allocation9 + $0x48] sm:$0xff]
    %v3537 = vld [vmem:[#allocation9 + $0x50] sm:$0xff]
    %v3538 = vld [vmem:[#allocation9 + $0x58] sm:$0xff]
    %v3539 = vld [vmem:[#allocation9 + $0x60] sm:$0xff]
    %v3540 = vld [vmem:[#allocation9 + $0x68] sm:$0xff]
    %v3541 = vld [vmem:[#allocation9 + $0x70] sm:$0xff]
    %v3542 = vld [vmem:[#allocation9 + $0x78] sm:$0xff]
    %v3543 = vld [vmem:[%s7 + $0xd] sm:$0x1]
    %v3545 = vlaneseq
    %v3546 = vshrl.u32 %v3545, 7
    %v3547 = vsub.s32 0, %v3546
    %v3548 = vrot.slane %v3543, %v3547
    %3550 = vmatprep.subr.mxu0 0.0
    %3551 = vmatpush1.msra.mxu0 %v3527
    %3552 = vmatprep.subr.mxu0 0.0
    %3553 = vmatpush1.msra.mxu0 %v3528
    %3554 = vmatprep.subr.mxu0 0.0
    %3555 = vmatpush1.msra.mxu0 %v3529
    %3556 = vmatprep.subr.mxu0 0.0
    %3557 = vmatpush1.msra.mxu0 %v3530
    %3558 = vmatprep.subr.mxu0 0.0
    %3559 = vmatpush1.msra.mxu0 %v3531
    %3560 = vmatprep.subr.mxu0 0.0
    %3561 = vmatpush1.msra.mxu0 %v3532
    %3562 = vmatprep.subr.mxu0 0.0
    %3563 = vmatpush1.msra.mxu0 %v3533
    %3564 = vmatprep.subr.mxu0 0.0
    %3565 = vmatpush1.msra.mxu0 %v3534
    %3566 = vmatprep.subr.mxu0 0.0
    %3567 = vmatpush1.msra.mxu0 %v3535
    %3568 = vmatprep.subr.mxu0 0.0
    %3569 = vmatpush1.msra.mxu0 %v3536
    %3570 = vmatprep.subr.mxu0 0.0
    %3571 = vmatpush1.msra.mxu0 %v3537
    %3572 = vmatprep.subr.mxu0 0.0
    %3573 = vmatpush1.msra.mxu0 %v3538
    %3574 = vmatprep.subr.mxu0 0.0
    %3575 = vmatpush1.msra.mxu0 %v3539
    %3576 = vmatprep.subr.mxu0 0.0
    %3577 = vmatpush1.msra.mxu0 %v3540
    %3578 = vmatprep.subr.mxu0 0.0
    %3579 = vmatpush1.msra.mxu0 %v3541
    %3580 = vmatprep.subr.mxu0 0.0
    %3581 = vmatpush1.msra.mxu0 %v3542
    %3582 = vmatprep.subr.mxu0 0.0
    %3583 = vmatpush1.msra.mxu0 0.0
    %3584 = vmatprep.subr.mxu0 0.0
    %3585 = vmatpush1.msra.mxu0 0.0
    %3586 = vmatprep.subr.mxu0 0.0
    %3587 = vmatpush1.msra.mxu0 0.0
    %3588 = vmatprep.subr.mxu0 0.0
    %3589 = vmatpush1.msra.mxu0 0.0
    %3590 = vmatprep.subr.mxu0 0.0
    %3591 = vmatpush1.msra.mxu0 0.0
    %3592 = vmatprep.subr.mxu0 0.0
    %3593 = vmatpush1.msra.mxu0 0.0
    %3594 = vmatprep.subr.mxu0 0.0
    %3595 = vmatpush1.msra.mxu0 0.0
    %3596 = vmatprep.subr.mxu0 0.0
    %3597 = vmatpush1.msra.mxu0 0.0
    %3598 = vmatprep.subr.mxu0 0.0
    %3599 = vmatpush1.msra.mxu0 0.0
    %3600 = vmatprep.subr.mxu0 0.0
    %3601 = vmatpush1.msra.mxu0 0.0
    %3602 = vmatprep.subr.mxu0 0.0
    %3603 = vmatpush1.msra.mxu0 0.0
    %3604 = vmatprep.subr.mxu0 0.0
    %3605 = vmatpush1.msra.mxu0 0.0
    %3606 = vmatprep.subr.mxu0 0.0
    %3607 = vmatpush1.msra.mxu0 0.0
    %3608 = vmatprep.subr.mxu0 0.0
    %3609 = vmatpush1.msra.mxu0 0.0
    %3610 = vmatprep.subr.mxu0 0.0
    %3611 = vmatpush1.msra.mxu0 0.0
    %3612 = vmatprep.subr.mxu0 0.0
    %3613 = vmatpush1.msra.mxu0 0.0
    %3614 = vmatprep.mubr.f32.mxu0 0.0
    %3615 = vmatmul.mubr.f32.gmra.mrb[0].mxu0 %v3523
    %v3616 = vpop.f32.mrb[0].mxu0
    %v3617 = vadd.f32 %v3548, %v3616
    %v3618 = vpop.f32.mrb[0].mxu0
    %3619 = vdwg.mxu0
    %v3620 = vmax.f32 %v3617, 0.0
    %v3621 = vld [vmem:[%s6] sm:$0xff]
    %v3622 = vld [vmem:[%s6 + $0x8] sm:$0xff]
    %vm3623 = vcmask 15360
    %v3625 = vsel %vm3623, %v3621, 0
    %v3628 = vsel %vm3623, %v3622, 0
    %vm3630 = vcmask 1041408
    %v3632 = vsel %vm3630, %v3620, 0
    %3634 = vmatprep.subr.mxu0 0.0
    %3635 = vmatpush1.msra.mxu0 %v3632
    %3636 = vmatprep.subr.mxu0 0.0
    %3637 = vmatpush1.msra.mxu0 0.0
    %3638 = vmatprep.subr.mxu0 0.0
    %3639 = vmatpush1.msra.mxu0 0.0
    %3640 = vmatprep.subr.mxu0 0.0
    %3641 = vmatpush1.msra.mxu0 0.0
    %3642 = vmatprep.subr.mxu0 0.0
    %3643 = vmatpush1.msra.mxu0 0.0
    %3644 = vmatprep.subr.mxu0 0.0
    %3645 = vmatpush1.msra.mxu0 0.0
    %3646 = vmatprep.subr.mxu0 0.0
    %3647 = vmatpush1.msra.mxu0 0.0
    %3648 = vmatprep.subr.mxu0 0.0
    %3649 = vmatpush1.msra.mxu0 0.0
    %3650 = vmatprep.subr.mxu0 0.0
    %3651 = vmatpush1.msra.mxu0 0.0
    %3652 = vmatprep.subr.mxu0 0.0
    %3653 = vmatpush1.msra.mxu0 0.0
    %3654 = vmatprep.subr.mxu0 0.0
    %3655 = vmatpush1.msra.mxu0 0.0
    %3656 = vmatprep.subr.mxu0 0.0
    %3657 = vmatpush1.msra.mxu0 0.0
    %3658 = vmatprep.subr.mxu0 0.0
    %3659 = vmatpush1.msra.mxu0 0.0
    %3660 = vmatprep.subr.mxu0 0.0
    %3661 = vmatpush1.msra.mxu0 0.0
    %3662 = vmatprep.subr.mxu0 0.0
    %3663 = vmatpush1.msra.mxu0 0.0
    %3664 = vmatprep.subr.mxu0 0.0
    %3665 = vmatpush1.msra.mxu0 0.0
    %3666 = vmatprep.subr.mxu0 0.0
    %3667 = vmatpush1.msra.mxu0 0.0
    %3668 = vmatprep.subr.mxu0 0.0
    %3669 = vmatpush1.msra.mxu0 0.0
    %3670 = vmatprep.subr.mxu0 0.0
    %3671 = vmatpush1.msra.mxu0 0.0
    %3672 = vmatprep.subr.mxu0 0.0
    %3673 = vmatpush1.msra.mxu0 0.0
    %3674 = vmatprep.subr.mxu0 0.0
    %3675 = vmatpush1.msra.mxu0 0.0
    %3676 = vmatprep.subr.mxu0 0.0
    %3677 = vmatpush1.msra.mxu0 0.0
    %3678 = vmatprep.subr.mxu0 0.0
    %3679 = vmatpush1.msra.mxu0 0.0
    %3680 = vmatprep.subr.mxu0 0.0
    %3681 = vmatpush1.msra.mxu0 0.0
    %3682 = vmatprep.subr.mxu0 0.0
    %3683 = vmatpush1.msra.mxu0 0.0
    %3684 = vmatprep.subr.mxu0 0.0
    %3685 = vmatpush1.msra.mxu0 0.0
    %3686 = vmatprep.subr.mxu0 0.0
    %3687 = vmatpush1.msra.mxu0 0.0
    %3688 = vmatprep.subr.mxu0 0.0
    %3689 = vmatpush1.msra.mxu0 0.0
    %3690 = vmatprep.subr.mxu0 0.0
    %3691 = vmatpush1.msra.mxu0 0.0
    %3692 = vmatprep.subr.mxu0 0.0
    %3693 = vmatpush1.msra.mxu0 0.0
    %3694 = vmatprep.subr.mxu0 0.0
    %3695 = vmatpush1.msra.mxu0 0.0
    %3696 = vmatprep.subr.mxu0 0.0
    %3697 = vmatpush1.msra.mxu0 0.0
    %3698 = vmatprep.mubr.f32.mxu0 0.0
    %3699 = vmatmul.mubr.f32.gmra.mrb[0].mxu0 %v3625
    %v3700 = vpop.f32.mrb[0].mxu0
    %v3701 = vadd.f32 0.0, %v3700
    %v3702 = vpop.f32.mrb[0].mxu0
    %3703 = vmatprep.mubr.f32.mxu0 0.0
    %3704 = vmatmul.mubr.f32.gmra.mrb[0].mxu0 %v3628
    %v3705 = vpop.f32.mrb[0].mxu0
    %v3706 = vadd.f32 0.0, %v3705
    %v3707 = vpop.f32.mrb[0].mxu0
    %3708 = vdwg.mxu0
    %v3709 = vld [vmem:[%s4] sm:$0xff]
    %v3710 = vld [vmem:[%s4 + $0x8] sm:$0xff]
    %v3711 = vmul.f32 %v3701, %v3709
    %v3712 = vmul.f32 %v3706, %v3710
    %v3713 = vld [vmem:[%s3] sm:$0xff]
    %v3714 = vld [vmem:[%s3 + $0x8] sm:$0xff]
    %v3715 = vld [vmem:[%s3 + $0x10] sm:$0xff]
    %v3716 = vld [vmem:[%s3 + $0x18] sm:$0xff]
    %v3717 = vld [vmem:[%s3 + $0x20] sm:$0xff]
    %v3718 = vld [vmem:[%s3 + $0x28] sm:$0xff]
    %v3719 = vld [vmem:[%s3 + $0x30] sm:$0xff]
    %v3720 = vld [vmem:[%s3 + $0x38] sm:$0xff]
    %v3721 = vld [vmem:[%s3 + $0x40] sm:$0xff]
    %v3722 = vld [vmem:[%s3 + $0x48] sm:$0xff]
    %v3723 = vld [vmem:[%s3 + $0x50] sm:$0xff]
    %v3724 = vld [vmem:[%s3 + $0x58] sm:$0xff]
    %v3726 = vsel %vm2659, %v3711, 0
    %v3729 = vsel %vm2659, %v3712, 0
    %3731 = vmatprep.subr.mxu0 0.0
    %3732 = vmatpush1.msra.mxu0 %v3713
    %3733 = vmatprep.subr.mxu0 0.0
    %3734 = vmatpush1.msra.mxu0 %v3714
    %3735 = vmatprep.subr.mxu0 0.0
    %3736 = vmatpush1.msra.mxu0 %v3715
    %3737 = vmatprep.subr.mxu0 0.0
    %3738 = vmatpush1.msra.mxu0 %v3716
    %3739 = vmatprep.subr.mxu0 0.0
    %3740 = vmatpush1.msra.mxu0 %v3717
    %3741 = vmatprep.subr.mxu0 0.0
    %3742 = vmatpush1.msra.mxu0 %v3718
    %3743 = vmatprep.subr.mxu0 0.0
    %3744 = vmatpush1.msra.mxu0 %v3719
    %3745 = vmatprep.subr.mxu0 0.0
    %3746 = vmatpush1.msra.mxu0 %v3720
    %3747 = vmatprep.subr.mxu0 0.0
    %3748 = vmatpush1.msra.mxu0 %v3721
    %3749 = vmatprep.subr.mxu0 0.0
    %3750 = vmatpush1.msra.mxu0 %v3722
    %3751 = vmatprep.subr.mxu0 0.0
    %3752 = vmatpush1.msra.mxu0 %v3723
    %3753 = vmatprep.subr.mxu0 0.0
    %3754 = vmatpush1.msra.mxu0 %v3724
    %3755 = vmatprep.subr.mxu0 0.0
    %3756 = vmatpush1.msra.mxu0 0.0
    %3757 = vmatprep.subr.mxu0 0.0
    %3758 = vmatpush1.msra.mxu0 0.0
    %3759 = vmatprep.subr.mxu0 0.0
    %3760 = vmatpush1.msra.mxu0 0.0
    %3761 = vmatprep.subr.mxu0 0.0
    %3762 = vmatpush1.msra.mxu0 0.0
    %3763 = vmatprep.subr.mxu0 0.0
    %3764 = vmatpush1.msra.mxu0 0.0
    %3765 = vmatprep.subr.mxu0 0.0
    %3766 = vmatpush1.msra.mxu0 0.0
    %3767 = vmatprep.subr.mxu0 0.0
    %3768 = vmatpush1.msra.mxu0 0.0
    %3769 = vmatprep.subr.mxu0 0.0
    %3770 = vmatpush1.msra.mxu0 0.0
    %3771 = vmatprep.subr.mxu0 0.0
    %3772 = vmatpush1.msra.mxu0 0.0
    %3773 = vmatprep.subr.mxu0 0.0
    %3774 = vmatpush1.msra.mxu0 0.0
    %3775 = vmatprep.subr.mxu0 0.0
    %3776 = vmatpush1.msra.mxu0 0.0
    %3777 = vmatprep.subr.mxu0 0.0
    %3778 = vmatpush1.msra.mxu0 0.0
    %3779 = vmatprep.subr.mxu0 0.0
    %3780 = vmatpush1.msra.mxu0 0.0
    %3781 = vmatprep.subr.mxu0 0.0
    %3782 = vmatpush1.msra.mxu0 0.0
    %3783 = vmatprep.subr.mxu0 0.0
    %3784 = vmatpush1.msra.mxu0 0.0
    %3785 = vmatprep.subr.mxu0 0.0
    %3786 = vmatpush1.msra.mxu0 0.0
    %3787 = vmatprep.subr.mxu0 0.0
    %3788 = vmatpush1.msra.mxu0 0.0
    %3789 = vmatprep.subr.mxu0 0.0
    %3790 = vmatpush1.msra.mxu0 0.0
    %3791 = vmatprep.subr.mxu0 0.0
    %3792 = vmatpush1.msra.mxu0 0.0
    %3793 = vmatprep.subr.mxu0 0.0
    %3794 = vmatpush1.msra.mxu0 0.0
    %3795 = vmatprep.mubr.f32.mxu0 0.0
    %3796 = vmatmul.mubr.f32.gmra.mrb[0].mxu0 %v3726
    %v3797 = vpop.f32.mrb[0].mxu0
    %v3798 = vadd.f32 0.0, %v3797
    %v3799 = vpop.f32.mrb[0].mxu0
    %3800 = vmatprep.mubr.f32.mxu0 0.0
    %3801 = vmatmul.mubr.f32.gmra.mrb[0].mxu0 %v3729
    %v3802 = vpop.f32.mrb[0].mxu0
    %v3803 = vadd.f32 0.0, %v3802
    %v3804 = vpop.f32.mrb[0].mxu0
    %3805 = vdwg.mxu0
    %v3806 = vld [vmem:[%s8] sm:$0xff]
    %v3807 = vld [vmem:[%s8 + $0x8] sm:$0xff]
    %v3808 = vld [vmem:[%s8 + $0x10] sm:$0xff]
    %v3809 = vld [vmem:[%s8 + $0x18] sm:$0xf]
    %v3810 = vld [vmem:[%s8 + $0x20] sm:$0xf]
    %v3811 = vld [vmem:[%s8 + $0x28] sm:$0xf]
    %v3812 = vld [vmem:[%s7 + $0xe] sm:$0x7]
    %v3814 = vlaneseq
    %v3815 = vshrl.u32 %v3814, 7
    %v3816 = vsub.s32 0, %v3815
    %v3817 = vrot.slane %v3812, %v3816
    %v3818 = vlaneseq
    %v3819 = vshrl.u32 %v3818, 7
    %v3820 = vsub.s32 1, %v3819
    %v3821 = vrot.slane %v3812, %v3820
    %v3822 = vlaneseq
    %v3823 = vshrl.u32 %v3822, 7
    %v3824 = vsub.s32 2, %v3823
    %v3825 = vrot.slane %v3812, %v3824
    %v3830 = vsel %vm2472, %v3798, 0
    %v3833 = vsel %vm2472, %v3803, 0
    %v3836 = vsel %vm2479, %v3809, 0
    %v3839 = vsel %vm2479, %v3810, 0
    %v3842 = vsel %vm2479, %v3811, 0
    %3844 = vmatprep.subr.mxu0 %v3807
    %3845 = vmatpush1.msra.mxu0 %v3806
    %3846 = vmatprep.subr.mxu0 %v3839
    %3847 = vmatpush1.msra.mxu0 %v3836
    %3848 = vmatprep.subr.mxu0 0.0
    %3849 = vmatpush1.msra.mxu0 0.0
    %3850 = vmatprep.subr.mxu0 0.0
    %3851 = vmatpush1.msra.mxu0 0.0
    %3852 = vmatprep.subr.mxu0 0.0
    %3853 = vmatpush1.msra.mxu0 0.0
    %3854 = vmatprep.subr.mxu0 0.0
    %3855 = vmatpush1.msra.mxu0 0.0
    %3856 = vmatprep.subr.mxu0 0.0
    %3857 = vmatpush1.msra.mxu0 0.0
    %3858 = vmatprep.subr.mxu0 0.0
    %3859 = vmatpush1.msra.mxu0 0.0
    %3860 = vmatprep.subr.mxu0 0.0
    %3861 = vmatpush1.msra.mxu0 0.0
    %3862 = vmatprep.subr.mxu0 0.0
    %3863 = vmatpush1.msra.mxu0 0.0
    %3864 = vmatprep.subr.mxu0 0.0
    %3865 = vmatpush1.msra.mxu0 0.0
    %3866 = vmatprep.subr.mxu0 0.0
    %3867 = vmatpush1.msra.mxu0 0.0
    %3868 = vmatprep.subr.mxu0 0.0
    %3869 = vmatpush1.msra.mxu0 0.0
    %3870 = vmatprep.subr.mxu0 0.0
    %3871 = vmatpush1.msra.mxu0 0.0
    %3872 = vmatprep.subr.mxu0 0.0
    %3873 = vmatpush1.msra.mxu0 0.0
    %3874 = vmatprep.subr.mxu0 0.0
    %3875 = vmatpush1.msra.mxu0 0.0
    %3876 = vmatprep.subr.mxu0 0.0
    %3877 = vmatpush1.msra.mxu0 0.0
    %3878 = vmatprep.subr.mxu0 0.0
    %3879 = vmatpush1.msra.mxu0 0.0
    %3880 = vmatprep.subr.mxu0 0.0
    %3881 = vmatpush1.msra.mxu0 0.0
    %3882 = vmatprep.subr.mxu0 0.0
    %3883 = vmatpush1.msra.mxu0 0.0
    %3884 = vmatprep.subr.mxu0 0.0
    %3885 = vmatpush1.msra.mxu0 0.0
    %3886 = vmatprep.subr.mxu0 0.0
    %3887 = vmatpush1.msra.mxu0 0.0
    %3888 = vmatprep.subr.mxu0 0.0
    %3889 = vmatpush1.msra.mxu0 0.0
    %3890 = vmatprep.subr.mxu0 0.0
    %3891 = vmatpush1.msra.mxu0 0.0
    %3892 = vmatprep.subr.mxu0 0.0
    %3893 = vmatpush1.msra.mxu0 0.0
    %3894 = vmatprep.subr.mxu0 0.0
    %3895 = vmatpush1.msra.mxu0 0.0
    %3896 = vmatprep.subr.mxu0 0.0
    %3897 = vmatpush1.msra.mxu0 0.0
    %3898 = vmatprep.subr.mxu0 0.0
    %3899 = vmatpush1.msra.mxu0 0.0
    %3900 = vmatprep.subr.mxu0 0.0
    %3901 = vmatpush1.msra.mxu0 0.0
    %3902 = vmatprep.subr.mxu0 0.0
    %3903 = vmatpush1.msra.mxu0 0.0
    %3904 = vmatprep.subr.mxu0 0.0
    %3905 = vmatpush1.msra.mxu0 0.0
    %3906 = vmatprep.subr.mxu0 0.0
    %3907 = vmatpush1.msra.mxu0 0.0
    %3908 = vmatprep.mubr.f32.mxu0 0.0
    %3909 = vmatmul.mubr.f32.gmra.mrb[0].mxu0 %v3830
    %v3910 = vpop.f32.mrb[0].mxu0
    %v3911 = vadd.f32 %v3817, %v3910
    %v3912 = vpop.f32.mrb[0].mxu0
    %v3913 = vadd.f32 %v3821, %v3912
    %3914 = vmatprep.mubr.f32.mxu0 0.0
    %3915 = vmatmul.mubr.f32.gmra.mrb[0].mxu0 %v3833
    %v3916 = vpop.f32.mrb[0].mxu0
    %v3917 = vadd.f32 %v3817, %v3916
    %v3918 = vpop.f32.mrb[0].mxu0
    %v3919 = vadd.f32 %v3821, %v3918
    %3920 = vdwg.mxu0
    %3921 = vmatprep.subr.mxu0 0.0
    %3922 = vmatpush1.msra.mxu0 %v3808
    %3923 = vmatprep.subr.mxu0 0.0
    %3924 = vmatpush1.msra.mxu0 %v3842
    %3925 = vmatprep.subr.mxu0 0.0
    %3926 = vmatpush1.msra.mxu0 0.0
    %3927 = vmatprep.subr.mxu0 0.0
    %3928 = vmatpush1.msra.mxu0 0.0
    %3929 = vmatprep.subr.mxu0 0.0
    %3930 = vmatpush1.msra.mxu0 0.0
    %3931 = vmatprep.subr.mxu0 0.0
    %3932 = vmatpush1.msra.mxu0 0.0
    %3933 = vmatprep.subr.mxu0 0.0
    %3934 = vmatpush1.msra.mxu0 0.0
    %3935 = vmatprep.subr.mxu0 0.0
    %3936 = vmatpush1.msra.mxu0 0.0
    %3937 = vmatprep.subr.mxu0 0.0
    %3938 = vmatpush1.msra.mxu0 0.0
    %3939 = vmatprep.subr.mxu0 0.0
    %3940 = vmatpush1.msra.mxu0 0.0
    %3941 = vmatprep.subr.mxu0 0.0
    %3942 = vmatpush1.msra.mxu0 0.0
    %3943 = vmatprep.subr.mxu0 0.0
    %3944 = vmatpush1.msra.mxu0 0.0
    %3945 = vmatprep.subr.mxu0 0.0
    %3946 = vmatpush1.msra.mxu0 0.0
    %3947 = vmatprep.subr.mxu0 0.0
    %3948 = vmatpush1.msra.mxu0 0.0
    %3949 = vmatprep.subr.mxu0 0.0
    %3950 = vmatpush1.msra.mxu0 0.0
    %3951 = vmatprep.subr.mxu0 0.0
    %3952 = vmatpush1.msra.mxu0 0.0
    %3953 = vmatprep.subr.mxu0 0.0
    %3954 = vmatpush1.msra.mxu0 0.0
    %3955 = vmatprep.subr.mxu0 0.0
    %3956 = vmatpush1.msra.mxu0 0.0
    %3957 = vmatprep.subr.mxu0 0.0
    %3958 = vmatpush1.msra.mxu0 0.0
    %3959 = vmatprep.subr.mxu0 0.0
    %3960 = vmatpush1.msra.mxu0 0.0
    %3961 = vmatprep.subr.mxu0 0.0
    %3962 = vmatpush1.msra.mxu0 0.0
    %3963 = vmatprep.subr.mxu0 0.0
    %3964 = vmatpush1.msra.mxu0 0.0
    %3965 = vmatprep.subr.mxu0 0.0
    %3966 = vmatpush1.msra.mxu0 0.0
    %3967 = vmatprep.subr.mxu0 0.0
    %3968 = vmatpush1.msra.mxu0 0.0
    %3969 = vmatprep.subr.mxu0 0.0
    %3970 = vmatpush1.msra.mxu0 0.0
    %3971 = vmatprep.subr.mxu0 0.0
    %3972 = vmatpush1.msra.mxu0 0.0
    %3973 = vmatprep.subr.mxu0 0.0
    %3974 = vmatpush1.msra.mxu0 0.0
    %3975 = vmatprep.subr.mxu0 0.0
    %3976 = vmatpush1.msra.mxu0 0.0
    %3977 = vmatprep.subr.mxu0 0.0
    %3978 = vmatpush1.msra.mxu0 0.0
    %3979 = vmatprep.subr.mxu0 0.0
    %3980 = vmatpush1.msra.mxu0 0.0
    %3981 = vmatprep.subr.mxu0 0.0
    %3982 = vmatpush1.msra.mxu0 0.0
    %3983 = vmatprep.subr.mxu0 0.0
    %3984 = vmatpush1.msra.mxu0 0.0
    %3985 = vmatprep.mubr.f32.mxu0 0.0
    %3986 = vmatmul.mubr.f32.gmra.mrb[0].mxu0 %v3830
    %v3987 = vpop.f32.mrb[0].mxu0
    %v3988 = vadd.f32 %v3825, %v3987
    %v3989 = vpop.f32.mrb[0].mxu0
    %3990 = vmatprep.mubr.f32.mxu0 0.0
    %3991 = vmatmul.mubr.f32.gmra.mrb[0].mxu0 %v3833
    %v3992 = vpop.f32.mrb[0].mxu0
    %v3993 = vadd.f32 %v3825, %v3992
    %v3994 = vpop.f32.mrb[0].mxu0
    %3995 = vdwg.mxu0
    %3996 = vst [vmem:[#allocation11] sm:$0xff] %v3911
    %3997 = vst [vmem:[#allocation11 + $0x8] sm:$0xff] %v3913
    %vm3998 = vcmask 7168
    %3999 = vst.msk [vmem:[#allocation11 + $0x10] sm:$0xff] %vm3998, %v3988
    %4000 = vst [vmem:[#allocation11 + $0x18] sm:$0xff] %v3917
    %4001 = vst [vmem:[#allocation11 + $0x20] sm:$0xff] %v3919
    %4002 = vst.msk [vmem:[#allocation11 + $0x28] sm:$0xff] %vm3998, %v3993
    // Predicated region
    $region310: #{_lambda_.1} parent=1 // pred_check
      _
    $region311: #{_lambda_.1} parent=1 // pred_check_branch
      %4004 = sbr.rel (0) target = $region313
    $region312: #{_lambda_.1} parent=1 // pred_region
      %s4006 = ssub.s32 768, 768
      %4007 = vsyncadd [#allocation12], %s4006
      %s4008 = sshll.u32 [#allocation11], 4
      %s4009 = int_to_ptr.vmem [resolvable:$true] %s4008
      %4014 = dma.vmem_to_hbm [thread:$0]  %s4009, 768, %s17, [#allocation12], 384, 384, 24
    $region313: #{_lambda_.1} parent=1 // pred_fallthru
      _
    // Predicated region
    $region314: #{_lambda_.1} parent=1 // pred_check
      _
    $region315: #{_lambda_.1} parent=1 // pred_check_branch
      %4016 = sbr.rel (0) target = $region317
    $region316: #{_lambda_.1} parent=1 // pred_region
      %4017 = dma.done [#allocation12], 768
    $region317: #{_lambda_.1} parent=1 // pred_fallthru
      _
    %4018 = vsyncpa [#allocation12], 1
  %4019 = vsyncmov [#allocation10]
  %s4020 = vpop.sfrf %4019
  %p4021 = scmp.eq.s32.totalorder %s4020, 0
  %p4022 = pneg %p4021
  %4024 = shalt.err (%p4022)
  %s4025 = scalar_lea.sflag [#allocation10], 1
  %4026 = vsyncmov %s4025
  %s4027 = vpop.sfrf %4026
  %p4028 = scmp.eq.s32.totalorder %s4027, 0
  %p4029 = pneg %p4028
  %4031 = shalt.err (%p4029)
  %s4032 = scalar_lea.sflag [#allocation10], 2
  %4033 = vsyncmov %s4032
  %s4034 = vpop.sfrf %4033
  %p4035 = scmp.eq.s32.totalorder %s4034, 0
  %p4036 = pneg %p4035
  %4038 = shalt.err (%p4036)
  %s4039 = scalar_lea.sflag [#allocation10], 3
  %4040 = vsyncmov %s4039
  %s4041 = vpop.sfrf %4040
  %p4042 = scmp.eq.s32.totalorder %s4041, 0
  %p4043 = pneg %p4042
  %4045 = shalt.err (%p4043)
  %s4046 = scalar_lea.sflag [#allocation10], 4
  %4047 = vsyncmov %s4046
  %s4048 = vpop.sfrf %4047
  %p4049 = scmp.eq.s32.totalorder %s4048, 0
  %p4050 = pneg %p4049
  %4052 = shalt.err (%p4050)
  %s4053 = scalar_lea.sflag [#allocation10], 5
  %4054 = vsyncmov %s4053
  %s4055 = vpop.sfrf %4054
  %p4056 = scmp.eq.s32.totalorder %s4055, 0
  %p4057 = pneg %p4056
  %4059 = shalt.err (%p4057)
  %s4060 = scalar_lea.sflag [#allocation10], 6
  %4061 = vsyncmov %s4060
  %s4062 = vpop.sfrf %4061
  %p4063 = scmp.eq.s32.totalorder %s4062, 0
  %p4064 = pneg %p4063
  %4066 = shalt.err (%p4064)
  %s4067 = scalar_lea.sflag [#allocation10], 7
  %4068 = vsyncmov %s4067
  %s4069 = vpop.sfrf %4068
  %p4070 = scmp.eq.s32.totalorder %s4069, 0
  %p4071 = pneg %p4070
  %4073 = shalt.err (%p4071)

</llo_original>
